<compile_context>
chip_gen: v7x
topology: tpu7x:2x2x1
jax: 0.10.0
libtpu: 0.0.40
codegen_flags: <defaults>
</compile_context>

<pallas_src>
import functools

import numpy as np
import jax
import jax.numpy as jnp
from jax import lax
from jax.experimental import pallas as pl
from jax.experimental.pallas import tpu as pltpu


def _round_up(n, m):
    return ((n + m - 1) // m) * m


# --------------------------------------------------------------------------
# Offline weight packing (numpy, runs once at init; pure weight preprocessing)
# --------------------------------------------------------------------------
def pack_vscnn_params(params, bands, H, W):
    """Lower conv weights to pool-friendly block-Toeplitz matmul form and
    pre-permute the classifier weights to the kernel's internal layout."""
    w1 = np.asarray(params["w1"], np.float32)     # (3,3,3,1,C1)  DHWIO
    b1 = np.asarray(params["b1"], np.float32)
    w2 = np.asarray(params["w2"], np.float32)     # (3,3,3,C1,C2) DHWIO
    b2 = np.asarray(params["b2"], np.float32)
    wfc1 = np.asarray(params["wfc1"], np.float32)  # (D2*C2, NH), rows = co*D2+do
    bfc1 = np.asarray(params["bfc1"], np.float32)
    wfc2 = np.asarray(params["wfc2"], np.float32)  # (NH, NC)
    bfc2 = np.asarray(params["bfc2"], np.float32)

    kd, kh, kw, _, c1 = w1.shape
    c2 = w2.shape[-1]
    nh = wfc1.shape[1]

    d1 = bands - kd + 1                       # conv1 output depth
    h1, w1s = H - kh + 1, W - kw + 1          # conv1 output spatial
    hp1, wp1 = h1 // 2, w1s // 2              # pool1 output spatial
    d2 = d1 - kd + 1                          # conv2 output depth
    h2, w2s = hp1 - kh + 1, wp1 - kw + 1      # conv2 output spatial
    hp2, wp2 = h2 // 2, w2s // 2              # pool2 output spatial
    assert hp2 == 1 and wp2 == 1, "VSCNN classifier expects 1x1 spatial after features"
    assert wfc1.shape[0] == d2 * c2

    s1 = hp1 * wp1 * c1
    s1p = _round_up(s1, 128)                  # pool1 group width (lane aligned)
    s2 = hp2 * wp2 * c2
    s2p = _round_up(s2, 128)                  # pool2 group width (lane aligned)

    # conv1 lowered weights: rows = input flat index h*W + w (per depth tap dd),
    # cols = (a,b)-group * s1p + ((i*wp1 + j)*c1 + c)  with  y = 2i+a, x = 2j+b.
    w1l = np.zeros((kd, H * W, 4 * s1p), np.float32)
    for dd in range(kd):
        for a in range(2):
            for b in range(2):
                g = (a * 2 + b) * s1p
                for i in range(hp1):
                    for j in range(wp1):
                        col = g + (i * wp1 + j) * c1
                        y, x = 2 * i + a, 2 * j + b
                        for hh in range(kh):
                            for ww in range(kw):
                                row = (y + hh) * W + (x + ww)
                                w1l[dd, row, col:col + c1] = w1[dd, hh, ww, 0, :]
    w1l = w1l.reshape(kd * H * W, 4 * s1p)
    grp1 = np.concatenate([np.tile(b1, hp1 * wp1),
                           np.zeros(s1p - s1, np.float32)])
    b1t = np.tile(grp1, 4)[None, :]           # (1, 4*s1p)

    # conv2 lowered weights: rows = pooled-map flat index (h*wp1 + w)*c1 + ci
    # (padded to s1p), cols = (a,b)-group * s2p + ((i*wp2 + j)*c2 + co).
    w2l = np.zeros((kd, s1p, 4 * s2p), np.float32)
    for dd in range(kd):
        for a in range(2):
            for b in range(2):
                g = (a * 2 + b) * s2p
                for i in range(hp2):
                    for j in range(wp2):
                        col = g + (i * wp2 + j) * c2
                        y, x = 2 * i + a, 2 * j + b
                        for hh in range(kh):
                            for ww in range(kw):
                                row = ((y + hh) * wp1 + (x + ww)) * c1
                                w2l[dd, row:row + c1, col:col + c2] = w2[dd, hh, ww, :, :]
    w2l = w2l.reshape(kd * s1p, 4 * s2p)
    grp2 = np.concatenate([np.tile(b2, hp2 * wp2),
                           np.zeros(s2p - s2, np.float32)])
    b2t = np.tile(grp2, 4)[None, :]           # (1, 4*s2p)

    # fc1 weights: PyTorch flatten order of the (C2, D2, 1, 1) feature block is
    # co*D2 + do; the kernel holds pooled features as (do, co) padded to s2p
    # lanes, so re-index rows to do*s2p + co (pad rows are zero).
    wfc1p = np.zeros((d2 * s2p, nh), np.float32)
    for do in range(d2):
        wfc1p[do * s2p:do * s2p + c2, :] = wfc1[np.arange(c2) * d2 + do, :]

    lowered = {
        "w1l": jnp.asarray(w1l), "b1t": jnp.asarray(b1t),
        "w2l": jnp.asarray(w2l), "b2t": jnp.asarray(b2t),
        "wfc1p": jnp.asarray(wfc1p), "bfc1": jnp.asarray(bfc1[None, :]),
        "wfc2": jnp.asarray(wfc2), "bfc2": jnp.asarray(bfc2[None, :]),
    }
    cfg = dict(kd=kd, bands=bands, H=H, W=W, d1=d1, d2=d2,
               s1p=s1p, s2p=s2p, nh=nh, nc=wfc2.shape[1])
    return lowered, cfg


# --------------------------------------------------------------------------
# Fused Pallas kernel: one grid step == one batch element
# --------------------------------------------------------------------------
def _vscnn_fused_kernel(x_ref, w1l_ref, b1t_ref, w2l_ref, b2t_ref,
                        wfc1_ref, bfc1_ref, wfc2_ref, bfc2_ref, out_ref,
                        *, kd, hw, d1, d2, s1p, s2p):
    f32 = jnp.float32
    x = x_ref[0]                                          # (bands, H*W)

    # ---- Conv3d(1, C1, 3) + bias + ReLU : kd MXU matmuls --------------------
    acc1 = jnp.dot(x[0:d1, :], w1l_ref[0:hw, :], preferred_element_type=f32)
    for dd in range(1, kd):
        acc1 = acc1 + jnp.dot(x[dd:dd + d1, :],
                              w1l_ref[dd * hw:(dd + 1) * hw, :],
                              preferred_element_type=f32)
    c1 = jnp.maximum(acc1 + b1t_ref[...], 0.0)            # (d1, 4*s1p)

    # ---- MaxPool3d((1,2,2)) #1 : max of 4 lane-aligned column groups --------
    p1 = jnp.maximum(jnp.maximum(c1[:, 0:s1p], c1[:, s1p:2 * s1p]),
                     jnp.maximum(c1[:, 2 * s1p:3 * s1p], c1[:, 3 * s1p:4 * s1p]))
    # (d1, s1p): pooled feature map, columns = (h, w, c) of the pooled plane.
    # Dropout3d(0.05): identity (inference).

    # ---- Conv3d(C1, C2, 3) + bias + ReLU ------------------------------------
    acc2 = jnp.dot(p1[0:d2, :], w2l_ref[0:s1p, :], preferred_element_type=f32)
    for dd in range(1, kd):
        acc2 = acc2 + jnp.dot(p1[dd:dd + d2, :],
                              w2l_ref[dd * s1p:(dd + 1) * s1p, :],
                              preferred_element_type=f32)
    c2 = jnp.maximum(acc2 + b2t_ref[...], 0.0)            # (d2, 4*s2p)

    # ---- MaxPool3d((1,2,2)) #2 ----------------------------------------------
    p2 = jnp.maximum(jnp.maximum(c2[:, 0:s2p], c2[:, s2p:2 * s2p]),
                     jnp.maximum(c2[:, 2 * s2p:3 * s2p], c2[:, 3 * s2p:4 * s2p]))
    # (d2, s2p): columns 0..C2-1 valid, the rest are deterministic zero padding.

    # ---- Dropout(0.05): identity; Linear((bands-4)*C2, NH) + ReLU -----------
    fc1 = bfc1_ref[...]                                   # (1, NH)
    for do in range(d2):
        fc1 = fc1 + jnp.dot(p2[do:do + 1, :],
                            wfc1_ref[do * s2p:(do + 1) * s2p, :],
                            preferred_element_type=f32)
    fc1 = jnp.maximum(fc1, 0.0)

    # ---- Linear(NH, num_classes) --------------------------------------------
    out = jnp.dot(fc1, wfc2_ref[...], preferred_element_type=f32) + bfc2_ref[...]
    out_ref[0] = out                                      # (1, num_classes)


def make_vscnn_forward(cfg):
    kd, bands, H, W = cfg["kd"], cfg["bands"], cfg["H"], cfg["W"]
    d1, d2, s1p, s2p = cfg["d1"], cfg["d2"], cfg["s1p"], cfg["s2p"]
    nh, nc = cfg["nh"], cfg["nc"]
    hw = H * W

    kernel = functools.partial(_vscnn_fused_kernel, kd=kd, hw=hw,
                               d1=d1, d2=d2, s1p=s1p, s2p=s2p)

    @jax.jit
    def forward(x_ncdhw, lw):
        B = x_ncdhw.shape[0]
        # NCDHW with Cin == 1: dropping the unit dim + flattening (H, W) is a
        # free metadata-only reshape (no relayout).
        x2 = x_ncdhw.reshape(B, bands, hw).astype(jnp.float32)
        out = pl.pallas_call(
            kernel,
            out_shape=jax.ShapeDtypeStruct((B, 1, nc), jnp.float32),
            grid_spec=pltpu.PrefetchScalarGridSpec(
                num_scalar_prefetch=0,
                grid=(B,),
                in_specs=[
                    pl.BlockSpec((1, bands, hw), lambda b: (b, 0, 0)),
                    pl.BlockSpec((kd * hw, 4 * s1p), lambda b: (0, 0)),
                    pl.BlockSpec((1, 4 * s1p), lambda b: (0, 0)),
                    pl.BlockSpec((kd * s1p, 4 * s2p), lambda b: (0, 0)),
                    pl.BlockSpec((1, 4 * s2p), lambda b: (0, 0)),
                    pl.BlockSpec((d2 * s2p, nh), lambda b: (0, 0)),
                    pl.BlockSpec((1, nh), lambda b: (0, 0)),
                    pl.BlockSpec((nh, nc), lambda b: (0, 0)),
                    pl.BlockSpec((1, nc), lambda b: (0, 0)),
                ],
                out_specs=pl.BlockSpec((1, 1, nc), lambda b: (b, 0, 0)),
            ),
            compiler_params=pltpu.CompilerParams(
                dimension_semantics=("parallel",)),
        )(x2, lw["w1l"], lw["b1t"], lw["w2l"], lw["b2t"],
          lw["wfc1p"], lw["bfc1"], lw["wfc2"], lw["bfc2"])
        return out.reshape(B, nc)

    return forward


# --------------------------------------------------------------------------
# Pure-JAX reference (original PyTorch semantics)
# --------------------------------------------------------------------------
def vscnn_reference(x_ncdhw, params):
    x = jnp.transpose(x_ncdhw, (0, 2, 3, 4, 1)).astype(jnp.float32)   # NDHWC
    dn1 = lax.conv_dimension_numbers(x.shape, params["w1"].shape,
                                     ("NDHWC", "DHWIO", "NDHWC"))
    h = lax.conv_general_dilated(x, params["w1"], (1, 1, 1), "VALID",
                                 dimension_numbers=dn1)
    h = jax.nn.relu(h + params["b1"])
    h = lax.reduce_window(h, -jnp.inf, lax.max,
                          (1, 1, 2, 2, 1), (1, 1, 2, 2, 1), "VALID")
    dn2 = lax.conv_dimension_numbers(h.shape, params["w2"].shape,
                                     ("NDHWC", "DHWIO", "NDHWC"))
    h = lax.conv_general_dilated(h, params["w2"], (1, 1, 1), "VALID",
                                 dimension_numbers=dn2)
    h = jax.nn.relu(h + params["b2"])
    h = lax.reduce_window(h, -jnp.inf, lax.max,
                          (1, 1, 2, 2, 1), (1, 1, 2, 2, 1), "VALID")
    B = h.shape[0]
    flat = jnp.transpose(h, (0, 4, 1, 2, 3)).reshape(B, -1)   # NCDHW flatten
    fc1 = jax.nn.relu(flat @ params["wfc1"] + params["bfc1"])
    return fc1 @ params["wfc2"] + params["bfc2"]


# --------------------------------------------------------------------------
if __name__ == "__main__":
    bands, num_classes = 8, 9
    B, H, W = 2, 12, 12        # spatial 12 -> after 2x(conv3 + pool2) -> 1x1

    key = jax.random.PRNGKey(0)
    ks = jax.random.split(key, 9)
    params = {
        # Conv3d(1, 20, (3,3,3)): PyTorch weight (20,1,3,3,3) stored here DHWIO.
        "w1": 0.1 * jax.random.normal(ks[0], (3, 3, 3, 1, 20), jnp.float32),
        "b1": 0.1 * jax.random.normal(ks[1], (20,), jnp.float32),
        # Conv3d(20, 40, (3,3,3)): PyTorch weight (40,20,3,3,3) stored here DHWIO.
        "w2": 0.1 * jax.random.normal(ks[2], (3, 3, 3, 20, 40), jnp.float32),
        "b2": 0.1 * jax.random.normal(ks[3], (40,), jnp.float32),
        # Linear((bands-4)*40, 80): stored as (in, out) = PyTorch weight.T
        "wfc1": 0.1 * jax.random.normal(ks[4], ((bands - 4) * 40, 80), jnp.float32),
        "bfc1": 0.1 * jax.random.normal(ks[5], (80,), jnp.float32),
        # Linear(80, num_classes)
        "wfc2": 0.1 * jax.random.normal(ks[6], (80, num_classes), jnp.float32),
        "bfc2": 0.1 * jax.random.normal(ks[7], (num_classes,), jnp.float32),
    }
    # PyTorch-style NCDHW input: (batch, 1, bands, H, W)
    x = jax.random.normal(ks[8], (B, 1, bands, H, W), jnp.float32)

    lowered, cfg = pack_vscnn_params(params, bands, H, W)
    forward = make_vscnn_forward(cfg)

    out = jax.block_until_ready(forward(x, lowered))
    ref = jax.block_until_ready(vscnn_reference(x, params))

    assert out.shape == (B, num_classes), out.shape
    assert jnp.allclose(out, ref, rtol=1e-3, atol=1e-3), "mismatch vs reference"
    print("KERNEL_OK")
</pallas_src>

<mosaic_0001>
module attributes {stable_mosaic.version = 11 : i64} {
  func.func @_vscnn_fused_kernel(%arg0: i32, %arg1: memref<1x8x144xf32, #tpu.memory_space<vmem>>, %arg2: memref<432x2048xf32, #tpu.memory_space<vmem>>, %arg3: memref<1x2048xf32, #tpu.memory_space<vmem>>, %arg4: memref<1536x512xf32, #tpu.memory_space<vmem>>, %arg5: memref<1x512xf32, #tpu.memory_space<vmem>>, %arg6: memref<512x80xf32, #tpu.memory_space<vmem>>, %arg7: memref<1x80xf32, #tpu.memory_space<vmem>>, %arg8: memref<80x9xf32, #tpu.memory_space<vmem>>, %arg9: memref<1x9xf32, #tpu.memory_space<vmem>>, %arg10: memref<1x1x9xf32, #tpu.memory_space<vmem>>) attributes {dimension_semantics = [#tpu.dimension_semantics<parallel>], iteration_bounds = array<i64: 2>, scalar_prefetch = 0 : i64, scratch_operands = 0 : i64, tpu.core_type = #tpu.core_type<tc>, window_params = [{transform_indices = @transform_0, window_bounds = array<i64: 1, 8, 144>}, {pipeline_mode = #tpu.pipeline_mode<synchronous>, transform_indices = @transform_1, window_bounds = array<i64: 432, 2048>}, {pipeline_mode = #tpu.pipeline_mode<synchronous>, transform_indices = @transform_2, window_bounds = array<i64: 1, 2048>}, {pipeline_mode = #tpu.pipeline_mode<synchronous>, transform_indices = @transform_3, window_bounds = array<i64: 1536, 512>}, {pipeline_mode = #tpu.pipeline_mode<synchronous>, transform_indices = @transform_4, window_bounds = array<i64: 1, 512>}, {pipeline_mode = #tpu.pipeline_mode<synchronous>, transform_indices = @transform_5, window_bounds = array<i64: 512, 80>}, {pipeline_mode = #tpu.pipeline_mode<synchronous>, transform_indices = @transform_6, window_bounds = array<i64: 1, 80>}, {pipeline_mode = #tpu.pipeline_mode<synchronous>, transform_indices = @transform_7, window_bounds = array<i64: 80, 9>}, {pipeline_mode = #tpu.pipeline_mode<synchronous>, transform_indices = @transform_8, window_bounds = array<i64: 1, 9>}, {transform_indices = @transform_9, window_bounds = array<i64: 1, 1, 9>}]} {
    %c0 = arith.constant 0 : index
    %c0_0 = arith.constant 0 : index
    %c0_1 = arith.constant 0 : index
    %0 = vector.load %arg1[%c0, %c0_0, %c0_1] : memref<1x8x144xf32, #tpu.memory_space<vmem>>, vector<1x8x144xf32>
    %1 = vector.shape_cast %0 : vector<1x8x144xf32> to vector<8x144xf32>
    %2 = vector.extract_strided_slice %1 {offsets = [0, 0], sizes = [6, 144], strides = [1, 1]} : vector<8x144xf32> to vector<6x144xf32>
    %c0_2 = arith.constant 0 : index
    %c0_3 = arith.constant 0 : index
    %3 = vector.load %arg2[%c0_2, %c0_3] : memref<432x2048xf32, #tpu.memory_space<vmem>>, vector<144x2048xf32>
    %cst = arith.constant dense<0.000000e+00> : vector<6x2048xf32>
    %4 = tpu.matmul %2, %3, %cst {dimension_numbers = #tpu.dot_dimension_numbers<[1], [0], [0], [1], [0, 0, 1, 1], [], []>} : vector<6x144xf32>, vector<144x2048xf32>, vector<6x2048xf32> -> vector<6x2048xf32>
    %5 = vector.extract_strided_slice %1 {offsets = [1, 0], sizes = [6, 144], strides = [1, 1]} : vector<8x144xf32> to vector<6x144xf32>
    %c144 = arith.constant 144 : index
    %c0_4 = arith.constant 0 : index
    %6 = vector.load %arg2[%c144, %c0_4] : memref<432x2048xf32, #tpu.memory_space<vmem>>, vector<144x2048xf32>
    %cst_5 = arith.constant dense<0.000000e+00> : vector<6x2048xf32>
    %7 = tpu.matmul %5, %6, %cst_5 {dimension_numbers = #tpu.dot_dimension_numbers<[1], [0], [0], [1], [0, 0, 1, 1], [], []>} : vector<6x144xf32>, vector<144x2048xf32>, vector<6x2048xf32> -> vector<6x2048xf32>
    %8 = arith.addf %4, %7 : vector<6x2048xf32>
    %9 = vector.extract_strided_slice %1 {offsets = [2, 0], sizes = [6, 144], strides = [1, 1]} : vector<8x144xf32> to vector<6x144xf32>
    %c288 = arith.constant 288 : index
    %c0_6 = arith.constant 0 : index
    %10 = vector.load %arg2[%c288, %c0_6] : memref<432x2048xf32, #tpu.memory_space<vmem>>, vector<144x2048xf32>
    %cst_7 = arith.constant dense<0.000000e+00> : vector<6x2048xf32>
    %11 = tpu.matmul %9, %10, %cst_7 {dimension_numbers = #tpu.dot_dimension_numbers<[1], [0], [0], [1], [0, 0, 1, 1], [], []>} : vector<6x144xf32>, vector<144x2048xf32>, vector<6x2048xf32> -> vector<6x2048xf32>
    %12 = arith.addf %8, %11 : vector<6x2048xf32>
    %c0_8 = arith.constant 0 : index
    %c0_9 = arith.constant 0 : index
    %13 = vector.load %arg3[%c0_8, %c0_9] : memref<1x2048xf32, #tpu.memory_space<vmem>>, vector<1x2048xf32>
    %14 = vector.broadcast %13 : vector<1x2048xf32> to vector<6x2048xf32>
    %15 = arith.addf %12, %14 : vector<6x2048xf32>
    %cst_10 = arith.constant 0.000000e+00 : f32
    %16 = vector.broadcast %cst_10 : f32 to vector<6x2048xf32>
    %17 = arith.maximumf %15, %16 : vector<6x2048xf32>
    %18 = vector.extract_strided_slice %17 {offsets = [0, 0], sizes = [6, 512], strides = [1, 1]} : vector<6x2048xf32> to vector<6x512xf32>
    %19 = vector.extract_strided_slice %17 {offsets = [0, 512], sizes = [6, 512], strides = [1, 1]} : vector<6x2048xf32> to vector<6x512xf32>
    %20 = arith.maximumf %18, %19 : vector<6x512xf32>
    %21 = vector.extract_strided_slice %17 {offsets = [0, 1024], sizes = [6, 512], strides = [1, 1]} : vector<6x2048xf32> to vector<6x512xf32>
    %22 = vector.extract_strided_slice %17 {offsets = [0, 1536], sizes = [6, 512], strides = [1, 1]} : vector<6x2048xf32> to vector<6x512xf32>
    %23 = arith.maximumf %21, %22 : vector<6x512xf32>
    %24 = arith.maximumf %20, %23 : vector<6x512xf32>
    %25 = vector.extract_strided_slice %24 {offsets = [0, 0], sizes = [4, 512], strides = [1, 1]} : vector<6x512xf32> to vector<4x512xf32>
    %c0_11 = arith.constant 0 : index
    %c0_12 = arith.constant 0 : index
    %26 = vector.load %arg4[%c0_11, %c0_12] : memref<1536x512xf32, #tpu.memory_space<vmem>>, vector<512x512xf32>
    %cst_13 = arith.constant dense<0.000000e+00> : vector<4x512xf32>
    %27 = tpu.matmul %25, %26, %cst_13 {dimension_numbers = #tpu.dot_dimension_numbers<[1], [0], [0], [1], [0, 0, 1, 1], [], []>} : vector<4x512xf32>, vector<512x512xf32>, vector<4x512xf32> -> vector<4x512xf32>
    %28 = vector.extract_strided_slice %24 {offsets = [1, 0], sizes = [4, 512], strides = [1, 1]} : vector<6x512xf32> to vector<4x512xf32>
    %c512 = arith.constant 512 : index
    %c0_14 = arith.constant 0 : index
    %29 = vector.load %arg4[%c512, %c0_14] : memref<1536x512xf32, #tpu.memory_space<vmem>>, vector<512x512xf32>
    %cst_15 = arith.constant dense<0.000000e+00> : vector<4x512xf32>
    %30 = tpu.matmul %28, %29, %cst_15 {dimension_numbers = #tpu.dot_dimension_numbers<[1], [0], [0], [1], [0, 0, 1, 1], [], []>} : vector<4x512xf32>, vector<512x512xf32>, vector<4x512xf32> -> vector<4x512xf32>
    %31 = arith.addf %27, %30 : vector<4x512xf32>
    %32 = vector.extract_strided_slice %24 {offsets = [2, 0], sizes = [4, 512], strides = [1, 1]} : vector<6x512xf32> to vector<4x512xf32>
    %c1024 = arith.constant 1024 : index
    %c0_16 = arith.constant 0 : index
    %33 = vector.load %arg4[%c1024, %c0_16] : memref<1536x512xf32, #tpu.memory_space<vmem>>, vector<512x512xf32>
    %cst_17 = arith.constant dense<0.000000e+00> : vector<4x512xf32>
    %34 = tpu.matmul %32, %33, %cst_17 {dimension_numbers = #tpu.dot_dimension_numbers<[1], [0], [0], [1], [0, 0, 1, 1], [], []>} : vector<4x512xf32>, vector<512x512xf32>, vector<4x512xf32> -> vector<4x512xf32>
    %35 = arith.addf %31, %34 : vector<4x512xf32>
    %c0_18 = arith.constant 0 : index
    %c0_19 = arith.constant 0 : index
    %36 = vector.load %arg5[%c0_18, %c0_19] : memref<1x512xf32, #tpu.memory_space<vmem>>, vector<1x512xf32>
    %37 = vector.broadcast %36 : vector<1x512xf32> to vector<4x512xf32>
    %38 = arith.addf %35, %37 : vector<4x512xf32>
    %cst_20 = arith.constant 0.000000e+00 : f32
    %39 = vector.broadcast %cst_20 : f32 to vector<4x512xf32>
    %40 = arith.maximumf %38, %39 : vector<4x512xf32>
    %41 = vector.extract_strided_slice %40 {offsets = [0, 0], sizes = [4, 128], strides = [1, 1]} : vector<4x512xf32> to vector<4x128xf32>
    %42 = vector.extract_strided_slice %40 {offsets = [0, 128], sizes = [4, 128], strides = [1, 1]} : vector<4x512xf32> to vector<4x128xf32>
    %43 = arith.maximumf %41, %42 : vector<4x128xf32>
    %44 = vector.extract_strided_slice %40 {offsets = [0, 256], sizes = [4, 128], strides = [1, 1]} : vector<4x512xf32> to vector<4x128xf32>
    %45 = vector.extract_strided_slice %40 {offsets = [0, 384], sizes = [4, 128], strides = [1, 1]} : vector<4x512xf32> to vector<4x128xf32>
    %46 = arith.maximumf %44, %45 : vector<4x128xf32>
    %47 = arith.maximumf %43, %46 : vector<4x128xf32>
    %c0_21 = arith.constant 0 : index
    %c0_22 = arith.constant 0 : index
    %48 = vector.load %arg7[%c0_21, %c0_22] : memref<1x80xf32, #tpu.memory_space<vmem>>, vector<1x80xf32>
    %49 = vector.extract_strided_slice %47 {offsets = [0, 0], sizes = [1, 128], strides = [1, 1]} : vector<4x128xf32> to vector<1x128xf32>
    %c0_23 = arith.constant 0 : index
    %c0_24 = arith.constant 0 : index
    %50 = vector.load %arg6[%c0_23, %c0_24] : memref<512x80xf32, #tpu.memory_space<vmem>>, vector<128x80xf32>
    %cst_25 = arith.constant dense<0.000000e+00> : vector<1x80xf32>
    %51 = tpu.matmul %49, %50, %cst_25 {dimension_numbers = #tpu.dot_dimension_numbers<[1], [0], [0], [1], [0, 0, 1, 1], [], []>} : vector<1x128xf32>, vector<128x80xf32>, vector<1x80xf32> -> vector<1x80xf32>
    %52 = arith.addf %48, %51 : vector<1x80xf32>
    %53 = vector.extract_strided_slice %47 {offsets = [1, 0], sizes = [1, 128], strides = [1, 1]} : vector<4x128xf32> to vector<1x128xf32>
    %c128 = arith.constant 128 : index
    %c0_26 = arith.constant 0 : index
    %54 = vector.load %arg6[%c128, %c0_26] : memref<512x80xf32, #tpu.memory_space<vmem>>, vector<128x80xf32>
    %cst_27 = arith.constant dense<0.000000e+00> : vector<1x80xf32>
    %55 = tpu.matmul %53, %54, %cst_27 {dimension_numbers = #tpu.dot_dimension_numbers<[1], [0], [0], [1], [0, 0, 1, 1], [], []>} : vector<1x128xf32>, vector<128x80xf32>, vector<1x80xf32> -> vector<1x80xf32>
    %56 = arith.addf %52, %55 : vector<1x80xf32>
    %57 = vector.extract_strided_slice %47 {offsets = [2, 0], sizes = [1, 128], strides = [1, 1]} : vector<4x128xf32> to vector<1x128xf32>
    %c256 = arith.constant 256 : index
    %c0_28 = arith.constant 0 : index
    %58 = vector.load %arg6[%c256, %c0_28] : memref<512x80xf32, #tpu.memory_space<vmem>>, vector<128x80xf32>
    %cst_29 = arith.constant dense<0.000000e+00> : vector<1x80xf32>
    %59 = tpu.matmul %57, %58, %cst_29 {dimension_numbers = #tpu.dot_dimension_numbers<[1], [0], [0], [1], [0, 0, 1, 1], [], []>} : vector<1x128xf32>, vector<128x80xf32>, vector<1x80xf32> -> vector<1x80xf32>
    %60 = arith.addf %56, %59 : vector<1x80xf32>
    %61 = vector.extract_strided_slice %47 {offsets = [3, 0], sizes = [1, 128], strides = [1, 1]} : vector<4x128xf32> to vector<1x128xf32>
    %c384 = arith.constant 384 : index
    %c0_30 = arith.constant 0 : index
    %62 = vector.load %arg6[%c384, %c0_30] : memref<512x80xf32, #tpu.memory_space<vmem>>, vector<128x80xf32>
    %cst_31 = arith.constant dense<0.000000e+00> : vector<1x80xf32>
    %63 = tpu.matmul %61, %62, %cst_31 {dimension_numbers = #tpu.dot_dimension_numbers<[1], [0], [0], [1], [0, 0, 1, 1], [], []>} : vector<1x128xf32>, vector<128x80xf32>, vector<1x80xf32> -> vector<1x80xf32>
    %64 = arith.addf %60, %63 : vector<1x80xf32>
    %cst_32 = arith.constant 0.000000e+00 : f32
    %65 = vector.broadcast %cst_32 : f32 to vector<1x80xf32>
    %66 = arith.maximumf %64, %65 : vector<1x80xf32>
    %c0_33 = arith.constant 0 : index
    %c0_34 = arith.constant 0 : index
    %67 = vector.load %arg8[%c0_33, %c0_34] : memref<80x9xf32, #tpu.memory_space<vmem>>, vector<80x9xf32>
    %cst_35 = arith.constant dense<0.000000e+00> : vector<1x9xf32>
    %68 = tpu.matmul %66, %67, %cst_35 {dimension_numbers = #tpu.dot_dimension_numbers<[1], [0], [0], [1], [0, 0, 1, 1], [], []>} : vector<1x80xf32>, vector<80x9xf32>, vector<1x9xf32> -> vector<1x9xf32>
    %c0_36 = arith.constant 0 : index
    %c0_37 = arith.constant 0 : index
    %69 = vector.load %arg9[%c0_36, %c0_37] : memref<1x9xf32, #tpu.memory_space<vmem>>, vector<1x9xf32>
    %70 = arith.addf %68, %69 : vector<1x9xf32>
    %c0_38 = arith.constant 0 : index
    %c0_39 = arith.constant 0 : index
    %c0_40 = arith.constant 0 : index
    %71 = vector.load %arg10[%c0_38, %c0_39, %c0_40] : memref<1x1x9xf32, #tpu.memory_space<vmem>>, vector<1x1x9xf32>
    %72 = vector.shape_cast %71 : vector<1x1x9xf32> to vector<1x9xf32>
    %73 = vector.shape_cast %70 : vector<1x9xf32> to vector<1x1x9xf32>
    tpu.vector_store %arg10[%c0_38, %c0_39, %c0_40], %73 {strides = array<i32>} : memref<1x1x9xf32, #tpu.memory_space<vmem>>, vector<1x1x9xf32>,
    return
  }
  func.func @transform_0(%arg0: i32) -> (i32, i32, i32) {
    %c0_i32 = arith.constant 0 : i32
    %c0_i32_0 = arith.constant 0 : i32
    %c0_i32_1 = arith.constant 0 : i32
    return %arg0, %c0_i32, %c0_i32_0 : i32, i32, i32
  }
  func.func @transform_1(%arg0: i32) -> (i32, i32) {
    %c0_i32 = arith.constant 0 : i32
    %c0_i32_0 = arith.constant 0 : i32
    %c0_i32_1 = arith.constant 0 : i32
    return %c0_i32, %c0_i32_0 : i32, i32
  }
  func.func @transform_2(%arg0: i32) -> (i32, i32) {
    %c0_i32 = arith.constant 0 : i32
    %c0_i32_0 = arith.constant 0 : i32
    %c0_i32_1 = arith.constant 0 : i32
    return %c0_i32, %c0_i32_0 : i32, i32
  }
  func.func @transform_3(%arg0: i32) -> (i32, i32) {
    %c0_i32 = arith.constant 0 : i32
    %c0_i32_0 = arith.constant 0 : i32
    %c0_i32_1 = arith.constant 0 : i32
    return %c0_i32, %c0_i32_0 : i32, i32
  }
  func.func @transform_4(%arg0: i32) -> (i32, i32) {
    %c0_i32 = arith.constant 0 : i32
    %c0_i32_0 = arith.constant 0 : i32
    %c0_i32_1 = arith.constant 0 : i32
    return %c0_i32, %c0_i32_0 : i32, i32
  }
  func.func @transform_5(%arg0: i32) -> (i32, i32) {
    %c0_i32 = arith.constant 0 : i32
    %c0_i32_0 = arith.constant 0 : i32
    %c0_i32_1 = arith.constant 0 : i32
    return %c0_i32, %c0_i32_0 : i32, i32
  }
  func.func @transform_6(%arg0: i32) -> (i32, i32) {
    %c0_i32 = arith.constant 0 : i32
    %c0_i32_0 = arith.constant 0 : i32
    %c0_i32_1 = arith.constant 0 : i32
    return %c0_i32, %c0_i32_0 : i32, i32
  }
  func.func @transform_7(%arg0: i32) -> (i32, i32) {
    %c0_i32 = arith.constant 0 : i32
    %c0_i32_0 = arith.constant 0 : i32
    %c0_i32_1 = arith.constant 0 : i32
    return %c0_i32, %c0_i32_0 : i32, i32
  }
  func.func @transform_8(%arg0: i32) -> (i32, i32) {
    %c0_i32 = arith.constant 0 : i32
    %c0_i32_0 = arith.constant 0 : i32
    %c0_i32_1 = arith.constant 0 : i32
    return %c0_i32, %c0_i32_0 : i32, i32
  }
  func.func @transform_9(%arg0: i32) -> (i32, i32, i32) {
    %c0_i32 = arith.constant 0 : i32
    %c0_i32_0 = arith.constant 0 : i32
    %c0_i32_1 = arith.constant 0 : i32
    return %arg0, %c0_i32, %c0_i32_0 : i32, i32, i32
  }
}

</mosaic_0001>

<llo_original>
// kernel: forward.1
$region0: #{forward.1}
  #allocation0 [shape = 'u32[]', space=smem, size = 0x4, offset = 0x4, fixed_abs, tag = 'smem constant byte address 0x4 - core index']
  #allocation1 [shape = 'u32[144,128]{1,0:T(1,128)}', space=vmem, size = 0x12000, scoped, tag = 'internal scratch']
  %s0 = inlined_call_operand.vmem [shape: f32[2,8,144], index: 0, kind: input, shape index: {}]
  %s1 = inlined_call_operand.hbm [shape: f32[432,2048], index: 1, kind: input, shape index: {}]
  %s2 = inlined_call_operand.hbm [shape: f32[1,2048], index: 2, kind: input, shape index: {}]
  %s3 = inlined_call_operand.hbm [shape: f32[1536,512], index: 3, kind: input, shape index: {}]
  %s4 = inlined_call_operand.hbm [shape: f32[1,512], index: 4, kind: input, shape index: {}]
  %s5 = inlined_call_operand.vmem [shape: f32[512,80], index: 5, kind: input, shape index: {}]
  %s6 = inlined_call_operand.hbm [shape: f32[1,80], index: 6, kind: input, shape index: {}]
  %s7 = inlined_call_operand.vmem [shape: f32[80,9], index: 7, kind: input, shape index: {}]
  %s8 = inlined_call_operand.hbm [shape: f32[1,9], index: 8, kind: input, shape index: {}]
  %s9 = inlined_call_operand.hbm [shape: f32[2,1,9], index: 9, kind: output, shape index: {}]
  %s10 = sld [smem:[#allocation0]]
  $region93: #{forward.1} parent=0
    _
  %s12 = ssub.s32 1, %s10
  %s13 = scalar_select 0, %s12, %s10
  $region1: #{forward.1} parent=0
    #allocation2 [shape = 'u8[3538944]{0}', space=vmem, size = 0x360000, scoped, tag = 'input window, operand 1, single buffered']
    #allocation3 [shape = 's32[2]{0}', space=sflag, size = 0x8, scoped, tag = 'scoped memory for forward.1']
    #allocation4 [shape = 's32[2]{0}', space=sflag, size = 0x8, scoped, tag = 'scoped memory for forward.1']
    #allocation5 [shape = 'u8[8192]{0}', space=vmem, size = 0x2000, scoped, tag = 'input window, operand 2, single buffered']
    #allocation6 [shape = 's32[1]{0}', space=sflag, size = 0x4, scoped, tag = 'scoped memory for forward.1']
    #allocation7 [shape = 'u8[3145728]{0}', space=vmem, size = 0x300000, scoped, tag = 'input window, operand 3, single buffered']
    #allocation8 [shape = 'u8[2048]{0}', space=vmem, size = 0x800, scoped, tag = 'input window, operand 4, single buffered']
    #allocation9 [shape = 's32[1]{0}', space=sflag, size = 0x4, scoped, tag = 'scoped memory for forward.1']
    #allocation10 [shape = 'u8[512]{0}', space=vmem, size = 0x400, scoped, tag = 'input window, operand 6, single buffered']
    #allocation11 [shape = 'u8[512]{0}', space=vmem, size = 0x400, scoped, tag = 'input window, operand 8, single buffered']
    #allocation12 [shape = 's32[1]{0}', space=sflag, size = 0x4, scoped, tag = 'scoped memory for forward.1']
    #allocation13 [shape = 'u8[1024]{0}', space=vmem, size = 0x400, scoped, tag = 'output window, operand 0']
    %14 = vsyncpa [#allocation3], 0
    %15 = vsyncpa [#allocation6], 0
    %16 = vsyncpa [#allocation9], 0
    %17 = vsyncpa [#allocation12], 0
    %18 = vsyncpa [#allocation4], 0
    %s19 = scalar_lea.sflag [#allocation4], 1
    %20 = vsyncpa %s19, 0
    loop: start=0, step=1, limit=4
    $region2: #{forward.1} parent=1 // loop_pre_header
      _
    $region3: #{forward.1} parent=1 // loop_header
      %s22 = sphi 0, %s26
      %p23 = scmp.ge.s32.totalorder %s22, 4
      %s32 = sphi 0, %s34
      %s35 = sphi 0, %s32
      %s36 = sphi 0, %s35
      %s52 = sphi 0, %s36
      %s56 = sphi 0, %s56
      %s58 = sphi 0, %s56
      %s59 = sphi 0, %s58
      %s73 = sphi 0, %s59
      %s77 = sphi 0, %s77
      %s79 = sphi 0, %s77
      %s80 = sphi 0, %s79
      %s94 = sphi 0, %s80
      %s98 = sphi 0, %s98
      %s100 = sphi 0, %s98
      %s101 = sphi 0, %s100
      %s115 = sphi 0, %s101
      %s119 = sphi 0, %s119
      %s121 = sphi 0, %s119
      %s122 = sphi 0, %s121
      %s136 = sphi 0, %s122
      %s140 = sphi 0, %s140
      %s142 = sphi 0, %s140
      %s143 = sphi 0, %s142
      %s157 = sphi 0, %s143
      %s161 = sphi 0, %s161
      %s163 = sphi 0, %s161
      %s164 = sphi 0, %s163
      %s178 = sphi 0, %s164
      %s182 = sphi 0, %s182
      %s184 = sphi 0, %s182
      %s185 = sphi 0, %s184
      %s199 = sphi 0, %s185
      %s203 = sphi 0, %s203
      %s205 = sphi 0, %s203
      %s206 = sphi 0, %s205
      %s220 = sphi 0, %s206
      %s226 = sphi 0, %s228
      %s229 = sphi 0, %s226
      %s230 = sphi 0, %s229
      %s246 = sphi 0, %s230
    $region4: #{forward.1} parent=1 // loop_header_branch
      %25 = sbr.rel (%p23) target = $region8
    $region5: #{forward.1} parent=1 // loop_body
      %s27 = ssub.s32 %s22, 1
      %s28 = ssub.s32 %s22, 2
      %s29 = sadd.s32 %s22, 1
      %s30 = ssub.s32 %s22, %s29
      %p31 = scmp.eq.s32.totalorder %s30, 0
      %s33 = sadd.s32 %s32, 1
      %s34 = scalar_select %p31, %s32, %s33
      %p37 = pneg %p31
      %p38 = scmp.eq.s32.totalorder %s22, 1
      %p39 = por %p37, %p38
      %p40 = scmp.ne.s32.totalorder %s32, %s35
      %p41 = scmp.eq.s32.totalorder %s22, 0
      %p42 = por %p40, %p41
      %p43 = scmp.ne.s32.totalorder %s32, %s35
      %p44 = scmp.eq.s32.totalorder %s27, 1
      %p45 = por %p43, %p44
      %p46 = scmp.ne.s32.totalorder %s35, %s36
      %p47 = scmp.eq.s32.totalorder %s27, 0
      %p48 = por %p46, %p47
      %p49 = scmp.ne.s32.totalorder %s35, %s36
      %p50 = scmp.eq.s32.totalorder %s28, 1
      %p51 = por %p49, %p50
      %p53 = scmp.ne.s32.totalorder %s36, %s52
      %p54 = scmp.eq.s32.totalorder %s28, 0
      %p55 = por %p53, %p54
      %s57 = sadd.s32 %s56, 1
      %p60 = scmp.eq.s32.totalorder %s22, 1
      %p61 = scmp.ne.s32.totalorder %s56, %s58
      %p62 = scmp.eq.s32.totalorder %s22, 0
      %p63 = por %p61, %p62
      %p64 = scmp.ne.s32.totalorder %s56, %s58
      %p65 = scmp.eq.s32.totalorder %s27, 1
      %p66 = por %p64, %p65
      %p67 = scmp.ne.s32.totalorder %s58, %s59
      %p68 = scmp.eq.s32.totalorder %s27, 0
      %p69 = por %p67, %p68
      %p70 = scmp.ne.s32.totalorder %s58, %s59
      %p71 = scmp.eq.s32.totalorder %s28, 1
      %p72 = por %p70, %p71
      %p74 = scmp.ne.s32.totalorder %s59, %s73
      %p75 = scmp.eq.s32.totalorder %s28, 0
      %p76 = por %p74, %p75
      %s78 = sadd.s32 %s77, 1
      %p81 = scmp.eq.s32.totalorder %s22, 1
      %p82 = scmp.ne.s32.totalorder %s77, %s79
      %p83 = scmp.eq.s32.totalorder %s22, 0
      %p84 = por %p82, %p83
      %p85 = scmp.ne.s32.totalorder %s77, %s79
      %p86 = scmp.eq.s32.totalorder %s27, 1
      %p87 = por %p85, %p86
      %p88 = scmp.ne.s32.totalorder %s79, %s80
      %p89 = scmp.eq.s32.totalorder %s27, 0
      %p90 = por %p88, %p89
      %p91 = scmp.ne.s32.totalorder %s79, %s80
      %p92 = scmp.eq.s32.totalorder %s28, 1
      %p93 = por %p91, %p92
      %p95 = scmp.ne.s32.totalorder %s80, %s94
      %p96 = scmp.eq.s32.totalorder %s28, 0
      %p97 = por %p95, %p96
      %s99 = sadd.s32 %s98, 1
      %p102 = scmp.eq.s32.totalorder %s22, 1
      %p103 = scmp.ne.s32.totalorder %s98, %s100
      %p104 = scmp.eq.s32.totalorder %s22, 0
      %p105 = por %p103, %p104
      %p106 = scmp.ne.s32.totalorder %s98, %s100
      %p107 = scmp.eq.s32.totalorder %s27, 1
      %p108 = por %p106, %p107
      %p109 = scmp.ne.s32.totalorder %s100, %s101
      %p110 = scmp.eq.s32.totalorder %s27, 0
      %p111 = por %p109, %p110
      %p112 = scmp.ne.s32.totalorder %s100, %s101
      %p113 = scmp.eq.s32.totalorder %s28, 1
      %p114 = por %p112, %p113
      %p116 = scmp.ne.s32.totalorder %s101, %s115
      %p117 = scmp.eq.s32.totalorder %s28, 0
      %p118 = por %p116, %p117
      %s120 = sadd.s32 %s119, 1
      %p123 = scmp.eq.s32.totalorder %s22, 1
      %p124 = scmp.ne.s32.totalorder %s119, %s121
      %p125 = scmp.eq.s32.totalorder %s22, 0
      %p126 = por %p124, %p125
      %p127 = scmp.ne.s32.totalorder %s119, %s121
      %p128 = scmp.eq.s32.totalorder %s27, 1
      %p129 = por %p127, %p128
      %p130 = scmp.ne.s32.totalorder %s121, %s122
      %p131 = scmp.eq.s32.totalorder %s27, 0
      %p132 = por %p130, %p131
      %p133 = scmp.ne.s32.totalorder %s121, %s122
      %p134 = scmp.eq.s32.totalorder %s28, 1
      %p135 = por %p133, %p134
      %p137 = scmp.ne.s32.totalorder %s122, %s136
      %p138 = scmp.eq.s32.totalorder %s28, 0
      %p139 = por %p137, %p138
      %s141 = sadd.s32 %s140, 1
      %p144 = scmp.eq.s32.totalorder %s22, 1
      %p145 = scmp.ne.s32.totalorder %s140, %s142
      %p146 = scmp.eq.s32.totalorder %s22, 0
      %p147 = por %p145, %p146
      %p148 = scmp.ne.s32.totalorder %s140, %s142
      %p149 = scmp.eq.s32.totalorder %s27, 1
      %p150 = por %p148, %p149
      %p151 = scmp.ne.s32.totalorder %s142, %s143
      %p152 = scmp.eq.s32.totalorder %s27, 0
      %p153 = por %p151, %p152
      %p154 = scmp.ne.s32.totalorder %s142, %s143
      %p155 = scmp.eq.s32.totalorder %s28, 1
      %p156 = por %p154, %p155
      %p158 = scmp.ne.s32.totalorder %s143, %s157
      %p159 = scmp.eq.s32.totalorder %s28, 0
      %p160 = por %p158, %p159
      %s162 = sadd.s32 %s161, 1
      %p165 = scmp.eq.s32.totalorder %s22, 1
      %p166 = scmp.ne.s32.totalorder %s161, %s163
      %p167 = scmp.eq.s32.totalorder %s22, 0
      %p168 = por %p166, %p167
      %p169 = scmp.ne.s32.totalorder %s161, %s163
      %p170 = scmp.eq.s32.totalorder %s27, 1
      %p171 = por %p169, %p170
      %p172 = scmp.ne.s32.totalorder %s163, %s164
      %p173 = scmp.eq.s32.totalorder %s27, 0
      %p174 = por %p172, %p173
      %p175 = scmp.ne.s32.totalorder %s163, %s164
      %p176 = scmp.eq.s32.totalorder %s28, 1
      %p177 = por %p175, %p176
      %p179 = scmp.ne.s32.totalorder %s164, %s178
      %p180 = scmp.eq.s32.totalorder %s28, 0
      %p181 = por %p179, %p180
      %s183 = sadd.s32 %s182, 1
      %p186 = scmp.eq.s32.totalorder %s22, 1
      %p187 = scmp.ne.s32.totalorder %s182, %s184
      %p188 = scmp.eq.s32.totalorder %s22, 0
      %p189 = por %p187, %p188
      %p190 = scmp.ne.s32.totalorder %s182, %s184
      %p191 = scmp.eq.s32.totalorder %s27, 1
      %p192 = por %p190, %p191
      %p193 = scmp.ne.s32.totalorder %s184, %s185
      %p194 = scmp.eq.s32.totalorder %s27, 0
      %p195 = por %p193, %p194
      %p196 = scmp.ne.s32.totalorder %s184, %s185
      %p197 = scmp.eq.s32.totalorder %s28, 1
      %p198 = por %p196, %p197
      %p200 = scmp.ne.s32.totalorder %s185, %s199
      %p201 = scmp.eq.s32.totalorder %s28, 0
      %p202 = por %p200, %p201
      %s204 = sadd.s32 %s203, 1
      %p207 = scmp.eq.s32.totalorder %s22, 1
      %p208 = scmp.ne.s32.totalorder %s203, %s205
      %p209 = scmp.eq.s32.totalorder %s22, 0
      %p210 = por %p208, %p209
      %p211 = scmp.ne.s32.totalorder %s203, %s205
      %p212 = scmp.eq.s32.totalorder %s27, 1
      %p213 = por %p211, %p212
      %p214 = scmp.ne.s32.totalorder %s205, %s206
      %p215 = scmp.eq.s32.totalorder %s27, 0
      %p216 = por %p214, %p215
      %p217 = scmp.ne.s32.totalorder %s205, %s206
      %p218 = scmp.eq.s32.totalorder %s28, 1
      %p219 = por %p217, %p218
      %p221 = scmp.ne.s32.totalorder %s206, %s220
      %p222 = scmp.eq.s32.totalorder %s28, 0
      %p223 = por %p221, %p222
      %s224 = ssub.s32 %s22, %s29
      %p225 = scmp.eq.s32.totalorder %s224, 0
      %s227 = sadd.s32 %s226, 1
      %s228 = scalar_select %p225, %s226, %s227
      %p231 = pneg %p225
      %p232 = scmp.eq.s32.totalorder %s22, 1
      %p233 = por %p231, %p232
      %p234 = scmp.ne.s32.totalorder %s226, %s229
      %p235 = scmp.eq.s32.totalorder %s22, 0
      %p236 = por %p234, %p235
      %p237 = scmp.ne.s32.totalorder %s226, %s229
      %p238 = scmp.eq.s32.totalorder %s27, 1
      %p239 = por %p237, %p238
      %p240 = scmp.ne.s32.totalorder %s229, %s230
      %p241 = scmp.eq.s32.totalorder %s27, 0
      %p242 = por %p240, %p241
      %p243 = scmp.ne.s32.totalorder %s229, %s230
      %p244 = scmp.eq.s32.totalorder %s28, 1
      %p245 = por %p243, %p244
      %p247 = scmp.ne.s32.totalorder %s230, %s246
      %p248 = scmp.eq.s32.totalorder %s28, 0
      %p249 = por %p247, %p248
      %p250 = scmp.le.s32.totalorder 1, %s22
      %p251 = scmp.lt.s32.totalorder %s22, 3
      %p252 = pnand %p250, %p251
      %p253 = pneg %p252
      // Predicated region
      $region9: #{forward.1} parent=5 // pred_check
        _
      $region10: #{forward.1} parent=5 // pred_check_branch
        %255 = sbr.rel (%p252) target = $region12
      $region11: #{forward.1} parent=5 // pred_region
        %s256 = ssub.s32 %s22, 1
        // Predicated region
        $region13: #{forward.1} parent=11 // pred_check
          %p257 = pneg %p69
        $region14: #{forward.1} parent=11 // pred_check_branch
          %259 = sbr.rel (%p257) target = $region16
        $region15: #{forward.1} parent=11 // pred_region
          %s261 = ssub.s32 110592, 110592
          %262 = vsyncadd [#allocation3], %s261
          %s263 = sshll.u32 [#allocation2], 4
          %s264 = int_to_ptr.vmem [resolvable:$true] %s263
          %269 = dma.hbm_to_vmem [thread:$0]  %s1, 110592, %s264, [#allocation3], 2048, 2048, 128
        $region16: #{forward.1} parent=11 // pred_fallthru
          _
        // Predicated region
        $region17: #{forward.1} parent=11 // pred_check
          %p270 = pneg %p90
        $region18: #{forward.1} parent=11 // pred_check_branch
          %272 = sbr.rel (%p270) target = $region20
        $region19: #{forward.1} parent=11 // pred_region
          %s274 = ssub.s32 256, 256
          %275 = vsyncadd [#allocation6], %s274
          %s277 = sshll.u32 [#allocation5], 4
          %s278 = int_to_ptr.vmem [resolvable:$true] %s277
          %280 = dma.hbm_to_vmem [thread:$0]  %s2, 256, %s278, [#allocation6]
        $region20: #{forward.1} parent=11 // pred_fallthru
          _
        // Predicated region
        $region21: #{forward.1} parent=11 // pred_check
          %p281 = pneg %p111
        $region22: #{forward.1} parent=11 // pred_check_branch
          %283 = sbr.rel (%p281) target = $region24
        $region23: #{forward.1} parent=11 // pred_region
          %s285 = ssub.s32 98304, 98304
          %286 = vsyncadd [#allocation6], %s285
          %s287 = sshll.u32 [#allocation7], 4
          %s288 = int_to_ptr.vmem [resolvable:$true] %s287
          %293 = dma.hbm_to_vmem [thread:$0]  %s3, 98304, %s288, [#allocation6], 512, 512, 32
        $region24: #{forward.1} parent=11 // pred_fallthru
          _
        // Predicated region
        $region25: #{forward.1} parent=11 // pred_check
          %p294 = pneg %p132
        $region26: #{forward.1} parent=11 // pred_check_branch
          %296 = sbr.rel (%p294) target = $region28
        $region27: #{forward.1} parent=11 // pred_region
          %s298 = ssub.s32 64, 64
          %299 = vsyncadd [#allocation9], %s298
          %s301 = sshll.u32 [#allocation8], 4
          %s302 = int_to_ptr.vmem [resolvable:$true] %s301
          %304 = dma.hbm_to_vmem [thread:$0]  %s4, 64, %s302, [#allocation9]
        $region28: #{forward.1} parent=11 // pred_fallthru
          _
        // Predicated region
        $region29: #{forward.1} parent=11 // pred_check
          %p305 = pneg %p153
        $region30: #{forward.1} parent=11 // pred_check_branch
          %307 = sbr.rel (%p305) target = $region32
        $region31: #{forward.1} parent=11 // pred_region
          _
        $region32: #{forward.1} parent=11 // pred_fallthru
          _
        // Predicated region
        $region33: #{forward.1} parent=11 // pred_check
          %p308 = pneg %p174
        $region34: #{forward.1} parent=11 // pred_check_branch
          %310 = sbr.rel (%p308) target = $region36
        $region35: #{forward.1} parent=11 // pred_region
          %s312 = ssub.s32 16, 16
          %313 = vsyncadd [#allocation9], %s312
          %s315 = sshll.u32 [#allocation10], 4
          %s316 = int_to_ptr.vmem [resolvable:$true] %s315
          %318 = dma.hbm_to_vmem [thread:$0]  %s6, 16, %s316, [#allocation9]
        $region36: #{forward.1} parent=11 // pred_fallthru
          _
        // Predicated region
        $region37: #{forward.1} parent=11 // pred_check
          %p319 = pneg %p195
        $region38: #{forward.1} parent=11 // pred_check_branch
          %321 = sbr.rel (%p319) target = $region40
        $region39: #{forward.1} parent=11 // pred_region
          _
        $region40: #{forward.1} parent=11 // pred_fallthru
          _
        // Predicated region
        $region41: #{forward.1} parent=11 // pred_check
          %p322 = pneg %p216
        $region42: #{forward.1} parent=11 // pred_check_branch
          %324 = sbr.rel (%p322) target = $region44
        $region43: #{forward.1} parent=11 // pred_region
          %s326 = ssub.s32 16, 16
          %327 = vsyncadd [#allocation12], %s326
          %s329 = sshll.u32 [#allocation11], 4
          %s330 = int_to_ptr.vmem [resolvable:$true] %s329
          %332 = dma.hbm_to_vmem [thread:$0]  %s8, 16, %s330, [#allocation12]
        $region44: #{forward.1} parent=11 // pred_fallthru
          _
      $region12: #{forward.1} parent=5 // pred_fallthru
        _
      %p333 = scmp.lt.s32.totalorder %s22, 2
      // Predicated region
      $region45: #{forward.1} parent=5 // pred_check
        %p334 = pneg %p333
      $region46: #{forward.1} parent=5 // pred_check_branch
        %336 = sbr.rel (%p334) target = $region48
      $region47: #{forward.1} parent=5 // pred_region
        // Predicated region
        $region49: #{forward.1} parent=47 // pred_check
          %p337 = pneg %p42
        $region50: #{forward.1} parent=47 // pred_check_branch
          %339 = sbr.rel (%p337) target = $region52
        $region51: #{forward.1} parent=47 // pred_region
          %p340 = scmp.lt.s32.totalorder %s22, 1
          %s341 = scalar_select %p340, %s22, 1
          %s342 = smul.addr %s341, 2
          %s343 = smul.addr %s342, 8
          %s344 = scalar_lea.vmem %s0, %s343
        $region52: #{forward.1} parent=47 // pred_fallthru
          _
      $region48: #{forward.1} parent=5 // pred_fallthru
        _
      %p345 = scmp.le.s32.totalorder 1, %s22
      %p346 = scmp.lt.s32.totalorder %s22, 3
      %p347 = pnand %p345, %p346
      %p348 = pneg %p347
      // Predicated region
      $region53: #{forward.1} parent=5 // pred_check
        _
      $region54: #{forward.1} parent=5 // pred_check_branch
        %350 = sbr.rel (%p347) target = $region56
      $region55: #{forward.1} parent=5 // pred_region
        %s351 = ssub.s32 %s22, 1
        // Predicated region
        $region57: #{forward.1} parent=55 // pred_check
          %p352 = pneg %p69
        $region58: #{forward.1} parent=55 // pred_check_branch
          %354 = sbr.rel (%p352) target = $region60
        $region59: #{forward.1} parent=55 // pred_region
          %355 = dma.done [#allocation3], 110592
        $region60: #{forward.1} parent=55 // pred_fallthru
          _
        // Predicated region
        $region61: #{forward.1} parent=55 // pred_check
          %p356 = pneg %p90
        $region62: #{forward.1} parent=55 // pred_check_branch
          %358 = sbr.rel (%p356) target = $region64
        $region63: #{forward.1} parent=55 // pred_region
          %359 = dma.done [#allocation6], 256
        $region64: #{forward.1} parent=55 // pred_fallthru
          _
        // Predicated region
        $region65: #{forward.1} parent=55 // pred_check
          %p360 = pneg %p111
        $region66: #{forward.1} parent=55 // pred_check_branch
          %362 = sbr.rel (%p360) target = $region68
        $region67: #{forward.1} parent=55 // pred_region
          %363 = dma.done [#allocation6], 98304
        $region68: #{forward.1} parent=55 // pred_fallthru
          _
        // Predicated region
        $region69: #{forward.1} parent=55 // pred_check
          %p364 = pneg %p132
        $region70: #{forward.1} parent=55 // pred_check_branch
          %366 = sbr.rel (%p364) target = $region72
        $region71: #{forward.1} parent=55 // pred_region
          %367 = dma.done [#allocation9], 64
        $region72: #{forward.1} parent=55 // pred_fallthru
          _
        // Predicated region
        $region73: #{forward.1} parent=55 // pred_check
          %p368 = pneg %p174
        $region74: #{forward.1} parent=55 // pred_check_branch
          %370 = sbr.rel (%p368) target = $region76
        $region75: #{forward.1} parent=55 // pred_region
          %371 = dma.done [#allocation9], 16
        $region76: #{forward.1} parent=55 // pred_fallthru
          _
        // Predicated region
        $region77: #{forward.1} parent=55 // pred_check
          %p372 = pneg %p216
        $region78: #{forward.1} parent=55 // pred_check_branch
          %374 = sbr.rel (%p372) target = $region80
        $region79: #{forward.1} parent=55 // pred_region
          %375 = dma.done [#allocation12], 16
        $region80: #{forward.1} parent=55 // pred_fallthru
          _
        %p376 = scmp.lt.s32.totalorder %s27, 1
        %s377 = scalar_select %p376, %s27, 1
        %s378 = smul.addr %s377, 2
        %s379 = smul.addr %s378, 8
        %s380 = scalar_lea.vmem %s0, %s379
        %p381 = pneg %p48
        %p382 = pneg %p45
        %p383 = pneg %p69
        %p384 = pneg %p66
        %p385 = pneg %p90
        %p386 = pneg %p87
        %p387 = pneg %p111
        %p388 = pneg %p108
        %p389 = pneg %p132
        %p390 = pneg %p129
        %p391 = pneg %p153
        %p392 = pneg %p150
        %p393 = pneg %p174
        %p394 = pneg %p171
        %p395 = pneg %p195
        %p396 = pneg %p192
        %p397 = pneg %p216
        %p398 = pneg %p213
        %p399 = pneg %p242
        %p400 = pneg %p239
        %s401 = sand.u32 %s229, 1
        %s402 = scalar_lea.sflag [#allocation4], %s401
        %s403 = sand.u32 %s229, 1
        %s404 = scalar_lea.vmem [#allocation13], %s403
        %p405 = scmp.lt.s32.totalorder %s27, 1
        %s406 = scalar_select %p405, %s27, 1
        %s407 = smul.addr %s406, 2
        %s408 = smul.addr %s407, 8
        %s409 = scalar_lea.vmem %s0, %s408
        %v410 = vld [vmem:[%s409] sm:$0xff]
        %v411 = vld [vmem:[%s409 + $0x8] sm:$0xff]
        %v412 = vld [vmem:[#allocation2] sm:$0xff]
        %v413 = vld [vmem:[#allocation2 + $0x8] sm:$0xff]
        %v414 = vld [vmem:[#allocation2 + $0x10] sm:$0xff]
        %v415 = vld [vmem:[#allocation2 + $0x18] sm:$0xff]
        %v416 = vld [vmem:[#allocation2 + $0x20] sm:$0xff]
        %v417 = vld [vmem:[#allocation2 + $0x28] sm:$0xff]
        %v418 = vld [vmem:[#allocation2 + $0x30] sm:$0xff]
        %v419 = vld [vmem:[#allocation2 + $0x38] sm:$0xff]
        %v420 = vld [vmem:[#allocation2 + $0x40] sm:$0xff]
        %v421 = vld [vmem:[#allocation2 + $0x48] sm:$0xff]
        %v422 = vld [vmem:[#allocation2 + $0x50] sm:$0xff]
        %v423 = vld [vmem:[#allocation2 + $0x58] sm:$0xff]
        %v424 = vld [vmem:[#allocation2 + $0x60] sm:$0xff]
        %v425 = vld [vmem:[#allocation2 + $0x68] sm:$0xff]
        %v426 = vld [vmem:[#allocation2 + $0x70] sm:$0xff]
        %v427 = vld [vmem:[#allocation2 + $0x78] sm:$0xff]
        %v428 = vld [vmem:[#allocation2 + $0x80] sm:$0xff]
        %v429 = vld [vmem:[#allocation2 + $0x88] sm:$0xff]
        %v430 = vld [vmem:[#allocation2 + $0x90] sm:$0xff]
        %v431 = vld [vmem:[#allocation2 + $0x98] sm:$0xff]
        %v432 = vld [vmem:[#allocation2 + $0xa0] sm:$0xff]
        %v433 = vld [vmem:[#allocation2 + $0xa8] sm:$0xff]
        %v434 = vld [vmem:[#allocation2 + $0xb0] sm:$0xff]
        %v435 = vld [vmem:[#allocation2 + $0xb8] sm:$0xff]
        %v436 = vld [vmem:[#allocation2 + $0xc0] sm:$0xff]
        %v437 = vld [vmem:[#allocation2 + $0xc8] sm:$0xff]
        %v438 = vld [vmem:[#allocation2 + $0xd0] sm:$0xff]
        %v439 = vld [vmem:[#allocation2 + $0xd8] sm:$0xff]
        %v440 = vld [vmem:[#allocation2 + $0xe0] sm:$0xff]
        %v441 = vld [vmem:[#allocation2 + $0xe8] sm:$0xff]
        %v442 = vld [vmem:[#allocation2 + $0xf0] sm:$0xff]
        %v443 = vld [vmem:[#allocation2 + $0xf8] sm:$0xff]
        %v444 = vld [vmem:[#allocation2 + $0x100] sm:$0xff]
        %v445 = vld [vmem:[#allocation2 + $0x108] sm:$0xff]
        %v446 = vld [vmem:[#allocation2 + $0x110] sm:$0xff]
        %v447 = vld [vmem:[#allocation2 + $0x118] sm:$0xff]
        %v448 = vld [vmem:[#allocation2 + $0x120] sm:$0xff]
        %v449 = vld [vmem:[#allocation2 + $0x128] sm:$0xff]
        %v450 = vld [vmem:[#allocation2 + $0x130] sm:$0xff]
        %v451 = vld [vmem:[#allocation2 + $0x138] sm:$0xff]
        %v452 = vld [vmem:[#allocation2 + $0x140] sm:$0xff]
        %v453 = vld [vmem:[#allocation2 + $0x148] sm:$0xff]
        %v454 = vld [vmem:[#allocation2 + $0x150] sm:$0xff]
        %v455 = vld [vmem:[#allocation2 + $0x158] sm:$0xff]
        %v456 = vld [vmem:[#allocation2 + $0x160] sm:$0xff]
        %v457 = vld [vmem:[#allocation2 + $0x168] sm:$0xff]
        %v458 = vld [vmem:[#allocation2 + $0x170] sm:$0xff]
        %v459 = vld [vmem:[#allocation2 + $0x178] sm:$0xff]
        %v460 = vld [vmem:[#allocation2 + $0x180] sm:$0xff]
        %v461 = vld [vmem:[#allocation2 + $0x188] sm:$0xff]
        %v462 = vld [vmem:[#allocation2 + $0x190] sm:$0xff]
        %v463 = vld [vmem:[#allocation2 + $0x198] sm:$0xff]
        %v464 = vld [vmem:[#allocation2 + $0x1a0] sm:$0xff]
        %v465 = vld [vmem:[#allocation2 + $0x1a8] sm:$0xff]
        %v466 = vld [vmem:[#allocation2 + $0x1b0] sm:$0xff]
        %v467 = vld [vmem:[#allocation2 + $0x1b8] sm:$0xff]
        %v468 = vld [vmem:[#allocation2 + $0x1c0] sm:$0xff]
        %v469 = vld [vmem:[#allocation2 + $0x1c8] sm:$0xff]
        %v470 = vld [vmem:[#allocation2 + $0x1d0] sm:$0xff]
        %v471 = vld [vmem:[#allocation2 + $0x1d8] sm:$0xff]
        %v472 = vld [vmem:[#allocation2 + $0x1e0] sm:$0xff]
        %v473 = vld [vmem:[#allocation2 + $0x1e8] sm:$0xff]
        %v474 = vld [vmem:[#allocation2 + $0x1f0] sm:$0xff]
        %v475 = vld [vmem:[#allocation2 + $0x1f8] sm:$0xff]
        %v476 = vld [vmem:[#allocation2 + $0x200] sm:$0xff]
        %v477 = vld [vmem:[#allocation2 + $0x208] sm:$0xff]
        %v478 = vld [vmem:[#allocation2 + $0x210] sm:$0xff]
        %v479 = vld [vmem:[#allocation2 + $0x218] sm:$0xff]
        %v480 = vld [vmem:[#allocation2 + $0x220] sm:$0xff]
        %v481 = vld [vmem:[#allocation2 + $0x228] sm:$0xff]
        %v482 = vld [vmem:[#allocation2 + $0x230] sm:$0xff]
        %v483 = vld [vmem:[#allocation2 + $0x238] sm:$0xff]
        %v484 = vld [vmem:[#allocation2 + $0x240] sm:$0xff]
        %v485 = vld [vmem:[#allocation2 + $0x248] sm:$0xff]
        %v486 = vld [vmem:[#allocation2 + $0x250] sm:$0xff]
        %v487 = vld [vmem:[#allocation2 + $0x258] sm:$0xff]
        %v488 = vld [vmem:[#allocation2 + $0x260] sm:$0xff]
        %v489 = vld [vmem:[#allocation2 + $0x268] sm:$0xff]
        %v490 = vld [vmem:[#allocation2 + $0x270] sm:$0xff]
        %v491 = vld [vmem:[#allocation2 + $0x278] sm:$0xff]
        %v492 = vld [vmem:[#allocation2 + $0x280] sm:$0xff]
        %v493 = vld [vmem:[#allocation2 + $0x288] sm:$0xff]
        %v494 = vld [vmem:[#allocation2 + $0x290] sm:$0xff]
        %v495 = vld [vmem:[#allocation2 + $0x298] sm:$0xff]
        %v496 = vld [vmem:[#allocation2 + $0x2a0] sm:$0xff]
        %v497 = vld [vmem:[#allocation2 + $0x2a8] sm:$0xff]
        %v498 = vld [vmem:[#allocation2 + $0x2b0] sm:$0xff]
        %v499 = vld [vmem:[#allocation2 + $0x2b8] sm:$0xff]
        %v500 = vld [vmem:[#allocation2 + $0x2c0] sm:$0xff]
        %v501 = vld [vmem:[#allocation2 + $0x2c8] sm:$0xff]
        %v502 = vld [vmem:[#allocation2 + $0x2d0] sm:$0xff]
        %v503 = vld [vmem:[#allocation2 + $0x2d8] sm:$0xff]
        %v504 = vld [vmem:[#allocation2 + $0x2e0] sm:$0xff]
        %v505 = vld [vmem:[#allocation2 + $0x2e8] sm:$0xff]
        %v506 = vld [vmem:[#allocation2 + $0x2f0] sm:$0xff]
        %v507 = vld [vmem:[#allocation2 + $0x2f8] sm:$0xff]
        %v508 = vld [vmem:[#allocation2 + $0x300] sm:$0xff]
        %v509 = vld [vmem:[#allocation2 + $0x308] sm:$0xff]
        %v510 = vld [vmem:[#allocation2 + $0x310] sm:$0xff]
        %v511 = vld [vmem:[#allocation2 + $0x318] sm:$0xff]
        %v512 = vld [vmem:[#allocation2 + $0x320] sm:$0xff]
        %v513 = vld [vmem:[#allocation2 + $0x328] sm:$0xff]
        %v514 = vld [vmem:[#allocation2 + $0x330] sm:$0xff]
        %v515 = vld [vmem:[#allocation2 + $0x338] sm:$0xff]
        %v516 = vld [vmem:[#allocation2 + $0x340] sm:$0xff]
        %v517 = vld [vmem:[#allocation2 + $0x348] sm:$0xff]
        %v518 = vld [vmem:[#allocation2 + $0x350] sm:$0xff]
        %v519 = vld [vmem:[#allocation2 + $0x358] sm:$0xff]
        %v520 = vld [vmem:[#allocation2 + $0x360] sm:$0xff]
        %v521 = vld [vmem:[#allocation2 + $0x368] sm:$0xff]
        %v522 = vld [vmem:[#allocation2 + $0x370] sm:$0xff]
        %v523 = vld [vmem:[#allocation2 + $0x378] sm:$0xff]
        %v524 = vld [vmem:[#allocation2 + $0x380] sm:$0xff]
        %v525 = vld [vmem:[#allocation2 + $0x388] sm:$0xff]
        %v526 = vld [vmem:[#allocation2 + $0x390] sm:$0xff]
        %v527 = vld [vmem:[#allocation2 + $0x398] sm:$0xff]
        %v528 = vld [vmem:[#allocation2 + $0x3a0] sm:$0xff]
        %v529 = vld [vmem:[#allocation2 + $0x3a8] sm:$0xff]
        %v530 = vld [vmem:[#allocation2 + $0x3b0] sm:$0xff]
        %v531 = vld [vmem:[#allocation2 + $0x3b8] sm:$0xff]
        %v532 = vld [vmem:[#allocation2 + $0x3c0] sm:$0xff]
        %v533 = vld [vmem:[#allocation2 + $0x3c8] sm:$0xff]
        %v534 = vld [vmem:[#allocation2 + $0x3d0] sm:$0xff]
        %v535 = vld [vmem:[#allocation2 + $0x3d8] sm:$0xff]
        %v536 = vld [vmem:[#allocation2 + $0x3e0] sm:$0xff]
        %v537 = vld [vmem:[#allocation2 + $0x3e8] sm:$0xff]
        %v538 = vld [vmem:[#allocation2 + $0x3f0] sm:$0xff]
        %v539 = vld [vmem:[#allocation2 + $0x3f8] sm:$0xff]
        %v540 = vld [vmem:[#allocation2 + $0x400] sm:$0xff]
        %v541 = vld [vmem:[#allocation2 + $0x408] sm:$0xff]
        %v542 = vld [vmem:[#allocation2 + $0x410] sm:$0xff]
        %v543 = vld [vmem:[#allocation2 + $0x418] sm:$0xff]
        %v544 = vld [vmem:[#allocation2 + $0x420] sm:$0xff]
        %v545 = vld [vmem:[#allocation2 + $0x428] sm:$0xff]
        %v546 = vld [vmem:[#allocation2 + $0x430] sm:$0xff]
        %v547 = vld [vmem:[#allocation2 + $0x438] sm:$0xff]
        %v548 = vld [vmem:[#allocation2 + $0x440] sm:$0xff]
        %v549 = vld [vmem:[#allocation2 + $0x448] sm:$0xff]
        %v550 = vld [vmem:[#allocation2 + $0x450] sm:$0xff]
        %v551 = vld [vmem:[#allocation2 + $0x458] sm:$0xff]
        %v552 = vld [vmem:[#allocation2 + $0x460] sm:$0xff]
        %v553 = vld [vmem:[#allocation2 + $0x468] sm:$0xff]
        %v554 = vld [vmem:[#allocation2 + $0x470] sm:$0xff]
        %v555 = vld [vmem:[#allocation2 + $0x478] sm:$0xff]
        %v556 = vld [vmem:[#allocation2 + $0x480] sm:$0xff]
        %v557 = vld [vmem:[#allocation2 + $0x488] sm:$0xff]
        %v558 = vld [vmem:[#allocation2 + $0x490] sm:$0xff]
        %v559 = vld [vmem:[#allocation2 + $0x498] sm:$0xff]
        %v560 = vld [vmem:[#allocation2 + $0x4a0] sm:$0xff]
        %v561 = vld [vmem:[#allocation2 + $0x4a8] sm:$0xff]
        %v562 = vld [vmem:[#allocation2 + $0x4b0] sm:$0xff]
        %v563 = vld [vmem:[#allocation2 + $0x4b8] sm:$0xff]
        %v564 = vld [vmem:[#allocation2 + $0x4c0] sm:$0xff]
        %v565 = vld [vmem:[#allocation2 + $0x4c8] sm:$0xff]
        %v566 = vld [vmem:[#allocation2 + $0x4d0] sm:$0xff]
        %v567 = vld [vmem:[#allocation2 + $0x4d8] sm:$0xff]
        %v568 = vld [vmem:[#allocation2 + $0x4e0] sm:$0xff]
        %v569 = vld [vmem:[#allocation2 + $0x4e8] sm:$0xff]
        %v570 = vld [vmem:[#allocation2 + $0x4f0] sm:$0xff]
        %v571 = vld [vmem:[#allocation2 + $0x4f8] sm:$0xff]
        %v572 = vld [vmem:[#allocation2 + $0x500] sm:$0xff]
        %v573 = vld [vmem:[#allocation2 + $0x508] sm:$0xff]
        %v574 = vld [vmem:[#allocation2 + $0x510] sm:$0xff]
        %v575 = vld [vmem:[#allocation2 + $0x518] sm:$0xff]
        %v576 = vld [vmem:[#allocation2 + $0x520] sm:$0xff]
        %v577 = vld [vmem:[#allocation2 + $0x528] sm:$0xff]
        %v578 = vld [vmem:[#allocation2 + $0x530] sm:$0xff]
        %v579 = vld [vmem:[#allocation2 + $0x538] sm:$0xff]
        %v580 = vld [vmem:[#allocation2 + $0x540] sm:$0xff]
        %v581 = vld [vmem:[#allocation2 + $0x548] sm:$0xff]
        %v582 = vld [vmem:[#allocation2 + $0x550] sm:$0xff]
        %v583 = vld [vmem:[#allocation2 + $0x558] sm:$0xff]
        %v584 = vld [vmem:[#allocation2 + $0x560] sm:$0xff]
        %v585 = vld [vmem:[#allocation2 + $0x568] sm:$0xff]
        %v586 = vld [vmem:[#allocation2 + $0x570] sm:$0xff]
        %v587 = vld [vmem:[#allocation2 + $0x578] sm:$0xff]
        %v588 = vld [vmem:[#allocation2 + $0x580] sm:$0xff]
        %v589 = vld [vmem:[#allocation2 + $0x588] sm:$0xff]
        %v590 = vld [vmem:[#allocation2 + $0x590] sm:$0xff]
        %v591 = vld [vmem:[#allocation2 + $0x598] sm:$0xff]
        %v592 = vld [vmem:[#allocation2 + $0x5a0] sm:$0xff]
        %v593 = vld [vmem:[#allocation2 + $0x5a8] sm:$0xff]
        %v594 = vld [vmem:[#allocation2 + $0x5b0] sm:$0xff]
        %v595 = vld [vmem:[#allocation2 + $0x5b8] sm:$0xff]
        %v596 = vld [vmem:[#allocation2 + $0x5c0] sm:$0xff]
        %v597 = vld [vmem:[#allocation2 + $0x5c8] sm:$0xff]
        %v598 = vld [vmem:[#allocation2 + $0x5d0] sm:$0xff]
        %v599 = vld [vmem:[#allocation2 + $0x5d8] sm:$0xff]
        %v600 = vld [vmem:[#allocation2 + $0x5e0] sm:$0xff]
        %v601 = vld [vmem:[#allocation2 + $0x5e8] sm:$0xff]
        %v602 = vld [vmem:[#allocation2 + $0x5f0] sm:$0xff]
        %v603 = vld [vmem:[#allocation2 + $0x5f8] sm:$0xff]
        %v604 = vld [vmem:[#allocation2 + $0x600] sm:$0xff]
        %v605 = vld [vmem:[#allocation2 + $0x608] sm:$0xff]
        %v606 = vld [vmem:[#allocation2 + $0x610] sm:$0xff]
        %v607 = vld [vmem:[#allocation2 + $0x618] sm:$0xff]
        %v608 = vld [vmem:[#allocation2 + $0x620] sm:$0xff]
        %v609 = vld [vmem:[#allocation2 + $0x628] sm:$0xff]
        %v610 = vld [vmem:[#allocation2 + $0x630] sm:$0xff]
        %v611 = vld [vmem:[#allocation2 + $0x638] sm:$0xff]
        %v612 = vld [vmem:[#allocation2 + $0x640] sm:$0xff]
        %v613 = vld [vmem:[#allocation2 + $0x648] sm:$0xff]
        %v614 = vld [vmem:[#allocation2 + $0x650] sm:$0xff]
        %v615 = vld [vmem:[#allocation2 + $0x658] sm:$0xff]
        %v616 = vld [vmem:[#allocation2 + $0x660] sm:$0xff]
        %v617 = vld [vmem:[#allocation2 + $0x668] sm:$0xff]
        %v618 = vld [vmem:[#allocation2 + $0x670] sm:$0xff]
        %v619 = vld [vmem:[#allocation2 + $0x678] sm:$0xff]
        %v620 = vld [vmem:[#allocation2 + $0x680] sm:$0xff]
        %v621 = vld [vmem:[#allocation2 + $0x688] sm:$0xff]
        %v622 = vld [vmem:[#allocation2 + $0x690] sm:$0xff]
        %v623 = vld [vmem:[#allocation2 + $0x698] sm:$0xff]
        %v624 = vld [vmem:[#allocation2 + $0x6a0] sm:$0xff]
        %v625 = vld [vmem:[#allocation2 + $0x6a8] sm:$0xff]
        %v626 = vld [vmem:[#allocation2 + $0x6b0] sm:$0xff]
        %v627 = vld [vmem:[#allocation2 + $0x6b8] sm:$0xff]
        %v628 = vld [vmem:[#allocation2 + $0x6c0] sm:$0xff]
        %v629 = vld [vmem:[#allocation2 + $0x6c8] sm:$0xff]
        %v630 = vld [vmem:[#allocation2 + $0x6d0] sm:$0xff]
        %v631 = vld [vmem:[#allocation2 + $0x6d8] sm:$0xff]
        %v632 = vld [vmem:[#allocation2 + $0x6e0] sm:$0xff]
        %v633 = vld [vmem:[#allocation2 + $0x6e8] sm:$0xff]
        %v634 = vld [vmem:[#allocation2 + $0x6f0] sm:$0xff]
        %v635 = vld [vmem:[#allocation2 + $0x6f8] sm:$0xff]
        %v636 = vld [vmem:[#allocation2 + $0x700] sm:$0xff]
        %v637 = vld [vmem:[#allocation2 + $0x708] sm:$0xff]
        %v638 = vld [vmem:[#allocation2 + $0x710] sm:$0xff]
        %v639 = vld [vmem:[#allocation2 + $0x718] sm:$0xff]
        %v640 = vld [vmem:[#allocation2 + $0x720] sm:$0xff]
        %v641 = vld [vmem:[#allocation2 + $0x728] sm:$0xff]
        %v642 = vld [vmem:[#allocation2 + $0x730] sm:$0xff]
        %v643 = vld [vmem:[#allocation2 + $0x738] sm:$0xff]
        %v644 = vld [vmem:[#allocation2 + $0x740] sm:$0xff]
        %v645 = vld [vmem:[#allocation2 + $0x748] sm:$0xff]
        %v646 = vld [vmem:[#allocation2 + $0x750] sm:$0xff]
        %v647 = vld [vmem:[#allocation2 + $0x758] sm:$0xff]
        %v648 = vld [vmem:[#allocation2 + $0x760] sm:$0xff]
        %v649 = vld [vmem:[#allocation2 + $0x768] sm:$0xff]
        %v650 = vld [vmem:[#allocation2 + $0x770] sm:$0xff]
        %v651 = vld [vmem:[#allocation2 + $0x778] sm:$0xff]
        %v652 = vld [vmem:[#allocation2 + $0x780] sm:$0xff]
        %v653 = vld [vmem:[#allocation2 + $0x788] sm:$0xff]
        %v654 = vld [vmem:[#allocation2 + $0x790] sm:$0xff]
        %v655 = vld [vmem:[#allocation2 + $0x798] sm:$0xff]
        %v656 = vld [vmem:[#allocation2 + $0x7a0] sm:$0xff]
        %v657 = vld [vmem:[#allocation2 + $0x7a8] sm:$0xff]
        %v658 = vld [vmem:[#allocation2 + $0x7b0] sm:$0xff]
        %v659 = vld [vmem:[#allocation2 + $0x7b8] sm:$0xff]
        %v660 = vld [vmem:[#allocation2 + $0x7c0] sm:$0xff]
        %v661 = vld [vmem:[#allocation2 + $0x7c8] sm:$0xff]
        %v662 = vld [vmem:[#allocation2 + $0x7d0] sm:$0xff]
        %v663 = vld [vmem:[#allocation2 + $0x7d8] sm:$0xff]
        %v664 = vld [vmem:[#allocation2 + $0x7e0] sm:$0xff]
        %v665 = vld [vmem:[#allocation2 + $0x7e8] sm:$0xff]
        %v666 = vld [vmem:[#allocation2 + $0x7f0] sm:$0xff]
        %v667 = vld [vmem:[#allocation2 + $0x7f8] sm:$0xff]
        %v668 = vld [vmem:[#allocation2 + $0x800] sm:$0xff]
        %v669 = vld [vmem:[#allocation2 + $0x808] sm:$0xff]
        %v670 = vld [vmem:[#allocation2 + $0x810] sm:$0xff]
        %v671 = vld [vmem:[#allocation2 + $0x818] sm:$0xff]
        %v672 = vld [vmem:[#allocation2 + $0x820] sm:$0xff]
        %v673 = vld [vmem:[#allocation2 + $0x828] sm:$0xff]
        %v674 = vld [vmem:[#allocation2 + $0x830] sm:$0xff]
        %v675 = vld [vmem:[#allocation2 + $0x838] sm:$0xff]
        %v676 = vld [vmem:[#allocation2 + $0x840] sm:$0xff]
        %v677 = vld [vmem:[#allocation2 + $0x848] sm:$0xff]
        %v678 = vld [vmem:[#allocation2 + $0x850] sm:$0xff]
        %v679 = vld [vmem:[#allocation2 + $0x858] sm:$0xff]
        %v680 = vld [vmem:[#allocation2 + $0x860] sm:$0xff]
        %v681 = vld [vmem:[#allocation2 + $0x868] sm:$0xff]
        %v682 = vld [vmem:[#allocation2 + $0x870] sm:$0xff]
        %v683 = vld [vmem:[#allocation2 + $0x878] sm:$0xff]
        %v684 = vld [vmem:[#allocation2 + $0x880] sm:$0xff]
        %v685 = vld [vmem:[#allocation2 + $0x888] sm:$0xff]
        %v686 = vld [vmem:[#allocation2 + $0x890] sm:$0xff]
        %v687 = vld [vmem:[#allocation2 + $0x898] sm:$0xff]
        %v688 = vld [vmem:[#allocation2 + $0x8a0] sm:$0xff]
        %v689 = vld [vmem:[#allocation2 + $0x8a8] sm:$0xff]
        %v690 = vld [vmem:[#allocation2 + $0x8b0] sm:$0xff]
        %v691 = vld [vmem:[#allocation2 + $0x8b8] sm:$0xff]
        %v692 = vld [vmem:[#allocation2 + $0x8c0] sm:$0xff]
        %v693 = vld [vmem:[#allocation2 + $0x8c8] sm:$0xff]
        %v694 = vld [vmem:[#allocation2 + $0x8d0] sm:$0xff]
        %v695 = vld [vmem:[#allocation2 + $0x8d8] sm:$0xff]
        %v696 = vld [vmem:[#allocation2 + $0x8e0] sm:$0xff]
        %v697 = vld [vmem:[#allocation2 + $0x8e8] sm:$0xff]
        %v698 = vld [vmem:[#allocation2 + $0x8f0] sm:$0xff]
        %v699 = vld [vmem:[#allocation2 + $0x8f8] sm:$0xff]
        %v700 = vld [vmem:[#allocation2 + $0x900] sm:$0xff]
        %v701 = vld [vmem:[#allocation2 + $0x908] sm:$0xff]
        %v702 = vld [vmem:[#allocation2 + $0x910] sm:$0xff]
        %v703 = vld [vmem:[#allocation2 + $0x918] sm:$0xff]
        %v704 = vld [vmem:[#allocation2 + $0x920] sm:$0xff]
        %v705 = vld [vmem:[#allocation2 + $0x928] sm:$0xff]
        %v706 = vld [vmem:[#allocation2 + $0x930] sm:$0xff]
        %v707 = vld [vmem:[#allocation2 + $0x938] sm:$0xff]
        %v708 = vld [vmem:[#allocation2 + $0x940] sm:$0xff]
        %v709 = vld [vmem:[#allocation2 + $0x948] sm:$0xff]
        %v710 = vld [vmem:[#allocation2 + $0x950] sm:$0xff]
        %v711 = vld [vmem:[#allocation2 + $0x958] sm:$0xff]
        %v712 = vld [vmem:[#allocation2 + $0x960] sm:$0xff]
        %v713 = vld [vmem:[#allocation2 + $0x968] sm:$0xff]
        %v714 = vld [vmem:[#allocation2 + $0x970] sm:$0xff]
        %v715 = vld [vmem:[#allocation2 + $0x978] sm:$0xff]
        %v716 = vld [vmem:[#allocation2 + $0x980] sm:$0xff]
        %v717 = vld [vmem:[#allocation2 + $0x988] sm:$0xff]
        %v718 = vld [vmem:[#allocation2 + $0x990] sm:$0xff]
        %v719 = vld [vmem:[#allocation2 + $0x998] sm:$0xff]
        %v720 = vld [vmem:[#allocation2 + $0x9a0] sm:$0xff]
        %v721 = vld [vmem:[#allocation2 + $0x9a8] sm:$0xff]
        %v722 = vld [vmem:[#allocation2 + $0x9b0] sm:$0xff]
        %v723 = vld [vmem:[#allocation2 + $0x9b8] sm:$0xff]
        %v724 = vld [vmem:[#allocation2 + $0x9c0] sm:$0xff]
        %v725 = vld [vmem:[#allocation2 + $0x9c8] sm:$0xff]
        %v726 = vld [vmem:[#allocation2 + $0x9d0] sm:$0xff]
        %v727 = vld [vmem:[#allocation2 + $0x9d8] sm:$0xff]
        %v728 = vld [vmem:[#allocation2 + $0x9e0] sm:$0xff]
        %v729 = vld [vmem:[#allocation2 + $0x9e8] sm:$0xff]
        %v730 = vld [vmem:[#allocation2 + $0x9f0] sm:$0xff]
        %v731 = vld [vmem:[#allocation2 + $0x9f8] sm:$0xff]
        %v732 = vld [vmem:[#allocation2 + $0xa00] sm:$0xff]
        %v733 = vld [vmem:[#allocation2 + $0xa08] sm:$0xff]
        %v734 = vld [vmem:[#allocation2 + $0xa10] sm:$0xff]
        %v735 = vld [vmem:[#allocation2 + $0xa18] sm:$0xff]
        %v736 = vld [vmem:[#allocation2 + $0xa20] sm:$0xff]
        %v737 = vld [vmem:[#allocation2 + $0xa28] sm:$0xff]
        %v738 = vld [vmem:[#allocation2 + $0xa30] sm:$0xff]
        %v739 = vld [vmem:[#allocation2 + $0xa38] sm:$0xff]
        %v740 = vld [vmem:[#allocation2 + $0xa40] sm:$0xff]
        %v741 = vld [vmem:[#allocation2 + $0xa48] sm:$0xff]
        %v742 = vld [vmem:[#allocation2 + $0xa50] sm:$0xff]
        %v743 = vld [vmem:[#allocation2 + $0xa58] sm:$0xff]
        %v744 = vld [vmem:[#allocation2 + $0xa60] sm:$0xff]
        %v745 = vld [vmem:[#allocation2 + $0xa68] sm:$0xff]
        %v746 = vld [vmem:[#allocation2 + $0xa70] sm:$0xff]
        %v747 = vld [vmem:[#allocation2 + $0xa78] sm:$0xff]
        %v748 = vld [vmem:[#allocation2 + $0xa80] sm:$0xff]
        %v749 = vld [vmem:[#allocation2 + $0xa88] sm:$0xff]
        %v750 = vld [vmem:[#allocation2 + $0xa90] sm:$0xff]
        %v751 = vld [vmem:[#allocation2 + $0xa98] sm:$0xff]
        %v752 = vld [vmem:[#allocation2 + $0xaa0] sm:$0xff]
        %v753 = vld [vmem:[#allocation2 + $0xaa8] sm:$0xff]
        %v754 = vld [vmem:[#allocation2 + $0xab0] sm:$0xff]
        %v755 = vld [vmem:[#allocation2 + $0xab8] sm:$0xff]
        %v756 = vld [vmem:[#allocation2 + $0xac0] sm:$0xff]
        %v757 = vld [vmem:[#allocation2 + $0xac8] sm:$0xff]
        %v758 = vld [vmem:[#allocation2 + $0xad0] sm:$0xff]
        %v759 = vld [vmem:[#allocation2 + $0xad8] sm:$0xff]
        %v760 = vld [vmem:[#allocation2 + $0xae0] sm:$0xff]
        %v761 = vld [vmem:[#allocation2 + $0xae8] sm:$0xff]
        %v762 = vld [vmem:[#allocation2 + $0xaf0] sm:$0xff]
        %v763 = vld [vmem:[#allocation2 + $0xaf8] sm:$0xff]
        %v764 = vld [vmem:[#allocation2 + $0xb00] sm:$0xff]
        %v765 = vld [vmem:[#allocation2 + $0xb08] sm:$0xff]
        %v766 = vld [vmem:[#allocation2 + $0xb10] sm:$0xff]
        %v767 = vld [vmem:[#allocation2 + $0xb18] sm:$0xff]
        %v768 = vld [vmem:[#allocation2 + $0xb20] sm:$0xff]
        %v769 = vld [vmem:[#allocation2 + $0xb28] sm:$0xff]
        %v770 = vld [vmem:[#allocation2 + $0xb30] sm:$0xff]
        %v771 = vld [vmem:[#allocation2 + $0xb38] sm:$0xff]
        %v772 = vld [vmem:[#allocation2 + $0xb40] sm:$0xff]
        %v773 = vld [vmem:[#allocation2 + $0xb48] sm:$0xff]
        %v774 = vld [vmem:[#allocation2 + $0xb50] sm:$0xff]
        %v775 = vld [vmem:[#allocation2 + $0xb58] sm:$0xff]
        %v776 = vld [vmem:[#allocation2 + $0xb60] sm:$0xff]
        %v777 = vld [vmem:[#allocation2 + $0xb68] sm:$0xff]
        %v778 = vld [vmem:[#allocation2 + $0xb70] sm:$0xff]
        %v779 = vld [vmem:[#allocation2 + $0xb78] sm:$0xff]
        %v780 = vld [vmem:[#allocation2 + $0xb80] sm:$0xff]
        %v781 = vld [vmem:[#allocation2 + $0xb88] sm:$0xff]
        %v782 = vld [vmem:[#allocation2 + $0xb90] sm:$0xff]
        %v783 = vld [vmem:[#allocation2 + $0xb98] sm:$0xff]
        %v784 = vld [vmem:[#allocation2 + $0xba0] sm:$0xff]
        %v785 = vld [vmem:[#allocation2 + $0xba8] sm:$0xff]
        %v786 = vld [vmem:[#allocation2 + $0xbb0] sm:$0xff]
        %v787 = vld [vmem:[#allocation2 + $0xbb8] sm:$0xff]
        %v788 = vld [vmem:[#allocation2 + $0xbc0] sm:$0xff]
        %v789 = vld [vmem:[#allocation2 + $0xbc8] sm:$0xff]
        %v790 = vld [vmem:[#allocation2 + $0xbd0] sm:$0xff]
        %v791 = vld [vmem:[#allocation2 + $0xbd8] sm:$0xff]
        %v792 = vld [vmem:[#allocation2 + $0xbe0] sm:$0xff]
        %v793 = vld [vmem:[#allocation2 + $0xbe8] sm:$0xff]
        %v794 = vld [vmem:[#allocation2 + $0xbf0] sm:$0xff]
        %v795 = vld [vmem:[#allocation2 + $0xbf8] sm:$0xff]
        %v796 = vld [vmem:[#allocation2 + $0xc00] sm:$0xff]
        %v797 = vld [vmem:[#allocation2 + $0xc08] sm:$0xff]
        %v798 = vld [vmem:[#allocation2 + $0xc10] sm:$0xff]
        %v799 = vld [vmem:[#allocation2 + $0xc18] sm:$0xff]
        %v800 = vld [vmem:[#allocation2 + $0xc20] sm:$0xff]
        %v801 = vld [vmem:[#allocation2 + $0xc28] sm:$0xff]
        %v802 = vld [vmem:[#allocation2 + $0xc30] sm:$0xff]
        %v803 = vld [vmem:[#allocation2 + $0xc38] sm:$0xff]
        %v804 = vld [vmem:[#allocation2 + $0xc40] sm:$0xff]
        %v805 = vld [vmem:[#allocation2 + $0xc48] sm:$0xff]
        %v806 = vld [vmem:[#allocation2 + $0xc50] sm:$0xff]
        %v807 = vld [vmem:[#allocation2 + $0xc58] sm:$0xff]
        %v808 = vld [vmem:[#allocation2 + $0xc60] sm:$0xff]
        %v809 = vld [vmem:[#allocation2 + $0xc68] sm:$0xff]
        %v810 = vld [vmem:[#allocation2 + $0xc70] sm:$0xff]
        %v811 = vld [vmem:[#allocation2 + $0xc78] sm:$0xff]
        %v812 = vld [vmem:[#allocation2 + $0xc80] sm:$0xff]
        %v813 = vld [vmem:[#allocation2 + $0xc88] sm:$0xff]
        %v814 = vld [vmem:[#allocation2 + $0xc90] sm:$0xff]
        %v815 = vld [vmem:[#allocation2 + $0xc98] sm:$0xff]
        %v816 = vld [vmem:[#allocation2 + $0xca0] sm:$0xff]
        %v817 = vld [vmem:[#allocation2 + $0xca8] sm:$0xff]
        %v818 = vld [vmem:[#allocation2 + $0xcb0] sm:$0xff]
        %v819 = vld [vmem:[#allocation2 + $0xcb8] sm:$0xff]
        %v820 = vld [vmem:[#allocation2 + $0xcc0] sm:$0xff]
        %v821 = vld [vmem:[#allocation2 + $0xcc8] sm:$0xff]
        %v822 = vld [vmem:[#allocation2 + $0xcd0] sm:$0xff]
        %v823 = vld [vmem:[#allocation2 + $0xcd8] sm:$0xff]
        %v824 = vld [vmem:[#allocation2 + $0xce0] sm:$0xff]
        %v825 = vld [vmem:[#allocation2 + $0xce8] sm:$0xff]
        %v826 = vld [vmem:[#allocation2 + $0xcf0] sm:$0xff]
        %v827 = vld [vmem:[#allocation2 + $0xcf8] sm:$0xff]
        %v828 = vld [vmem:[#allocation2 + $0xd00] sm:$0xff]
        %v829 = vld [vmem:[#allocation2 + $0xd08] sm:$0xff]
        %v830 = vld [vmem:[#allocation2 + $0xd10] sm:$0xff]
        %v831 = vld [vmem:[#allocation2 + $0xd18] sm:$0xff]
        %v832 = vld [vmem:[#allocation2 + $0xd20] sm:$0xff]
        %v833 = vld [vmem:[#allocation2 + $0xd28] sm:$0xff]
        %v834 = vld [vmem:[#allocation2 + $0xd30] sm:$0xff]
        %v835 = vld [vmem:[#allocation2 + $0xd38] sm:$0xff]
        %v836 = vld [vmem:[#allocation2 + $0xd40] sm:$0xff]
        %v837 = vld [vmem:[#allocation2 + $0xd48] sm:$0xff]
        %v838 = vld [vmem:[#allocation2 + $0xd50] sm:$0xff]
        %v839 = vld [vmem:[#allocation2 + $0xd58] sm:$0xff]
        %v840 = vld [vmem:[#allocation2 + $0xd60] sm:$0xff]
        %v841 = vld [vmem:[#allocation2 + $0xd68] sm:$0xff]
        %v842 = vld [vmem:[#allocation2 + $0xd70] sm:$0xff]
        %v843 = vld [vmem:[#allocation2 + $0xd78] sm:$0xff]
        %v844 = vld [vmem:[#allocation2 + $0xd80] sm:$0xff]
        %v845 = vld [vmem:[#allocation2 + $0xd88] sm:$0xff]
        %v846 = vld [vmem:[#allocation2 + $0xd90] sm:$0xff]
        %v847 = vld [vmem:[#allocation2 + $0xd98] sm:$0xff]
        %v848 = vld [vmem:[#allocation2 + $0xda0] sm:$0xff]
        %v849 = vld [vmem:[#allocation2 + $0xda8] sm:$0xff]
        %v850 = vld [vmem:[#allocation2 + $0xdb0] sm:$0xff]
        %v851 = vld [vmem:[#allocation2 + $0xdb8] sm:$0xff]
        %v852 = vld [vmem:[#allocation2 + $0xdc0] sm:$0xff]
        %v853 = vld [vmem:[#allocation2 + $0xdc8] sm:$0xff]
        %v854 = vld [vmem:[#allocation2 + $0xdd0] sm:$0xff]
        %v855 = vld [vmem:[#allocation2 + $0xdd8] sm:$0xff]
        %v856 = vld [vmem:[#allocation2 + $0xde0] sm:$0xff]
        %v857 = vld [vmem:[#allocation2 + $0xde8] sm:$0xff]
        %v858 = vld [vmem:[#allocation2 + $0xdf0] sm:$0xff]
        %v859 = vld [vmem:[#allocation2 + $0xdf8] sm:$0xff]
        %v860 = vld [vmem:[#allocation2 + $0xe00] sm:$0xff]
        %v861 = vld [vmem:[#allocation2 + $0xe08] sm:$0xff]
        %v862 = vld [vmem:[#allocation2 + $0xe10] sm:$0xff]
        %v863 = vld [vmem:[#allocation2 + $0xe18] sm:$0xff]
        %v864 = vld [vmem:[#allocation2 + $0xe20] sm:$0xff]
        %v865 = vld [vmem:[#allocation2 + $0xe28] sm:$0xff]
        %v866 = vld [vmem:[#allocation2 + $0xe30] sm:$0xff]
        %v867 = vld [vmem:[#allocation2 + $0xe38] sm:$0xff]
        %v868 = vld [vmem:[#allocation2 + $0xe40] sm:$0xff]
        %v869 = vld [vmem:[#allocation2 + $0xe48] sm:$0xff]
        %v870 = vld [vmem:[#allocation2 + $0xe50] sm:$0xff]
        %v871 = vld [vmem:[#allocation2 + $0xe58] sm:$0xff]
        %v872 = vld [vmem:[#allocation2 + $0xe60] sm:$0xff]
        %v873 = vld [vmem:[#allocation2 + $0xe68] sm:$0xff]
        %v874 = vld [vmem:[#allocation2 + $0xe70] sm:$0xff]
        %v875 = vld [vmem:[#allocation2 + $0xe78] sm:$0xff]
        %v876 = vld [vmem:[#allocation2 + $0xe80] sm:$0xff]
        %v877 = vld [vmem:[#allocation2 + $0xe88] sm:$0xff]
        %v878 = vld [vmem:[#allocation2 + $0xe90] sm:$0xff]
        %v879 = vld [vmem:[#allocation2 + $0xe98] sm:$0xff]
        %v880 = vld [vmem:[#allocation2 + $0xea0] sm:$0xff]
        %v881 = vld [vmem:[#allocation2 + $0xea8] sm:$0xff]
        %v882 = vld [vmem:[#allocation2 + $0xeb0] sm:$0xff]
        %v883 = vld [vmem:[#allocation2 + $0xeb8] sm:$0xff]
        %v884 = vld [vmem:[#allocation2 + $0xec0] sm:$0xff]
        %v885 = vld [vmem:[#allocation2 + $0xec8] sm:$0xff]
        %v886 = vld [vmem:[#allocation2 + $0xed0] sm:$0xff]
        %v887 = vld [vmem:[#allocation2 + $0xed8] sm:$0xff]
        %v888 = vld [vmem:[#allocation2 + $0xee0] sm:$0xff]
        %v889 = vld [vmem:[#allocation2 + $0xee8] sm:$0xff]
        %v890 = vld [vmem:[#allocation2 + $0xef0] sm:$0xff]
        %v891 = vld [vmem:[#allocation2 + $0xef8] sm:$0xff]
        %v892 = vld [vmem:[#allocation2 + $0xf00] sm:$0xff]
        %v893 = vld [vmem:[#allocation2 + $0xf08] sm:$0xff]
        %v894 = vld [vmem:[#allocation2 + $0xf10] sm:$0xff]
        %v895 = vld [vmem:[#allocation2 + $0xf18] sm:$0xff]
        %v896 = vld [vmem:[#allocation2 + $0xf20] sm:$0xff]
        %v897 = vld [vmem:[#allocation2 + $0xf28] sm:$0xff]
        %v898 = vld [vmem:[#allocation2 + $0xf30] sm:$0xff]
        %v899 = vld [vmem:[#allocation2 + $0xf38] sm:$0xff]
        %v900 = vld [vmem:[#allocation2 + $0xf40] sm:$0xff]
        %v901 = vld [vmem:[#allocation2 + $0xf48] sm:$0xff]
        %v902 = vld [vmem:[#allocation2 + $0xf50] sm:$0xff]
        %v903 = vld [vmem:[#allocation2 + $0xf58] sm:$0xff]
        %v904 = vld [vmem:[#allocation2 + $0xf60] sm:$0xff]
        %v905 = vld [vmem:[#allocation2 + $0xf68] sm:$0xff]
        %v906 = vld [vmem:[#allocation2 + $0xf70] sm:$0xff]
        %v907 = vld [vmem:[#allocation2 + $0xf78] sm:$0xff]
        %v908 = vld [vmem:[#allocation2 + $0xf80] sm:$0xff]
        %v909 = vld [vmem:[#allocation2 + $0xf88] sm:$0xff]
        %v910 = vld [vmem:[#allocation2 + $0xf90] sm:$0xff]
        %v911 = vld [vmem:[#allocation2 + $0xf98] sm:$0xff]
        %v912 = vld [vmem:[#allocation2 + $0xfa0] sm:$0xff]
        %v913 = vld [vmem:[#allocation2 + $0xfa8] sm:$0xff]
        %v914 = vld [vmem:[#allocation2 + $0xfb0] sm:$0xff]
        %v915 = vld [vmem:[#allocation2 + $0xfb8] sm:$0xff]
        %v916 = vld [vmem:[#allocation2 + $0xfc0] sm:$0xff]
        %v917 = vld [vmem:[#allocation2 + $0xfc8] sm:$0xff]
        %v918 = vld [vmem:[#allocation2 + $0xfd0] sm:$0xff]
        %v919 = vld [vmem:[#allocation2 + $0xfd8] sm:$0xff]
        %v920 = vld [vmem:[#allocation2 + $0xfe0] sm:$0xff]
        %v921 = vld [vmem:[#allocation2 + $0xfe8] sm:$0xff]
        %v922 = vld [vmem:[#allocation2 + $0xff0] sm:$0xff]
        %v923 = vld [vmem:[#allocation2 + $0xff8] sm:$0xff]
        %v924 = vld [vmem:[#allocation2 + $0x1000] sm:$0xff]
        %v925 = vld [vmem:[#allocation2 + $0x1008] sm:$0xff]
        %v926 = vld [vmem:[#allocation2 + $0x1010] sm:$0xff]
        %v927 = vld [vmem:[#allocation2 + $0x1018] sm:$0xff]
        %v928 = vld [vmem:[#allocation2 + $0x1020] sm:$0xff]
        %v929 = vld [vmem:[#allocation2 + $0x1028] sm:$0xff]
        %v930 = vld [vmem:[#allocation2 + $0x1030] sm:$0xff]
        %v931 = vld [vmem:[#allocation2 + $0x1038] sm:$0xff]
        %v932 = vld [vmem:[#allocation2 + $0x1040] sm:$0xff]
        %v933 = vld [vmem:[#allocation2 + $0x1048] sm:$0xff]
        %v934 = vld [vmem:[#allocation2 + $0x1050] sm:$0xff]
        %v935 = vld [vmem:[#allocation2 + $0x1058] sm:$0xff]
        %v936 = vld [vmem:[#allocation2 + $0x1060] sm:$0xff]
        %v937 = vld [vmem:[#allocation2 + $0x1068] sm:$0xff]
        %v938 = vld [vmem:[#allocation2 + $0x1070] sm:$0xff]
        %v939 = vld [vmem:[#allocation2 + $0x1078] sm:$0xff]
        %v940 = vld [vmem:[#allocation2 + $0x1080] sm:$0xff]
        %v941 = vld [vmem:[#allocation2 + $0x1088] sm:$0xff]
        %v942 = vld [vmem:[#allocation2 + $0x1090] sm:$0xff]
        %v943 = vld [vmem:[#allocation2 + $0x1098] sm:$0xff]
        %v944 = vld [vmem:[#allocation2 + $0x10a0] sm:$0xff]
        %v945 = vld [vmem:[#allocation2 + $0x10a8] sm:$0xff]
        %v946 = vld [vmem:[#allocation2 + $0x10b0] sm:$0xff]
        %v947 = vld [vmem:[#allocation2 + $0x10b8] sm:$0xff]
        %v948 = vld [vmem:[#allocation2 + $0x10c0] sm:$0xff]
        %v949 = vld [vmem:[#allocation2 + $0x10c8] sm:$0xff]
        %v950 = vld [vmem:[#allocation2 + $0x10d0] sm:$0xff]
        %v951 = vld [vmem:[#allocation2 + $0x10d8] sm:$0xff]
        %v952 = vld [vmem:[#allocation2 + $0x10e0] sm:$0xff]
        %v953 = vld [vmem:[#allocation2 + $0x10e8] sm:$0xff]
        %v954 = vld [vmem:[#allocation2 + $0x10f0] sm:$0xff]
        %v955 = vld [vmem:[#allocation2 + $0x10f8] sm:$0xff]
        %v956 = vld [vmem:[#allocation2 + $0x1100] sm:$0xff]
        %v957 = vld [vmem:[#allocation2 + $0x1108] sm:$0xff]
        %v958 = vld [vmem:[#allocation2 + $0x1110] sm:$0xff]
        %v959 = vld [vmem:[#allocation2 + $0x1118] sm:$0xff]
        %v960 = vld [vmem:[#allocation2 + $0x1120] sm:$0xff]
        %v961 = vld [vmem:[#allocation2 + $0x1128] sm:$0xff]
        %v962 = vld [vmem:[#allocation2 + $0x1130] sm:$0xff]
        %v963 = vld [vmem:[#allocation2 + $0x1138] sm:$0xff]
        %v964 = vld [vmem:[#allocation2 + $0x1140] sm:$0xff]
        %v965 = vld [vmem:[#allocation2 + $0x1148] sm:$0xff]
        %v966 = vld [vmem:[#allocation2 + $0x1150] sm:$0xff]
        %v967 = vld [vmem:[#allocation2 + $0x1158] sm:$0xff]
        %v968 = vld [vmem:[#allocation2 + $0x1160] sm:$0xff]
        %v969 = vld [vmem:[#allocation2 + $0x1168] sm:$0xff]
        %v970 = vld [vmem:[#allocation2 + $0x1170] sm:$0xff]
        %v971 = vld [vmem:[#allocation2 + $0x1178] sm:$0xff]
        %v972 = vld [vmem:[#allocation2 + $0x1180] sm:$0xff]
        %v973 = vld [vmem:[#allocation2 + $0x1188] sm:$0xff]
        %v974 = vld [vmem:[#allocation2 + $0x1190] sm:$0xff]
        %v975 = vld [vmem:[#allocation2 + $0x1198] sm:$0xff]
        %v976 = vld [vmem:[#allocation2 + $0x11a0] sm:$0xff]
        %v977 = vld [vmem:[#allocation2 + $0x11a8] sm:$0xff]
        %v978 = vld [vmem:[#allocation2 + $0x11b0] sm:$0xff]
        %v979 = vld [vmem:[#allocation2 + $0x11b8] sm:$0xff]
        %v980 = vld [vmem:[#allocation2 + $0x11c0] sm:$0xff]
        %v981 = vld [vmem:[#allocation2 + $0x11c8] sm:$0xff]
        %v982 = vld [vmem:[#allocation2 + $0x11d0] sm:$0xff]
        %v983 = vld [vmem:[#allocation2 + $0x11d8] sm:$0xff]
        %v984 = vld [vmem:[#allocation2 + $0x11e0] sm:$0xff]
        %v985 = vld [vmem:[#allocation2 + $0x11e8] sm:$0xff]
        %v986 = vld [vmem:[#allocation2 + $0x11f0] sm:$0xff]
        %v987 = vld [vmem:[#allocation2 + $0x11f8] sm:$0xff]
        %v990 = vrot.slane %v410, 1
        %v991 = vrot.slane %v411, 1
        %vm993 = vcmask 130048
        %v994 = vsel %vm993, %v991, 0
        %996 = vmatprep.subr.mxu0 %v701
        %997 = vmatpush1.msra.mxu0 %v700
        %998 = vmatprep.subr.mxu0 %v717
        %999 = vmatpush1.msra.mxu0 %v716
        %1000 = vmatprep.subr.mxu0 %v733
        %1001 = vmatpush1.msra.mxu0 %v732
        %1002 = vmatprep.subr.mxu0 %v749
        %1003 = vmatpush1.msra.mxu0 %v748
        %1004 = vmatprep.subr.mxu0 %v765
        %1005 = vmatpush1.msra.mxu0 %v764
        %1006 = vmatprep.subr.mxu0 %v781
        %1007 = vmatpush1.msra.mxu0 %v780
        %1008 = vmatprep.subr.mxu0 %v797
        %1009 = vmatpush1.msra.mxu0 %v796
        %1010 = vmatprep.subr.mxu0 %v813
        %1011 = vmatpush1.msra.mxu0 %v812
        %1012 = vmatprep.subr.mxu0 %v829
        %1013 = vmatpush1.msra.mxu0 %v828
        %1014 = vmatprep.subr.mxu0 %v845
        %1015 = vmatpush1.msra.mxu0 %v844
        %1016 = vmatprep.subr.mxu0 %v861
        %1017 = vmatpush1.msra.mxu0 %v860
        %1018 = vmatprep.subr.mxu0 %v877
        %1019 = vmatpush1.msra.mxu0 %v876
        %1020 = vmatprep.subr.mxu0 %v893
        %1021 = vmatpush1.msra.mxu0 %v892
        %1022 = vmatprep.subr.mxu0 %v909
        %1023 = vmatpush1.msra.mxu0 %v908
        %1024 = vmatprep.subr.mxu0 %v925
        %1025 = vmatpush1.msra.mxu0 %v924
        %1026 = vmatprep.subr.mxu0 %v941
        %1027 = vmatpush1.msra.mxu0 %v940
        %1028 = vmatprep.subr.mxu0 %v957
        %1029 = vmatpush1.msra.mxu0 %v956
        %1030 = vmatprep.subr.mxu0 %v973
        %1031 = vmatpush1.msra.mxu0 %v972
        %1032 = vmatprep.subr.mxu0 0.0
        %1033 = vmatpush1.msra.mxu0 0.0
        %1034 = vmatprep.subr.mxu0 0.0
        %1035 = vmatpush1.msra.mxu0 0.0
        %1036 = vmatprep.subr.mxu0 0.0
        %1037 = vmatpush1.msra.mxu0 0.0
        %1038 = vmatprep.subr.mxu0 0.0
        %1039 = vmatpush1.msra.mxu0 0.0
        %1040 = vmatprep.subr.mxu0 0.0
        %1041 = vmatpush1.msra.mxu0 0.0
        %1042 = vmatprep.subr.mxu0 0.0
        %1043 = vmatpush1.msra.mxu0 0.0
        %1044 = vmatprep.subr.mxu0 0.0
        %1045 = vmatpush1.msra.mxu0 0.0
        %1046 = vmatprep.subr.mxu0 0.0
        %1047 = vmatpush1.msra.mxu0 0.0
        %1048 = vmatprep.subr.mxu0 0.0
        %1049 = vmatpush1.msra.mxu0 0.0
        %1050 = vmatprep.subr.mxu0 0.0
        %1051 = vmatpush1.msra.mxu0 0.0
        %1052 = vmatprep.subr.mxu0 0.0
        %1053 = vmatpush1.msra.mxu0 0.0
        %1054 = vmatprep.subr.mxu0 0.0
        %1055 = vmatpush1.msra.mxu0 0.0
        %1056 = vmatprep.subr.mxu0 0.0
        %1057 = vmatpush1.msra.mxu0 0.0
        %1058 = vmatprep.subr.mxu0 0.0
        %1059 = vmatpush1.msra.mxu0 0.0
        %1060 = vmatprep.mubr.f32.mxu0 %v994
        %1061 = vmatmul.mubr.f32.gmra.mrb[0].mxu0 %v990
        %v1062 = vpop.f32.mrb[0].mxu0
        %v1063 = vadd.f32 0.0, %v1062
        %v1064 = vpop.f32.mrb[0].mxu0
        %v1065 = vadd.f32 0.0, %v1064
        %1066 = vdwg.mxu0
        %1067 = vmatprep.subr.mxu0 %v703
        %1068 = vmatpush1.msra.mxu0 %v702
        %1069 = vmatprep.subr.mxu0 %v719
        %1070 = vmatpush1.msra.mxu0 %v718
        %1071 = vmatprep.subr.mxu0 %v735
        %1072 = vmatpush1.msra.mxu0 %v734
        %1073 = vmatprep.subr.mxu0 %v751
        %1074 = vmatpush1.msra.mxu0 %v750
        %1075 = vmatprep.subr.mxu0 %v767
        %1076 = vmatpush1.msra.mxu0 %v766
        %1077 = vmatprep.subr.mxu0 %v783
        %1078 = vmatpush1.msra.mxu0 %v782
        %1079 = vmatprep.subr.mxu0 %v799
        %1080 = vmatpush1.msra.mxu0 %v798
        %1081 = vmatprep.subr.mxu0 %v815
        %1082 = vmatpush1.msra.mxu0 %v814
        %1083 = vmatprep.subr.mxu0 %v831
        %1084 = vmatpush1.msra.mxu0 %v830
        %1085 = vmatprep.subr.mxu0 %v847
        %1086 = vmatpush1.msra.mxu0 %v846
        %1087 = vmatprep.subr.mxu0 %v863
        %1088 = vmatpush1.msra.mxu0 %v862
        %1089 = vmatprep.subr.mxu0 %v879
        %1090 = vmatpush1.msra.mxu0 %v878
        %1091 = vmatprep.subr.mxu0 %v895
        %1092 = vmatpush1.msra.mxu0 %v894
        %1093 = vmatprep.subr.mxu0 %v911
        %1094 = vmatpush1.msra.mxu0 %v910
        %1095 = vmatprep.subr.mxu0 %v927
        %1096 = vmatpush1.msra.mxu0 %v926
        %1097 = vmatprep.subr.mxu0 %v943
        %1098 = vmatpush1.msra.mxu0 %v942
        %1099 = vmatprep.subr.mxu0 %v959
        %1100 = vmatpush1.msra.mxu0 %v958
        %1101 = vmatprep.subr.mxu0 %v975
        %1102 = vmatpush1.msra.mxu0 %v974
        %1103 = vmatprep.subr.mxu0 0.0
        %1104 = vmatpush1.msra.mxu0 0.0
        %1105 = vmatprep.subr.mxu0 0.0
        %1106 = vmatpush1.msra.mxu0 0.0
        %1107 = vmatprep.subr.mxu0 0.0
        %1108 = vmatpush1.msra.mxu0 0.0
        %1109 = vmatprep.subr.mxu0 0.0
        %1110 = vmatpush1.msra.mxu0 0.0
        %1111 = vmatprep.subr.mxu0 0.0
        %1112 = vmatpush1.msra.mxu0 0.0
        %1113 = vmatprep.subr.mxu0 0.0
        %1114 = vmatpush1.msra.mxu0 0.0
        %1115 = vmatprep.subr.mxu0 0.0
        %1116 = vmatpush1.msra.mxu0 0.0
        %1117 = vmatprep.subr.mxu0 0.0
        %1118 = vmatpush1.msra.mxu0 0.0
        %1119 = vmatprep.subr.mxu0 0.0
        %1120 = vmatpush1.msra.mxu0 0.0
        %1121 = vmatprep.subr.mxu0 0.0
        %1122 = vmatpush1.msra.mxu0 0.0
        %1123 = vmatprep.subr.mxu0 0.0
        %1124 = vmatpush1.msra.mxu0 0.0
        %1125 = vmatprep.subr.mxu0 0.0
        %1126 = vmatpush1.msra.mxu0 0.0
        %1127 = vmatprep.subr.mxu0 0.0
        %1128 = vmatpush1.msra.mxu0 0.0
        %1129 = vmatprep.subr.mxu0 0.0
        %1130 = vmatpush1.msra.mxu0 0.0
        %1131 = vmatprep.mubr.f32.mxu0 %v994
        %1132 = vmatmul.mubr.f32.gmra.mrb[0].mxu0 %v990
        %v1133 = vpop.f32.mrb[0].mxu0
        %v1134 = vadd.f32 0.0, %v1133
        %v1135 = vpop.f32.mrb[0].mxu0
        %v1136 = vadd.f32 0.0, %v1135
        %1137 = vdwg.mxu0
        %1138 = vmatprep.subr.mxu0 %v705
        %1139 = vmatpush1.msra.mxu0 %v704
        %1140 = vmatprep.subr.mxu0 %v721
        %1141 = vmatpush1.msra.mxu0 %v720
        %1142 = vmatprep.subr.mxu0 %v737
        %1143 = vmatpush1.msra.mxu0 %v736
        %1144 = vmatprep.subr.mxu0 %v753
        %1145 = vmatpush1.msra.mxu0 %v752
        %1146 = vmatprep.subr.mxu0 %v769
        %1147 = vmatpush1.msra.mxu0 %v768
        %1148 = vmatprep.subr.mxu0 %v785
        %1149 = vmatpush1.msra.mxu0 %v784
        %1150 = vmatprep.subr.mxu0 %v801
        %1151 = vmatpush1.msra.mxu0 %v800
        %1152 = vmatprep.subr.mxu0 %v817
        %1153 = vmatpush1.msra.mxu0 %v816
        %1154 = vmatprep.subr.mxu0 %v833
        %1155 = vmatpush1.msra.mxu0 %v832
        %1156 = vmatprep.subr.mxu0 %v849
        %1157 = vmatpush1.msra.mxu0 %v848
        %1158 = vmatprep.subr.mxu0 %v865
        %1159 = vmatpush1.msra.mxu0 %v864
        %1160 = vmatprep.subr.mxu0 %v881
        %1161 = vmatpush1.msra.mxu0 %v880
        %1162 = vmatprep.subr.mxu0 %v897
        %1163 = vmatpush1.msra.mxu0 %v896
        %1164 = vmatprep.subr.mxu0 %v913
        %1165 = vmatpush1.msra.mxu0 %v912
        %1166 = vmatprep.subr.mxu0 %v929
        %1167 = vmatpush1.msra.mxu0 %v928
        %1168 = vmatprep.subr.mxu0 %v945
        %1169 = vmatpush1.msra.mxu0 %v944
        %1170 = vmatprep.subr.mxu0 %v961
        %1171 = vmatpush1.msra.mxu0 %v960
        %1172 = vmatprep.subr.mxu0 %v977
        %1173 = vmatpush1.msra.mxu0 %v976
        %1174 = vmatprep.subr.mxu0 0.0
        %1175 = vmatpush1.msra.mxu0 0.0
        %1176 = vmatprep.subr.mxu0 0.0
        %1177 = vmatpush1.msra.mxu0 0.0
        %1178 = vmatprep.subr.mxu0 0.0
        %1179 = vmatpush1.msra.mxu0 0.0
        %1180 = vmatprep.subr.mxu0 0.0
        %1181 = vmatpush1.msra.mxu0 0.0
        %1182 = vmatprep.subr.mxu0 0.0
        %1183 = vmatpush1.msra.mxu0 0.0
        %1184 = vmatprep.subr.mxu0 0.0
        %1185 = vmatpush1.msra.mxu0 0.0
        %1186 = vmatprep.subr.mxu0 0.0
        %1187 = vmatpush1.msra.mxu0 0.0
        %1188 = vmatprep.subr.mxu0 0.0
        %1189 = vmatpush1.msra.mxu0 0.0
        %1190 = vmatprep.subr.mxu0 0.0
        %1191 = vmatpush1.msra.mxu0 0.0
        %1192 = vmatprep.subr.mxu0 0.0
        %1193 = vmatpush1.msra.mxu0 0.0
        %1194 = vmatprep.subr.mxu0 0.0
        %1195 = vmatpush1.msra.mxu0 0.0
        %1196 = vmatprep.subr.mxu0 0.0
        %1197 = vmatpush1.msra.mxu0 0.0
        %1198 = vmatprep.subr.mxu0 0.0
        %1199 = vmatpush1.msra.mxu0 0.0
        %1200 = vmatprep.subr.mxu0 0.0
        %1201 = vmatpush1.msra.mxu0 0.0
        %1202 = vmatprep.mubr.f32.mxu0 %v994
        %1203 = vmatmul.mubr.f32.gmra.mrb[0].mxu0 %v990
        %v1204 = vpop.f32.mrb[0].mxu0
        %v1205 = vadd.f32 0.0, %v1204
        %v1206 = vpop.f32.mrb[0].mxu0
        %v1207 = vadd.f32 0.0, %v1206
        %1208 = vdwg.mxu0
        %1209 = vmatprep.subr.mxu0 %v707
        %1210 = vmatpush1.msra.mxu0 %v706
        %1211 = vmatprep.subr.mxu0 %v723
        %1212 = vmatpush1.msra.mxu0 %v722
        %1213 = vmatprep.subr.mxu0 %v739
        %1214 = vmatpush1.msra.mxu0 %v738
        %1215 = vmatprep.subr.mxu0 %v755
        %1216 = vmatpush1.msra.mxu0 %v754
        %1217 = vmatprep.subr.mxu0 %v771
        %1218 = vmatpush1.msra.mxu0 %v770
        %1219 = vmatprep.subr.mxu0 %v787
        %1220 = vmatpush1.msra.mxu0 %v786
        %1221 = vmatprep.subr.mxu0 %v803
        %1222 = vmatpush1.msra.mxu0 %v802
        %1223 = vmatprep.subr.mxu0 %v819
        %1224 = vmatpush1.msra.mxu0 %v818
        %1225 = vmatprep.subr.mxu0 %v835
        %1226 = vmatpush1.msra.mxu0 %v834
        %1227 = vmatprep.subr.mxu0 %v851
        %1228 = vmatpush1.msra.mxu0 %v850
        %1229 = vmatprep.subr.mxu0 %v867
        %1230 = vmatpush1.msra.mxu0 %v866
        %1231 = vmatprep.subr.mxu0 %v883
        %1232 = vmatpush1.msra.mxu0 %v882
        %1233 = vmatprep.subr.mxu0 %v899
        %1234 = vmatpush1.msra.mxu0 %v898
        %1235 = vmatprep.subr.mxu0 %v915
        %1236 = vmatpush1.msra.mxu0 %v914
        %1237 = vmatprep.subr.mxu0 %v931
        %1238 = vmatpush1.msra.mxu0 %v930
        %1239 = vmatprep.subr.mxu0 %v947
        %1240 = vmatpush1.msra.mxu0 %v946
        %1241 = vmatprep.subr.mxu0 %v963
        %1242 = vmatpush1.msra.mxu0 %v962
        %1243 = vmatprep.subr.mxu0 %v979
        %1244 = vmatpush1.msra.mxu0 %v978
        %1245 = vmatprep.subr.mxu0 0.0
        %1246 = vmatpush1.msra.mxu0 0.0
        %1247 = vmatprep.subr.mxu0 0.0
        %1248 = vmatpush1.msra.mxu0 0.0
        %1249 = vmatprep.subr.mxu0 0.0
        %1250 = vmatpush1.msra.mxu0 0.0
        %1251 = vmatprep.subr.mxu0 0.0
        %1252 = vmatpush1.msra.mxu0 0.0
        %1253 = vmatprep.subr.mxu0 0.0
        %1254 = vmatpush1.msra.mxu0 0.0
        %1255 = vmatprep.subr.mxu0 0.0
        %1256 = vmatpush1.msra.mxu0 0.0
        %1257 = vmatprep.subr.mxu0 0.0
        %1258 = vmatpush1.msra.mxu0 0.0
        %1259 = vmatprep.subr.mxu0 0.0
        %1260 = vmatpush1.msra.mxu0 0.0
        %1261 = vmatprep.subr.mxu0 0.0
        %1262 = vmatpush1.msra.mxu0 0.0
        %1263 = vmatprep.subr.mxu0 0.0
        %1264 = vmatpush1.msra.mxu0 0.0
        %1265 = vmatprep.subr.mxu0 0.0
        %1266 = vmatpush1.msra.mxu0 0.0
        %1267 = vmatprep.subr.mxu0 0.0
        %1268 = vmatpush1.msra.mxu0 0.0
        %1269 = vmatprep.subr.mxu0 0.0
        %1270 = vmatpush1.msra.mxu0 0.0
        %1271 = vmatprep.subr.mxu0 0.0
        %1272 = vmatpush1.msra.mxu0 0.0
        %1273 = vmatprep.mubr.f32.mxu0 %v994
        %1274 = vmatmul.mubr.f32.gmra.mrb[0].mxu0 %v990
        %v1275 = vpop.f32.mrb[0].mxu0
        %v1276 = vadd.f32 0.0, %v1275
        %v1277 = vpop.f32.mrb[0].mxu0
        %v1278 = vadd.f32 0.0, %v1277
        %1279 = vdwg.mxu0
        %1280 = vmatprep.subr.mxu0 %v709
        %1281 = vmatpush1.msra.mxu0 %v708
        %1282 = vmatprep.subr.mxu0 %v725
        %1283 = vmatpush1.msra.mxu0 %v724
        %1284 = vmatprep.subr.mxu0 %v741
        %1285 = vmatpush1.msra.mxu0 %v740
        %1286 = vmatprep.subr.mxu0 %v757
        %1287 = vmatpush1.msra.mxu0 %v756
        %1288 = vmatprep.subr.mxu0 %v773
        %1289 = vmatpush1.msra.mxu0 %v772
        %1290 = vmatprep.subr.mxu0 %v789
        %1291 = vmatpush1.msra.mxu0 %v788
        %1292 = vmatprep.subr.mxu0 %v805
        %1293 = vmatpush1.msra.mxu0 %v804
        %1294 = vmatprep.subr.mxu0 %v821
        %1295 = vmatpush1.msra.mxu0 %v820
        %1296 = vmatprep.subr.mxu0 %v837
        %1297 = vmatpush1.msra.mxu0 %v836
        %1298 = vmatprep.subr.mxu0 %v853
        %1299 = vmatpush1.msra.mxu0 %v852
        %1300 = vmatprep.subr.mxu0 %v869
        %1301 = vmatpush1.msra.mxu0 %v868
        %1302 = vmatprep.subr.mxu0 %v885
        %1303 = vmatpush1.msra.mxu0 %v884
        %1304 = vmatprep.subr.mxu0 %v901
        %1305 = vmatpush1.msra.mxu0 %v900
        %1306 = vmatprep.subr.mxu0 %v917
        %1307 = vmatpush1.msra.mxu0 %v916
        %1308 = vmatprep.subr.mxu0 %v933
        %1309 = vmatpush1.msra.mxu0 %v932
        %1310 = vmatprep.subr.mxu0 %v949
        %1311 = vmatpush1.msra.mxu0 %v948
        %1312 = vmatprep.subr.mxu0 %v965
        %1313 = vmatpush1.msra.mxu0 %v964
        %1314 = vmatprep.subr.mxu0 %v981
        %1315 = vmatpush1.msra.mxu0 %v980
        %1316 = vmatprep.subr.mxu0 0.0
        %1317 = vmatpush1.msra.mxu0 0.0
        %1318 = vmatprep.subr.mxu0 0.0
        %1319 = vmatpush1.msra.mxu0 0.0
        %1320 = vmatprep.subr.mxu0 0.0
        %1321 = vmatpush1.msra.mxu0 0.0
        %1322 = vmatprep.subr.mxu0 0.0
        %1323 = vmatpush1.msra.mxu0 0.0
        %1324 = vmatprep.subr.mxu0 0.0
        %1325 = vmatpush1.msra.mxu0 0.0
        %1326 = vmatprep.subr.mxu0 0.0
        %1327 = vmatpush1.msra.mxu0 0.0
        %1328 = vmatprep.subr.mxu0 0.0
        %1329 = vmatpush1.msra.mxu0 0.0
        %1330 = vmatprep.subr.mxu0 0.0
        %1331 = vmatpush1.msra.mxu0 0.0
        %1332 = vmatprep.subr.mxu0 0.0
        %1333 = vmatpush1.msra.mxu0 0.0
        %1334 = vmatprep.subr.mxu0 0.0
        %1335 = vmatpush1.msra.mxu0 0.0
        %1336 = vmatprep.subr.mxu0 0.0
        %1337 = vmatpush1.msra.mxu0 0.0
        %1338 = vmatprep.subr.mxu0 0.0
        %1339 = vmatpush1.msra.mxu0 0.0
        %1340 = vmatprep.subr.mxu0 0.0
        %1341 = vmatpush1.msra.mxu0 0.0
        %1342 = vmatprep.subr.mxu0 0.0
        %1343 = vmatpush1.msra.mxu0 0.0
        %1344 = vmatprep.mubr.f32.mxu0 %v994
        %1345 = vmatmul.mubr.f32.gmra.mrb[0].mxu0 %v990
        %v1346 = vpop.f32.mrb[0].mxu0
        %v1347 = vadd.f32 0.0, %v1346
        %v1348 = vpop.f32.mrb[0].mxu0
        %v1349 = vadd.f32 0.0, %v1348
        %1350 = vdwg.mxu0
        %1351 = vmatprep.subr.mxu0 %v711
        %1352 = vmatpush1.msra.mxu0 %v710
        %1353 = vmatprep.subr.mxu0 %v727
        %1354 = vmatpush1.msra.mxu0 %v726
        %1355 = vmatprep.subr.mxu0 %v743
        %1356 = vmatpush1.msra.mxu0 %v742
        %1357 = vmatprep.subr.mxu0 %v759
        %1358 = vmatpush1.msra.mxu0 %v758
        %1359 = vmatprep.subr.mxu0 %v775
        %1360 = vmatpush1.msra.mxu0 %v774
        %1361 = vmatprep.subr.mxu0 %v791
        %1362 = vmatpush1.msra.mxu0 %v790
        %1363 = vmatprep.subr.mxu0 %v807
        %1364 = vmatpush1.msra.mxu0 %v806
        %1365 = vmatprep.subr.mxu0 %v823
        %1366 = vmatpush1.msra.mxu0 %v822
        %1367 = vmatprep.subr.mxu0 %v839
        %1368 = vmatpush1.msra.mxu0 %v838
        %1369 = vmatprep.subr.mxu0 %v855
        %1370 = vmatpush1.msra.mxu0 %v854
        %1371 = vmatprep.subr.mxu0 %v871
        %1372 = vmatpush1.msra.mxu0 %v870
        %1373 = vmatprep.subr.mxu0 %v887
        %1374 = vmatpush1.msra.mxu0 %v886
        %1375 = vmatprep.subr.mxu0 %v903
        %1376 = vmatpush1.msra.mxu0 %v902
        %1377 = vmatprep.subr.mxu0 %v919
        %1378 = vmatpush1.msra.mxu0 %v918
        %1379 = vmatprep.subr.mxu0 %v935
        %1380 = vmatpush1.msra.mxu0 %v934
        %1381 = vmatprep.subr.mxu0 %v951
        %1382 = vmatpush1.msra.mxu0 %v950
        %1383 = vmatprep.subr.mxu0 %v967
        %1384 = vmatpush1.msra.mxu0 %v966
        %1385 = vmatprep.subr.mxu0 %v983
        %1386 = vmatpush1.msra.mxu0 %v982
        %1387 = vmatprep.subr.mxu0 0.0
        %1388 = vmatpush1.msra.mxu0 0.0
        %1389 = vmatprep.subr.mxu0 0.0
        %1390 = vmatpush1.msra.mxu0 0.0
        %1391 = vmatprep.subr.mxu0 0.0
        %1392 = vmatpush1.msra.mxu0 0.0
        %1393 = vmatprep.subr.mxu0 0.0
        %1394 = vmatpush1.msra.mxu0 0.0
        %1395 = vmatprep.subr.mxu0 0.0
        %1396 = vmatpush1.msra.mxu0 0.0
        %1397 = vmatprep.subr.mxu0 0.0
        %1398 = vmatpush1.msra.mxu0 0.0
        %1399 = vmatprep.subr.mxu0 0.0
        %1400 = vmatpush1.msra.mxu0 0.0
        %1401 = vmatprep.subr.mxu0 0.0
        %1402 = vmatpush1.msra.mxu0 0.0
        %1403 = vmatprep.subr.mxu0 0.0
        %1404 = vmatpush1.msra.mxu0 0.0
        %1405 = vmatprep.subr.mxu0 0.0
        %1406 = vmatpush1.msra.mxu0 0.0
        %1407 = vmatprep.subr.mxu0 0.0
        %1408 = vmatpush1.msra.mxu0 0.0
        %1409 = vmatprep.subr.mxu0 0.0
        %1410 = vmatpush1.msra.mxu0 0.0
        %1411 = vmatprep.subr.mxu0 0.0
        %1412 = vmatpush1.msra.mxu0 0.0
        %1413 = vmatprep.subr.mxu0 0.0
        %1414 = vmatpush1.msra.mxu0 0.0
        %1415 = vmatprep.mubr.f32.mxu0 %v994
        %1416 = vmatmul.mubr.f32.gmra.mrb[0].mxu0 %v990
        %v1417 = vpop.f32.mrb[0].mxu0
        %v1418 = vadd.f32 0.0, %v1417
        %v1419 = vpop.f32.mrb[0].mxu0
        %v1420 = vadd.f32 0.0, %v1419
        %1421 = vdwg.mxu0
        %1422 = vmatprep.subr.mxu0 %v713
        %1423 = vmatpush1.msra.mxu0 %v712
        %1424 = vmatprep.subr.mxu0 %v729
        %1425 = vmatpush1.msra.mxu0 %v728
        %1426 = vmatprep.subr.mxu0 %v745
        %1427 = vmatpush1.msra.mxu0 %v744
        %1428 = vmatprep.subr.mxu0 %v761
        %1429 = vmatpush1.msra.mxu0 %v760
        %1430 = vmatprep.subr.mxu0 %v777
        %1431 = vmatpush1.msra.mxu0 %v776
        %1432 = vmatprep.subr.mxu0 %v793
        %1433 = vmatpush1.msra.mxu0 %v792
        %1434 = vmatprep.subr.mxu0 %v809
        %1435 = vmatpush1.msra.mxu0 %v808
        %1436 = vmatprep.subr.mxu0 %v825
        %1437 = vmatpush1.msra.mxu0 %v824
        %1438 = vmatprep.subr.mxu0 %v841
        %1439 = vmatpush1.msra.mxu0 %v840
        %1440 = vmatprep.subr.mxu0 %v857
        %1441 = vmatpush1.msra.mxu0 %v856
        %1442 = vmatprep.subr.mxu0 %v873
        %1443 = vmatpush1.msra.mxu0 %v872
        %1444 = vmatprep.subr.mxu0 %v889
        %1445 = vmatpush1.msra.mxu0 %v888
        %1446 = vmatprep.subr.mxu0 %v905
        %1447 = vmatpush1.msra.mxu0 %v904
        %1448 = vmatprep.subr.mxu0 %v921
        %1449 = vmatpush1.msra.mxu0 %v920
        %1450 = vmatprep.subr.mxu0 %v937
        %1451 = vmatpush1.msra.mxu0 %v936
        %1452 = vmatprep.subr.mxu0 %v953
        %1453 = vmatpush1.msra.mxu0 %v952
        %1454 = vmatprep.subr.mxu0 %v969
        %1455 = vmatpush1.msra.mxu0 %v968
        %1456 = vmatprep.subr.mxu0 %v985
        %1457 = vmatpush1.msra.mxu0 %v984
        %1458 = vmatprep.subr.mxu0 0.0
        %1459 = vmatpush1.msra.mxu0 0.0
        %1460 = vmatprep.subr.mxu0 0.0
        %1461 = vmatpush1.msra.mxu0 0.0
        %1462 = vmatprep.subr.mxu0 0.0
        %1463 = vmatpush1.msra.mxu0 0.0
        %1464 = vmatprep.subr.mxu0 0.0
        %1465 = vmatpush1.msra.mxu0 0.0
        %1466 = vmatprep.subr.mxu0 0.0
        %1467 = vmatpush1.msra.mxu0 0.0
        %1468 = vmatprep.subr.mxu0 0.0
        %1469 = vmatpush1.msra.mxu0 0.0
        %1470 = vmatprep.subr.mxu0 0.0
        %1471 = vmatpush1.msra.mxu0 0.0
        %1472 = vmatprep.subr.mxu0 0.0
        %1473 = vmatpush1.msra.mxu0 0.0
        %1474 = vmatprep.subr.mxu0 0.0
        %1475 = vmatpush1.msra.mxu0 0.0
        %1476 = vmatprep.subr.mxu0 0.0
        %1477 = vmatpush1.msra.mxu0 0.0
        %1478 = vmatprep.subr.mxu0 0.0
        %1479 = vmatpush1.msra.mxu0 0.0
        %1480 = vmatprep.subr.mxu0 0.0
        %1481 = vmatpush1.msra.mxu0 0.0
        %1482 = vmatprep.subr.mxu0 0.0
        %1483 = vmatpush1.msra.mxu0 0.0
        %1484 = vmatprep.subr.mxu0 0.0
        %1485 = vmatpush1.msra.mxu0 0.0
        %1486 = vmatprep.mubr.f32.mxu0 %v994
        %1487 = vmatmul.mubr.f32.gmra.mrb[0].mxu0 %v990
        %v1488 = vpop.f32.mrb[0].mxu0
        %v1489 = vadd.f32 0.0, %v1488
        %v1490 = vpop.f32.mrb[0].mxu0
        %v1491 = vadd.f32 0.0, %v1490
        %1492 = vdwg.mxu0
        %1493 = vmatprep.subr.mxu0 %v715
        %1494 = vmatpush1.msra.mxu0 %v714
        %1495 = vmatprep.subr.mxu0 %v731
        %1496 = vmatpush1.msra.mxu0 %v730
        %1497 = vmatprep.subr.mxu0 %v747
        %1498 = vmatpush1.msra.mxu0 %v746
        %1499 = vmatprep.subr.mxu0 %v763
        %1500 = vmatpush1.msra.mxu0 %v762
        %1501 = vmatprep.subr.mxu0 %v779
        %1502 = vmatpush1.msra.mxu0 %v778
        %1503 = vmatprep.subr.mxu0 %v795
        %1504 = vmatpush1.msra.mxu0 %v794
        %1505 = vmatprep.subr.mxu0 %v811
        %1506 = vmatpush1.msra.mxu0 %v810
        %1507 = vmatprep.subr.mxu0 %v827
        %1508 = vmatpush1.msra.mxu0 %v826
        %1509 = vmatprep.subr.mxu0 %v843
        %1510 = vmatpush1.msra.mxu0 %v842
        %1511 = vmatprep.subr.mxu0 %v859
        %1512 = vmatpush1.msra.mxu0 %v858
        %1513 = vmatprep.subr.mxu0 %v875
        %1514 = vmatpush1.msra.mxu0 %v874
        %1515 = vmatprep.subr.mxu0 %v891
        %1516 = vmatpush1.msra.mxu0 %v890
        %1517 = vmatprep.subr.mxu0 %v907
        %1518 = vmatpush1.msra.mxu0 %v906
        %1519 = vmatprep.subr.mxu0 %v923
        %1520 = vmatpush1.msra.mxu0 %v922
        %1521 = vmatprep.subr.mxu0 %v939
        %1522 = vmatpush1.msra.mxu0 %v938
        %1523 = vmatprep.subr.mxu0 %v955
        %1524 = vmatpush1.msra.mxu0 %v954
        %1525 = vmatprep.subr.mxu0 %v971
        %1526 = vmatpush1.msra.mxu0 %v970
        %1527 = vmatprep.subr.mxu0 %v987
        %1528 = vmatpush1.msra.mxu0 %v986
        %1529 = vmatprep.subr.mxu0 0.0
        %1530 = vmatpush1.msra.mxu0 0.0
        %1531 = vmatprep.subr.mxu0 0.0
        %1532 = vmatpush1.msra.mxu0 0.0
        %1533 = vmatprep.subr.mxu0 0.0
        %1534 = vmatpush1.msra.mxu0 0.0
        %1535 = vmatprep.subr.mxu0 0.0
        %1536 = vmatpush1.msra.mxu0 0.0
        %1537 = vmatprep.subr.mxu0 0.0
        %1538 = vmatpush1.msra.mxu0 0.0
        %1539 = vmatprep.subr.mxu0 0.0
        %1540 = vmatpush1.msra.mxu0 0.0
        %1541 = vmatprep.subr.mxu0 0.0
        %1542 = vmatpush1.msra.mxu0 0.0
        %1543 = vmatprep.subr.mxu0 0.0
        %1544 = vmatpush1.msra.mxu0 0.0
        %1545 = vmatprep.subr.mxu0 0.0
        %1546 = vmatpush1.msra.mxu0 0.0
        %1547 = vmatprep.subr.mxu0 0.0
        %1548 = vmatpush1.msra.mxu0 0.0
        %1549 = vmatprep.subr.mxu0 0.0
        %1550 = vmatpush1.msra.mxu0 0.0
        %1551 = vmatprep.subr.mxu0 0.0
        %1552 = vmatpush1.msra.mxu0 0.0
        %1553 = vmatprep.subr.mxu0 0.0
        %1554 = vmatpush1.msra.mxu0 0.0
        %1555 = vmatprep.subr.mxu0 0.0
        %1556 = vmatpush1.msra.mxu0 0.0
        %1557 = vmatprep.mubr.f32.mxu0 %v994
        %1558 = vmatmul.mubr.f32.gmra.mrb[0].mxu0 %v990
        %v1559 = vpop.f32.mrb[0].mxu0
        %v1560 = vadd.f32 0.0, %v1559
        %v1561 = vpop.f32.mrb[0].mxu0
        %v1562 = vadd.f32 0.0, %v1561
        %1563 = vdwg.mxu0
        %v1564 = vsel %vm993, %v411, 0
        %1566 = vmatprep.subr.mxu0 %v413
        %1567 = vmatpush1.msra.mxu0 %v412
        %1568 = vmatprep.subr.mxu0 %v429
        %1569 = vmatpush1.msra.mxu0 %v428
        %1570 = vmatprep.subr.mxu0 %v445
        %1571 = vmatpush1.msra.mxu0 %v444
        %1572 = vmatprep.subr.mxu0 %v461
        %1573 = vmatpush1.msra.mxu0 %v460
        %1574 = vmatprep.subr.mxu0 %v477
        %1575 = vmatpush1.msra.mxu0 %v476
        %1576 = vmatprep.subr.mxu0 %v493
        %1577 = vmatpush1.msra.mxu0 %v492
        %1578 = vmatprep.subr.mxu0 %v509
        %1579 = vmatpush1.msra.mxu0 %v508
        %1580 = vmatprep.subr.mxu0 %v525
        %1581 = vmatpush1.msra.mxu0 %v524
        %1582 = vmatprep.subr.mxu0 %v541
        %1583 = vmatpush1.msra.mxu0 %v540
        %1584 = vmatprep.subr.mxu0 %v557
        %1585 = vmatpush1.msra.mxu0 %v556
        %1586 = vmatprep.subr.mxu0 %v573
        %1587 = vmatpush1.msra.mxu0 %v572
        %1588 = vmatprep.subr.mxu0 %v589
        %1589 = vmatpush1.msra.mxu0 %v588
        %1590 = vmatprep.subr.mxu0 %v605
        %1591 = vmatpush1.msra.mxu0 %v604
        %1592 = vmatprep.subr.mxu0 %v621
        %1593 = vmatpush1.msra.mxu0 %v620
        %1594 = vmatprep.subr.mxu0 %v637
        %1595 = vmatpush1.msra.mxu0 %v636
        %1596 = vmatprep.subr.mxu0 %v653
        %1597 = vmatpush1.msra.mxu0 %v652
        %1598 = vmatprep.subr.mxu0 %v669
        %1599 = vmatpush1.msra.mxu0 %v668
        %1600 = vmatprep.subr.mxu0 %v685
        %1601 = vmatpush1.msra.mxu0 %v684
        %1602 = vmatprep.subr.mxu0 0.0
        %1603 = vmatpush1.msra.mxu0 0.0
        %1604 = vmatprep.subr.mxu0 0.0
        %1605 = vmatpush1.msra.mxu0 0.0
        %1606 = vmatprep.subr.mxu0 0.0
        %1607 = vmatpush1.msra.mxu0 0.0
        %1608 = vmatprep.subr.mxu0 0.0
        %1609 = vmatpush1.msra.mxu0 0.0
        %1610 = vmatprep.subr.mxu0 0.0
        %1611 = vmatpush1.msra.mxu0 0.0
        %1612 = vmatprep.subr.mxu0 0.0
        %1613 = vmatpush1.msra.mxu0 0.0
        %1614 = vmatprep.subr.mxu0 0.0
        %1615 = vmatpush1.msra.mxu0 0.0
        %1616 = vmatprep.subr.mxu0 0.0
        %1617 = vmatpush1.msra.mxu0 0.0
        %1618 = vmatprep.subr.mxu0 0.0
        %1619 = vmatpush1.msra.mxu0 0.0
        %1620 = vmatprep.subr.mxu0 0.0
        %1621 = vmatpush1.msra.mxu0 0.0
        %1622 = vmatprep.subr.mxu0 0.0
        %1623 = vmatpush1.msra.mxu0 0.0
        %1624 = vmatprep.subr.mxu0 0.0
        %1625 = vmatpush1.msra.mxu0 0.0
        %1626 = vmatprep.subr.mxu0 0.0
        %1627 = vmatpush1.msra.mxu0 0.0
        %1628 = vmatprep.subr.mxu0 0.0
        %1629 = vmatpush1.msra.mxu0 0.0
        %1630 = vmatprep.mubr.f32.mxu0 %v1564
        %1631 = vmatmul.mubr.f32.gmra.mrb[0].mxu0 %v410
        %v1632 = vpop.f32.mrb[0].mxu0
        %v1633 = vadd.f32 %v1063, %v1632
        %v1634 = vpop.f32.mrb[0].mxu0
        %v1635 = vadd.f32 %v1065, %v1634
        %1636 = vdwg.mxu0
        %1637 = vmatprep.subr.mxu0 %v415
        %1638 = vmatpush1.msra.mxu0 %v414
        %1639 = vmatprep.subr.mxu0 %v431
        %1640 = vmatpush1.msra.mxu0 %v430
        %1641 = vmatprep.subr.mxu0 %v447
        %1642 = vmatpush1.msra.mxu0 %v446
        %1643 = vmatprep.subr.mxu0 %v463
        %1644 = vmatpush1.msra.mxu0 %v462
        %1645 = vmatprep.subr.mxu0 %v479
        %1646 = vmatpush1.msra.mxu0 %v478
        %1647 = vmatprep.subr.mxu0 %v495
        %1648 = vmatpush1.msra.mxu0 %v494
        %1649 = vmatprep.subr.mxu0 %v511
        %1650 = vmatpush1.msra.mxu0 %v510
        %1651 = vmatprep.subr.mxu0 %v527
        %1652 = vmatpush1.msra.mxu0 %v526
        %1653 = vmatprep.subr.mxu0 %v543
        %1654 = vmatpush1.msra.mxu0 %v542
        %1655 = vmatprep.subr.mxu0 %v559
        %1656 = vmatpush1.msra.mxu0 %v558
        %1657 = vmatprep.subr.mxu0 %v575
        %1658 = vmatpush1.msra.mxu0 %v574
        %1659 = vmatprep.subr.mxu0 %v591
        %1660 = vmatpush1.msra.mxu0 %v590
        %1661 = vmatprep.subr.mxu0 %v607
        %1662 = vmatpush1.msra.mxu0 %v606
        %1663 = vmatprep.subr.mxu0 %v623
        %1664 = vmatpush1.msra.mxu0 %v622
        %1665 = vmatprep.subr.mxu0 %v639
        %1666 = vmatpush1.msra.mxu0 %v638
        %1667 = vmatprep.subr.mxu0 %v655
        %1668 = vmatpush1.msra.mxu0 %v654
        %1669 = vmatprep.subr.mxu0 %v671
        %1670 = vmatpush1.msra.mxu0 %v670
        %1671 = vmatprep.subr.mxu0 %v687
        %1672 = vmatpush1.msra.mxu0 %v686
        %1673 = vmatprep.subr.mxu0 0.0
        %1674 = vmatpush1.msra.mxu0 0.0
        %1675 = vmatprep.subr.mxu0 0.0
        %1676 = vmatpush1.msra.mxu0 0.0
        %1677 = vmatprep.subr.mxu0 0.0
        %1678 = vmatpush1.msra.mxu0 0.0
        %1679 = vmatprep.subr.mxu0 0.0
        %1680 = vmatpush1.msra.mxu0 0.0
        %1681 = vmatprep.subr.mxu0 0.0
        %1682 = vmatpush1.msra.mxu0 0.0
        %1683 = vmatprep.subr.mxu0 0.0
        %1684 = vmatpush1.msra.mxu0 0.0
        %1685 = vmatprep.subr.mxu0 0.0
        %1686 = vmatpush1.msra.mxu0 0.0
        %1687 = vmatprep.subr.mxu0 0.0
        %1688 = vmatpush1.msra.mxu0 0.0
        %1689 = vmatprep.subr.mxu0 0.0
        %1690 = vmatpush1.msra.mxu0 0.0
        %1691 = vmatprep.subr.mxu0 0.0
        %1692 = vmatpush1.msra.mxu0 0.0
        %1693 = vmatprep.subr.mxu0 0.0
        %1694 = vmatpush1.msra.mxu0 0.0
        %1695 = vmatprep.subr.mxu0 0.0
        %1696 = vmatpush1.msra.mxu0 0.0
        %1697 = vmatprep.subr.mxu0 0.0
        %1698 = vmatpush1.msra.mxu0 0.0
        %1699 = vmatprep.subr.mxu0 0.0
        %1700 = vmatpush1.msra.mxu0 0.0
        %1701 = vmatprep.mubr.f32.mxu0 %v1564
        %1702 = vmatmul.mubr.f32.gmra.mrb[0].mxu0 %v410
        %v1703 = vpop.f32.mrb[0].mxu0
        %v1704 = vadd.f32 %v1134, %v1703
        %v1705 = vpop.f32.mrb[0].mxu0
        %v1706 = vadd.f32 %v1136, %v1705
        %1707 = vdwg.mxu0
        %1708 = vmatprep.subr.mxu0 %v417
        %1709 = vmatpush1.msra.mxu0 %v416
        %1710 = vmatprep.subr.mxu0 %v433
        %1711 = vmatpush1.msra.mxu0 %v432
        %1712 = vmatprep.subr.mxu0 %v449
        %1713 = vmatpush1.msra.mxu0 %v448
        %1714 = vmatprep.subr.mxu0 %v465
        %1715 = vmatpush1.msra.mxu0 %v464
        %1716 = vmatprep.subr.mxu0 %v481
        %1717 = vmatpush1.msra.mxu0 %v480
        %1718 = vmatprep.subr.mxu0 %v497
        %1719 = vmatpush1.msra.mxu0 %v496
        %1720 = vmatprep.subr.mxu0 %v513
        %1721 = vmatpush1.msra.mxu0 %v512
        %1722 = vmatprep.subr.mxu0 %v529
        %1723 = vmatpush1.msra.mxu0 %v528
        %1724 = vmatprep.subr.mxu0 %v545
        %1725 = vmatpush1.msra.mxu0 %v544
        %1726 = vmatprep.subr.mxu0 %v561
        %1727 = vmatpush1.msra.mxu0 %v560
        %1728 = vmatprep.subr.mxu0 %v577
        %1729 = vmatpush1.msra.mxu0 %v576
        %1730 = vmatprep.subr.mxu0 %v593
        %1731 = vmatpush1.msra.mxu0 %v592
        %1732 = vmatprep.subr.mxu0 %v609
        %1733 = vmatpush1.msra.mxu0 %v608
        %1734 = vmatprep.subr.mxu0 %v625
        %1735 = vmatpush1.msra.mxu0 %v624
        %1736 = vmatprep.subr.mxu0 %v641
        %1737 = vmatpush1.msra.mxu0 %v640
        %1738 = vmatprep.subr.mxu0 %v657
        %1739 = vmatpush1.msra.mxu0 %v656
        %1740 = vmatprep.subr.mxu0 %v673
        %1741 = vmatpush1.msra.mxu0 %v672
        %1742 = vmatprep.subr.mxu0 %v689
        %1743 = vmatpush1.msra.mxu0 %v688
        %1744 = vmatprep.subr.mxu0 0.0
        %1745 = vmatpush1.msra.mxu0 0.0
        %1746 = vmatprep.subr.mxu0 0.0
        %1747 = vmatpush1.msra.mxu0 0.0
        %1748 = vmatprep.subr.mxu0 0.0
        %1749 = vmatpush1.msra.mxu0 0.0
        %1750 = vmatprep.subr.mxu0 0.0
        %1751 = vmatpush1.msra.mxu0 0.0
        %1752 = vmatprep.subr.mxu0 0.0
        %1753 = vmatpush1.msra.mxu0 0.0
        %1754 = vmatprep.subr.mxu0 0.0
        %1755 = vmatpush1.msra.mxu0 0.0
        %1756 = vmatprep.subr.mxu0 0.0
        %1757 = vmatpush1.msra.mxu0 0.0
        %1758 = vmatprep.subr.mxu0 0.0
        %1759 = vmatpush1.msra.mxu0 0.0
        %1760 = vmatprep.subr.mxu0 0.0
        %1761 = vmatpush1.msra.mxu0 0.0
        %1762 = vmatprep.subr.mxu0 0.0
        %1763 = vmatpush1.msra.mxu0 0.0
        %1764 = vmatprep.subr.mxu0 0.0
        %1765 = vmatpush1.msra.mxu0 0.0
        %1766 = vmatprep.subr.mxu0 0.0
        %1767 = vmatpush1.msra.mxu0 0.0
        %1768 = vmatprep.subr.mxu0 0.0
        %1769 = vmatpush1.msra.mxu0 0.0
        %1770 = vmatprep.subr.mxu0 0.0
        %1771 = vmatpush1.msra.mxu0 0.0
        %1772 = vmatprep.mubr.f32.mxu0 %v1564
        %1773 = vmatmul.mubr.f32.gmra.mrb[0].mxu0 %v410
        %v1774 = vpop.f32.mrb[0].mxu0
        %v1775 = vadd.f32 %v1205, %v1774
        %v1776 = vpop.f32.mrb[0].mxu0
        %v1777 = vadd.f32 %v1207, %v1776
        %1778 = vdwg.mxu0
        %1779 = vmatprep.subr.mxu0 %v419
        %1780 = vmatpush1.msra.mxu0 %v418
        %1781 = vmatprep.subr.mxu0 %v435
        %1782 = vmatpush1.msra.mxu0 %v434
        %1783 = vmatprep.subr.mxu0 %v451
        %1784 = vmatpush1.msra.mxu0 %v450
        %1785 = vmatprep.subr.mxu0 %v467
        %1786 = vmatpush1.msra.mxu0 %v466
        %1787 = vmatprep.subr.mxu0 %v483
        %1788 = vmatpush1.msra.mxu0 %v482
        %1789 = vmatprep.subr.mxu0 %v499
        %1790 = vmatpush1.msra.mxu0 %v498
        %1791 = vmatprep.subr.mxu0 %v515
        %1792 = vmatpush1.msra.mxu0 %v514
        %1793 = vmatprep.subr.mxu0 %v531
        %1794 = vmatpush1.msra.mxu0 %v530
        %1795 = vmatprep.subr.mxu0 %v547
        %1796 = vmatpush1.msra.mxu0 %v546
        %1797 = vmatprep.subr.mxu0 %v563
        %1798 = vmatpush1.msra.mxu0 %v562
        %1799 = vmatprep.subr.mxu0 %v579
        %1800 = vmatpush1.msra.mxu0 %v578
        %1801 = vmatprep.subr.mxu0 %v595
        %1802 = vmatpush1.msra.mxu0 %v594
        %1803 = vmatprep.subr.mxu0 %v611
        %1804 = vmatpush1.msra.mxu0 %v610
        %1805 = vmatprep.subr.mxu0 %v627
        %1806 = vmatpush1.msra.mxu0 %v626
        %1807 = vmatprep.subr.mxu0 %v643
        %1808 = vmatpush1.msra.mxu0 %v642
        %1809 = vmatprep.subr.mxu0 %v659
        %1810 = vmatpush1.msra.mxu0 %v658
        %1811 = vmatprep.subr.mxu0 %v675
        %1812 = vmatpush1.msra.mxu0 %v674
        %1813 = vmatprep.subr.mxu0 %v691
        %1814 = vmatpush1.msra.mxu0 %v690
        %1815 = vmatprep.subr.mxu0 0.0
        %1816 = vmatpush1.msra.mxu0 0.0
        %1817 = vmatprep.subr.mxu0 0.0
        %1818 = vmatpush1.msra.mxu0 0.0
        %1819 = vmatprep.subr.mxu0 0.0
        %1820 = vmatpush1.msra.mxu0 0.0
        %1821 = vmatprep.subr.mxu0 0.0
        %1822 = vmatpush1.msra.mxu0 0.0
        %1823 = vmatprep.subr.mxu0 0.0
        %1824 = vmatpush1.msra.mxu0 0.0
        %1825 = vmatprep.subr.mxu0 0.0
        %1826 = vmatpush1.msra.mxu0 0.0
        %1827 = vmatprep.subr.mxu0 0.0
        %1828 = vmatpush1.msra.mxu0 0.0
        %1829 = vmatprep.subr.mxu0 0.0
        %1830 = vmatpush1.msra.mxu0 0.0
        %1831 = vmatprep.subr.mxu0 0.0
        %1832 = vmatpush1.msra.mxu0 0.0
        %1833 = vmatprep.subr.mxu0 0.0
        %1834 = vmatpush1.msra.mxu0 0.0
        %1835 = vmatprep.subr.mxu0 0.0
        %1836 = vmatpush1.msra.mxu0 0.0
        %1837 = vmatprep.subr.mxu0 0.0
        %1838 = vmatpush1.msra.mxu0 0.0
        %1839 = vmatprep.subr.mxu0 0.0
        %1840 = vmatpush1.msra.mxu0 0.0
        %1841 = vmatprep.subr.mxu0 0.0
        %1842 = vmatpush1.msra.mxu0 0.0
        %1843 = vmatprep.mubr.f32.mxu0 %v1564
        %1844 = vmatmul.mubr.f32.gmra.mrb[0].mxu0 %v410
        %v1845 = vpop.f32.mrb[0].mxu0
        %v1846 = vadd.f32 %v1276, %v1845
        %v1847 = vpop.f32.mrb[0].mxu0
        %v1848 = vadd.f32 %v1278, %v1847
        %1849 = vdwg.mxu0
        %1850 = vmatprep.subr.mxu0 %v421
        %1851 = vmatpush1.msra.mxu0 %v420
        %1852 = vmatprep.subr.mxu0 %v437
        %1853 = vmatpush1.msra.mxu0 %v436
        %1854 = vmatprep.subr.mxu0 %v453
        %1855 = vmatpush1.msra.mxu0 %v452
        %1856 = vmatprep.subr.mxu0 %v469
        %1857 = vmatpush1.msra.mxu0 %v468
        %1858 = vmatprep.subr.mxu0 %v485
        %1859 = vmatpush1.msra.mxu0 %v484
        %1860 = vmatprep.subr.mxu0 %v501
        %1861 = vmatpush1.msra.mxu0 %v500
        %1862 = vmatprep.subr.mxu0 %v517
        %1863 = vmatpush1.msra.mxu0 %v516
        %1864 = vmatprep.subr.mxu0 %v533
        %1865 = vmatpush1.msra.mxu0 %v532
        %1866 = vmatprep.subr.mxu0 %v549
        %1867 = vmatpush1.msra.mxu0 %v548
        %1868 = vmatprep.subr.mxu0 %v565
        %1869 = vmatpush1.msra.mxu0 %v564
        %1870 = vmatprep.subr.mxu0 %v581
        %1871 = vmatpush1.msra.mxu0 %v580
        %1872 = vmatprep.subr.mxu0 %v597
        %1873 = vmatpush1.msra.mxu0 %v596
        %1874 = vmatprep.subr.mxu0 %v613
        %1875 = vmatpush1.msra.mxu0 %v612
        %1876 = vmatprep.subr.mxu0 %v629
        %1877 = vmatpush1.msra.mxu0 %v628
        %1878 = vmatprep.subr.mxu0 %v645
        %1879 = vmatpush1.msra.mxu0 %v644
        %1880 = vmatprep.subr.mxu0 %v661
        %1881 = vmatpush1.msra.mxu0 %v660
        %1882 = vmatprep.subr.mxu0 %v677
        %1883 = vmatpush1.msra.mxu0 %v676
        %1884 = vmatprep.subr.mxu0 %v693
        %1885 = vmatpush1.msra.mxu0 %v692
        %1886 = vmatprep.subr.mxu0 0.0
        %1887 = vmatpush1.msra.mxu0 0.0
        %1888 = vmatprep.subr.mxu0 0.0
        %1889 = vmatpush1.msra.mxu0 0.0
        %1890 = vmatprep.subr.mxu0 0.0
        %1891 = vmatpush1.msra.mxu0 0.0
        %1892 = vmatprep.subr.mxu0 0.0
        %1893 = vmatpush1.msra.mxu0 0.0
        %1894 = vmatprep.subr.mxu0 0.0
        %1895 = vmatpush1.msra.mxu0 0.0
        %1896 = vmatprep.subr.mxu0 0.0
        %1897 = vmatpush1.msra.mxu0 0.0
        %1898 = vmatprep.subr.mxu0 0.0
        %1899 = vmatpush1.msra.mxu0 0.0
        %1900 = vmatprep.subr.mxu0 0.0
        %1901 = vmatpush1.msra.mxu0 0.0
        %1902 = vmatprep.subr.mxu0 0.0
        %1903 = vmatpush1.msra.mxu0 0.0
        %1904 = vmatprep.subr.mxu0 0.0
        %1905 = vmatpush1.msra.mxu0 0.0
        %1906 = vmatprep.subr.mxu0 0.0
        %1907 = vmatpush1.msra.mxu0 0.0
        %1908 = vmatprep.subr.mxu0 0.0
        %1909 = vmatpush1.msra.mxu0 0.0
        %1910 = vmatprep.subr.mxu0 0.0
        %1911 = vmatpush1.msra.mxu0 0.0
        %1912 = vmatprep.subr.mxu0 0.0
        %1913 = vmatpush1.msra.mxu0 0.0
        %1914 = vmatprep.mubr.f32.mxu0 %v1564
        %1915 = vmatmul.mubr.f32.gmra.mrb[0].mxu0 %v410
        %v1916 = vpop.f32.mrb[0].mxu0
        %v1917 = vadd.f32 %v1347, %v1916
        %v1918 = vpop.f32.mrb[0].mxu0
        %v1919 = vadd.f32 %v1349, %v1918
        %1920 = vdwg.mxu0
        %1921 = vmatprep.subr.mxu0 %v423
        %1922 = vmatpush1.msra.mxu0 %v422
        %1923 = vmatprep.subr.mxu0 %v439
        %1924 = vmatpush1.msra.mxu0 %v438
        %1925 = vmatprep.subr.mxu0 %v455
        %1926 = vmatpush1.msra.mxu0 %v454
        %1927 = vmatprep.subr.mxu0 %v471
        %1928 = vmatpush1.msra.mxu0 %v470
        %1929 = vmatprep.subr.mxu0 %v487
        %1930 = vmatpush1.msra.mxu0 %v486
        %1931 = vmatprep.subr.mxu0 %v503
        %1932 = vmatpush1.msra.mxu0 %v502
        %1933 = vmatprep.subr.mxu0 %v519
        %1934 = vmatpush1.msra.mxu0 %v518
        %1935 = vmatprep.subr.mxu0 %v535
        %1936 = vmatpush1.msra.mxu0 %v534
        %1937 = vmatprep.subr.mxu0 %v551
        %1938 = vmatpush1.msra.mxu0 %v550
        %1939 = vmatprep.subr.mxu0 %v567
        %1940 = vmatpush1.msra.mxu0 %v566
        %1941 = vmatprep.subr.mxu0 %v583
        %1942 = vmatpush1.msra.mxu0 %v582
        %1943 = vmatprep.subr.mxu0 %v599
        %1944 = vmatpush1.msra.mxu0 %v598
        %1945 = vmatprep.subr.mxu0 %v615
        %1946 = vmatpush1.msra.mxu0 %v614
        %1947 = vmatprep.subr.mxu0 %v631
        %1948 = vmatpush1.msra.mxu0 %v630
        %1949 = vmatprep.subr.mxu0 %v647
        %1950 = vmatpush1.msra.mxu0 %v646
        %1951 = vmatprep.subr.mxu0 %v663
        %1952 = vmatpush1.msra.mxu0 %v662
        %1953 = vmatprep.subr.mxu0 %v679
        %1954 = vmatpush1.msra.mxu0 %v678
        %1955 = vmatprep.subr.mxu0 %v695
        %1956 = vmatpush1.msra.mxu0 %v694
        %1957 = vmatprep.subr.mxu0 0.0
        %1958 = vmatpush1.msra.mxu0 0.0
        %1959 = vmatprep.subr.mxu0 0.0
        %1960 = vmatpush1.msra.mxu0 0.0
        %1961 = vmatprep.subr.mxu0 0.0
        %1962 = vmatpush1.msra.mxu0 0.0
        %1963 = vmatprep.subr.mxu0 0.0
        %1964 = vmatpush1.msra.mxu0 0.0
        %1965 = vmatprep.subr.mxu0 0.0
        %1966 = vmatpush1.msra.mxu0 0.0
        %1967 = vmatprep.subr.mxu0 0.0
        %1968 = vmatpush1.msra.mxu0 0.0
        %1969 = vmatprep.subr.mxu0 0.0
        %1970 = vmatpush1.msra.mxu0 0.0
        %1971 = vmatprep.subr.mxu0 0.0
        %1972 = vmatpush1.msra.mxu0 0.0
        %1973 = vmatprep.subr.mxu0 0.0
        %1974 = vmatpush1.msra.mxu0 0.0
        %1975 = vmatprep.subr.mxu0 0.0
        %1976 = vmatpush1.msra.mxu0 0.0
        %1977 = vmatprep.subr.mxu0 0.0
        %1978 = vmatpush1.msra.mxu0 0.0
        %1979 = vmatprep.subr.mxu0 0.0
        %1980 = vmatpush1.msra.mxu0 0.0
        %1981 = vmatprep.subr.mxu0 0.0
        %1982 = vmatpush1.msra.mxu0 0.0
        %1983 = vmatprep.subr.mxu0 0.0
        %1984 = vmatpush1.msra.mxu0 0.0
        %1985 = vmatprep.mubr.f32.mxu0 %v1564
        %1986 = vmatmul.mubr.f32.gmra.mrb[0].mxu0 %v410
        %v1987 = vpop.f32.mrb[0].mxu0
        %v1988 = vadd.f32 %v1418, %v1987
        %v1989 = vpop.f32.mrb[0].mxu0
        %v1990 = vadd.f32 %v1420, %v1989
        %1991 = vdwg.mxu0
        %1992 = vmatprep.subr.mxu0 %v425
        %1993 = vmatpush1.msra.mxu0 %v424
        %1994 = vmatprep.subr.mxu0 %v441
        %1995 = vmatpush1.msra.mxu0 %v440
        %1996 = vmatprep.subr.mxu0 %v457
        %1997 = vmatpush1.msra.mxu0 %v456
        %1998 = vmatprep.subr.mxu0 %v473
        %1999 = vmatpush1.msra.mxu0 %v472
        %2000 = vmatprep.subr.mxu0 %v489
        %2001 = vmatpush1.msra.mxu0 %v488
        %2002 = vmatprep.subr.mxu0 %v505
        %2003 = vmatpush1.msra.mxu0 %v504
        %2004 = vmatprep.subr.mxu0 %v521
        %2005 = vmatpush1.msra.mxu0 %v520
        %2006 = vmatprep.subr.mxu0 %v537
        %2007 = vmatpush1.msra.mxu0 %v536
        %2008 = vmatprep.subr.mxu0 %v553
        %2009 = vmatpush1.msra.mxu0 %v552
        %2010 = vmatprep.subr.mxu0 %v569
        %2011 = vmatpush1.msra.mxu0 %v568
        %2012 = vmatprep.subr.mxu0 %v585
        %2013 = vmatpush1.msra.mxu0 %v584
        %2014 = vmatprep.subr.mxu0 %v601
        %2015 = vmatpush1.msra.mxu0 %v600
        %2016 = vmatprep.subr.mxu0 %v617
        %2017 = vmatpush1.msra.mxu0 %v616
        %2018 = vmatprep.subr.mxu0 %v633
        %2019 = vmatpush1.msra.mxu0 %v632
        %2020 = vmatprep.subr.mxu0 %v649
        %2021 = vmatpush1.msra.mxu0 %v648
        %2022 = vmatprep.subr.mxu0 %v665
        %2023 = vmatpush1.msra.mxu0 %v664
        %2024 = vmatprep.subr.mxu0 %v681
        %2025 = vmatpush1.msra.mxu0 %v680
        %2026 = vmatprep.subr.mxu0 %v697
        %2027 = vmatpush1.msra.mxu0 %v696
        %2028 = vmatprep.subr.mxu0 0.0
        %2029 = vmatpush1.msra.mxu0 0.0
        %2030 = vmatprep.subr.mxu0 0.0
        %2031 = vmatpush1.msra.mxu0 0.0
        %2032 = vmatprep.subr.mxu0 0.0
        %2033 = vmatpush1.msra.mxu0 0.0
        %2034 = vmatprep.subr.mxu0 0.0
        %2035 = vmatpush1.msra.mxu0 0.0
        %2036 = vmatprep.subr.mxu0 0.0
        %2037 = vmatpush1.msra.mxu0 0.0
        %2038 = vmatprep.subr.mxu0 0.0
        %2039 = vmatpush1.msra.mxu0 0.0
        %2040 = vmatprep.subr.mxu0 0.0
        %2041 = vmatpush1.msra.mxu0 0.0
        %2042 = vmatprep.subr.mxu0 0.0
        %2043 = vmatpush1.msra.mxu0 0.0
        %2044 = vmatprep.subr.mxu0 0.0
        %2045 = vmatpush1.msra.mxu0 0.0
        %2046 = vmatprep.subr.mxu0 0.0
        %2047 = vmatpush1.msra.mxu0 0.0
        %2048 = vmatprep.subr.mxu0 0.0
        %2049 = vmatpush1.msra.mxu0 0.0
        %2050 = vmatprep.subr.mxu0 0.0
        %2051 = vmatpush1.msra.mxu0 0.0
        %2052 = vmatprep.subr.mxu0 0.0
        %2053 = vmatpush1.msra.mxu0 0.0
        %2054 = vmatprep.subr.mxu0 0.0
        %2055 = vmatpush1.msra.mxu0 0.0
        %2056 = vmatprep.mubr.f32.mxu0 %v1564
        %2057 = vmatmul.mubr.f32.gmra.mrb[0].mxu0 %v410
        %v2058 = vpop.f32.mrb[0].mxu0
        %v2059 = vadd.f32 %v1489, %v2058
        %v2060 = vpop.f32.mrb[0].mxu0
        %v2061 = vadd.f32 %v1491, %v2060
        %2062 = vdwg.mxu0
        %2063 = vmatprep.subr.mxu0 %v427
        %2064 = vmatpush1.msra.mxu0 %v426
        %2065 = vmatprep.subr.mxu0 %v443
        %2066 = vmatpush1.msra.mxu0 %v442
        %2067 = vmatprep.subr.mxu0 %v459
        %2068 = vmatpush1.msra.mxu0 %v458
        %2069 = vmatprep.subr.mxu0 %v475
        %2070 = vmatpush1.msra.mxu0 %v474
        %2071 = vmatprep.subr.mxu0 %v491
        %2072 = vmatpush1.msra.mxu0 %v490
        %2073 = vmatprep.subr.mxu0 %v507
        %2074 = vmatpush1.msra.mxu0 %v506
        %2075 = vmatprep.subr.mxu0 %v523
        %2076 = vmatpush1.msra.mxu0 %v522
        %2077 = vmatprep.subr.mxu0 %v539
        %2078 = vmatpush1.msra.mxu0 %v538
        %2079 = vmatprep.subr.mxu0 %v555
        %2080 = vmatpush1.msra.mxu0 %v554
        %2081 = vmatprep.subr.mxu0 %v571
        %2082 = vmatpush1.msra.mxu0 %v570
        %2083 = vmatprep.subr.mxu0 %v587
        %2084 = vmatpush1.msra.mxu0 %v586
        %2085 = vmatprep.subr.mxu0 %v603
        %2086 = vmatpush1.msra.mxu0 %v602
        %2087 = vmatprep.subr.mxu0 %v619
        %2088 = vmatpush1.msra.mxu0 %v618
        %2089 = vmatprep.subr.mxu0 %v635
        %2090 = vmatpush1.msra.mxu0 %v634
        %2091 = vmatprep.subr.mxu0 %v651
        %2092 = vmatpush1.msra.mxu0 %v650
        %2093 = vmatprep.subr.mxu0 %v667
        %2094 = vmatpush1.msra.mxu0 %v666
        %2095 = vmatprep.subr.mxu0 %v683
        %2096 = vmatpush1.msra.mxu0 %v682
        %2097 = vmatprep.subr.mxu0 %v699
        %2098 = vmatpush1.msra.mxu0 %v698
        %2099 = vmatprep.subr.mxu0 0.0
        %2100 = vmatpush1.msra.mxu0 0.0
        %2101 = vmatprep.subr.mxu0 0.0
        %2102 = vmatpush1.msra.mxu0 0.0
        %2103 = vmatprep.subr.mxu0 0.0
        %2104 = vmatpush1.msra.mxu0 0.0
        %2105 = vmatprep.subr.mxu0 0.0
        %2106 = vmatpush1.msra.mxu0 0.0
        %2107 = vmatprep.subr.mxu0 0.0
        %2108 = vmatpush1.msra.mxu0 0.0
        %2109 = vmatprep.subr.mxu0 0.0
        %2110 = vmatpush1.msra.mxu0 0.0
        %2111 = vmatprep.subr.mxu0 0.0
        %2112 = vmatpush1.msra.mxu0 0.0
        %2113 = vmatprep.subr.mxu0 0.0
        %2114 = vmatpush1.msra.mxu0 0.0
        %2115 = vmatprep.subr.mxu0 0.0
        %2116 = vmatpush1.msra.mxu0 0.0
        %2117 = vmatprep.subr.mxu0 0.0
        %2118 = vmatpush1.msra.mxu0 0.0
        %2119 = vmatprep.subr.mxu0 0.0
        %2120 = vmatpush1.msra.mxu0 0.0
        %2121 = vmatprep.subr.mxu0 0.0
        %2122 = vmatpush1.msra.mxu0 0.0
        %2123 = vmatprep.subr.mxu0 0.0
        %2124 = vmatpush1.msra.mxu0 0.0
        %2125 = vmatprep.subr.mxu0 0.0
        %2126 = vmatpush1.msra.mxu0 0.0
        %2127 = vmatprep.mubr.f32.mxu0 %v1564
        %2128 = vmatmul.mubr.f32.gmra.mrb[0].mxu0 %v410
        %v2129 = vpop.f32.mrb[0].mxu0
        %v2130 = vadd.f32 %v1560, %v2129
        %v2131 = vpop.f32.mrb[0].mxu0
        %v2132 = vadd.f32 %v1562, %v2131
        %2133 = vdwg.mxu0
        %v2134 = vld [vmem:[#allocation2 + $0x1200] sm:$0xff]
        %v2135 = vld [vmem:[#allocation2 + $0x1208] sm:$0xff]
        %v2136 = vld [vmem:[#allocation2 + $0x1210] sm:$0xff]
        %v2137 = vld [vmem:[#allocation2 + $0x1218] sm:$0xff]
        %v2138 = vld [vmem:[#allocation2 + $0x1220] sm:$0xff]
        %v2139 = vld [vmem:[#allocation2 + $0x1228] sm:$0xff]
        %v2140 = vld [vmem:[#allocation2 + $0x1230] sm:$0xff]
        %v2141 = vld [vmem:[#allocation2 + $0x1238] sm:$0xff]
        %v2142 = vld [vmem:[#allocation2 + $0x1240] sm:$0xff]
        %v2143 = vld [vmem:[#allocation2 + $0x1248] sm:$0xff]
        %v2144 = vld [vmem:[#allocation2 + $0x1250] sm:$0xff]
        %v2145 = vld [vmem:[#allocation2 + $0x1258] sm:$0xff]
        %v2146 = vld [vmem:[#allocation2 + $0x1260] sm:$0xff]
        %v2147 = vld [vmem:[#allocation2 + $0x1268] sm:$0xff]
        %v2148 = vld [vmem:[#allocation2 + $0x1270] sm:$0xff]
        %v2149 = vld [vmem:[#allocation2 + $0x1278] sm:$0xff]
        %v2150 = vld [vmem:[#allocation2 + $0x1280] sm:$0xff]
        %v2151 = vld [vmem:[#allocation2 + $0x1288] sm:$0xff]
        %v2152 = vld [vmem:[#allocation2 + $0x1290] sm:$0xff]
        %v2153 = vld [vmem:[#allocation2 + $0x1298] sm:$0xff]
        %v2154 = vld [vmem:[#allocation2 + $0x12a0] sm:$0xff]
        %v2155 = vld [vmem:[#allocation2 + $0x12a8] sm:$0xff]
        %v2156 = vld [vmem:[#allocation2 + $0x12b0] sm:$0xff]
        %v2157 = vld [vmem:[#allocation2 + $0x12b8] sm:$0xff]
        %v2158 = vld [vmem:[#allocation2 + $0x12c0] sm:$0xff]
        %v2159 = vld [vmem:[#allocation2 + $0x12c8] sm:$0xff]
        %v2160 = vld [vmem:[#allocation2 + $0x12d0] sm:$0xff]
        %v2161 = vld [vmem:[#allocation2 + $0x12d8] sm:$0xff]
        %v2162 = vld [vmem:[#allocation2 + $0x12e0] sm:$0xff]
        %v2163 = vld [vmem:[#allocation2 + $0x12e8] sm:$0xff]
        %v2164 = vld [vmem:[#allocation2 + $0x12f0] sm:$0xff]
        %v2165 = vld [vmem:[#allocation2 + $0x12f8] sm:$0xff]
        %v2166 = vld [vmem:[#allocation2 + $0x1300] sm:$0xff]
        %v2167 = vld [vmem:[#allocation2 + $0x1308] sm:$0xff]
        %v2168 = vld [vmem:[#allocation2 + $0x1310] sm:$0xff]
        %v2169 = vld [vmem:[#allocation2 + $0x1318] sm:$0xff]
        %v2170 = vld [vmem:[#allocation2 + $0x1320] sm:$0xff]
        %v2171 = vld [vmem:[#allocation2 + $0x1328] sm:$0xff]
        %v2172 = vld [vmem:[#allocation2 + $0x1330] sm:$0xff]
        %v2173 = vld [vmem:[#allocation2 + $0x1338] sm:$0xff]
        %v2174 = vld [vmem:[#allocation2 + $0x1340] sm:$0xff]
        %v2175 = vld [vmem:[#allocation2 + $0x1348] sm:$0xff]
        %v2176 = vld [vmem:[#allocation2 + $0x1350] sm:$0xff]
        %v2177 = vld [vmem:[#allocation2 + $0x1358] sm:$0xff]
        %v2178 = vld [vmem:[#allocation2 + $0x1360] sm:$0xff]
        %v2179 = vld [vmem:[#allocation2 + $0x1368] sm:$0xff]
        %v2180 = vld [vmem:[#allocation2 + $0x1370] sm:$0xff]
        %v2181 = vld [vmem:[#allocation2 + $0x1378] sm:$0xff]
        %v2182 = vld [vmem:[#allocation2 + $0x1380] sm:$0xff]
        %v2183 = vld [vmem:[#allocation2 + $0x1388] sm:$0xff]
        %v2184 = vld [vmem:[#allocation2 + $0x1390] sm:$0xff]
        %v2185 = vld [vmem:[#allocation2 + $0x1398] sm:$0xff]
        %v2186 = vld [vmem:[#allocation2 + $0x13a0] sm:$0xff]
        %v2187 = vld [vmem:[#allocation2 + $0x13a8] sm:$0xff]
        %v2188 = vld [vmem:[#allocation2 + $0x13b0] sm:$0xff]
        %v2189 = vld [vmem:[#allocation2 + $0x13b8] sm:$0xff]
        %v2190 = vld [vmem:[#allocation2 + $0x13c0] sm:$0xff]
        %v2191 = vld [vmem:[#allocation2 + $0x13c8] sm:$0xff]
        %v2192 = vld [vmem:[#allocation2 + $0x13d0] sm:$0xff]
        %v2193 = vld [vmem:[#allocation2 + $0x13d8] sm:$0xff]
        %v2194 = vld [vmem:[#allocation2 + $0x13e0] sm:$0xff]
        %v2195 = vld [vmem:[#allocation2 + $0x13e8] sm:$0xff]
        %v2196 = vld [vmem:[#allocation2 + $0x13f0] sm:$0xff]
        %v2197 = vld [vmem:[#allocation2 + $0x13f8] sm:$0xff]
        %v2198 = vld [vmem:[#allocation2 + $0x1400] sm:$0xff]
        %v2199 = vld [vmem:[#allocation2 + $0x1408] sm:$0xff]
        %v2200 = vld [vmem:[#allocation2 + $0x1410] sm:$0xff]
        %v2201 = vld [vmem:[#allocation2 + $0x1418] sm:$0xff]
        %v2202 = vld [vmem:[#allocation2 + $0x1420] sm:$0xff]
        %v2203 = vld [vmem:[#allocation2 + $0x1428] sm:$0xff]
        %v2204 = vld [vmem:[#allocation2 + $0x1430] sm:$0xff]
        %v2205 = vld [vmem:[#allocation2 + $0x1438] sm:$0xff]
        %v2206 = vld [vmem:[#allocation2 + $0x1440] sm:$0xff]
        %v2207 = vld [vmem:[#allocation2 + $0x1448] sm:$0xff]
        %v2208 = vld [vmem:[#allocation2 + $0x1450] sm:$0xff]
        %v2209 = vld [vmem:[#allocation2 + $0x1458] sm:$0xff]
        %v2210 = vld [vmem:[#allocation2 + $0x1460] sm:$0xff]
        %v2211 = vld [vmem:[#allocation2 + $0x1468] sm:$0xff]
        %v2212 = vld [vmem:[#allocation2 + $0x1470] sm:$0xff]
        %v2213 = vld [vmem:[#allocation2 + $0x1478] sm:$0xff]
        %v2214 = vld [vmem:[#allocation2 + $0x1480] sm:$0xff]
        %v2215 = vld [vmem:[#allocation2 + $0x1488] sm:$0xff]
        %v2216 = vld [vmem:[#allocation2 + $0x1490] sm:$0xff]
        %v2217 = vld [vmem:[#allocation2 + $0x1498] sm:$0xff]
        %v2218 = vld [vmem:[#allocation2 + $0x14a0] sm:$0xff]
        %v2219 = vld [vmem:[#allocation2 + $0x14a8] sm:$0xff]
        %v2220 = vld [vmem:[#allocation2 + $0x14b0] sm:$0xff]
        %v2221 = vld [vmem:[#allocation2 + $0x14b8] sm:$0xff]
        %v2222 = vld [vmem:[#allocation2 + $0x14c0] sm:$0xff]
        %v2223 = vld [vmem:[#allocation2 + $0x14c8] sm:$0xff]
        %v2224 = vld [vmem:[#allocation2 + $0x14d0] sm:$0xff]
        %v2225 = vld [vmem:[#allocation2 + $0x14d8] sm:$0xff]
        %v2226 = vld [vmem:[#allocation2 + $0x14e0] sm:$0xff]
        %v2227 = vld [vmem:[#allocation2 + $0x14e8] sm:$0xff]
        %v2228 = vld [vmem:[#allocation2 + $0x14f0] sm:$0xff]
        %v2229 = vld [vmem:[#allocation2 + $0x14f8] sm:$0xff]
        %v2230 = vld [vmem:[#allocation2 + $0x1500] sm:$0xff]
        %v2231 = vld [vmem:[#allocation2 + $0x1508] sm:$0xff]
        %v2232 = vld [vmem:[#allocation2 + $0x1510] sm:$0xff]
        %v2233 = vld [vmem:[#allocation2 + $0x1518] sm:$0xff]
        %v2234 = vld [vmem:[#allocation2 + $0x1520] sm:$0xff]
        %v2235 = vld [vmem:[#allocation2 + $0x1528] sm:$0xff]
        %v2236 = vld [vmem:[#allocation2 + $0x1530] sm:$0xff]
        %v2237 = vld [vmem:[#allocation2 + $0x1538] sm:$0xff]
        %v2238 = vld [vmem:[#allocation2 + $0x1540] sm:$0xff]
        %v2239 = vld [vmem:[#allocation2 + $0x1548] sm:$0xff]
        %v2240 = vld [vmem:[#allocation2 + $0x1550] sm:$0xff]
        %v2241 = vld [vmem:[#allocation2 + $0x1558] sm:$0xff]
        %v2242 = vld [vmem:[#allocation2 + $0x1560] sm:$0xff]
        %v2243 = vld [vmem:[#allocation2 + $0x1568] sm:$0xff]
        %v2244 = vld [vmem:[#allocation2 + $0x1570] sm:$0xff]
        %v2245 = vld [vmem:[#allocation2 + $0x1578] sm:$0xff]
        %v2246 = vld [vmem:[#allocation2 + $0x1580] sm:$0xff]
        %v2247 = vld [vmem:[#allocation2 + $0x1588] sm:$0xff]
        %v2248 = vld [vmem:[#allocation2 + $0x1590] sm:$0xff]
        %v2249 = vld [vmem:[#allocation2 + $0x1598] sm:$0xff]
        %v2250 = vld [vmem:[#allocation2 + $0x15a0] sm:$0xff]
        %v2251 = vld [vmem:[#allocation2 + $0x15a8] sm:$0xff]
        %v2252 = vld [vmem:[#allocation2 + $0x15b0] sm:$0xff]
        %v2253 = vld [vmem:[#allocation2 + $0x15b8] sm:$0xff]
        %v2254 = vld [vmem:[#allocation2 + $0x15c0] sm:$0xff]
        %v2255 = vld [vmem:[#allocation2 + $0x15c8] sm:$0xff]
        %v2256 = vld [vmem:[#allocation2 + $0x15d0] sm:$0xff]
        %v2257 = vld [vmem:[#allocation2 + $0x15d8] sm:$0xff]
        %v2258 = vld [vmem:[#allocation2 + $0x15e0] sm:$0xff]
        %v2259 = vld [vmem:[#allocation2 + $0x15e8] sm:$0xff]
        %v2260 = vld [vmem:[#allocation2 + $0x15f0] sm:$0xff]
        %v2261 = vld [vmem:[#allocation2 + $0x15f8] sm:$0xff]
        %v2262 = vld [vmem:[#allocation2 + $0x1600] sm:$0xff]
        %v2263 = vld [vmem:[#allocation2 + $0x1608] sm:$0xff]
        %v2264 = vld [vmem:[#allocation2 + $0x1610] sm:$0xff]
        %v2265 = vld [vmem:[#allocation2 + $0x1618] sm:$0xff]
        %v2266 = vld [vmem:[#allocation2 + $0x1620] sm:$0xff]
        %v2267 = vld [vmem:[#allocation2 + $0x1628] sm:$0xff]
        %v2268 = vld [vmem:[#allocation2 + $0x1630] sm:$0xff]
        %v2269 = vld [vmem:[#allocation2 + $0x1638] sm:$0xff]
        %v2270 = vld [vmem:[#allocation2 + $0x1640] sm:$0xff]
        %v2271 = vld [vmem:[#allocation2 + $0x1648] sm:$0xff]
        %v2272 = vld [vmem:[#allocation2 + $0x1650] sm:$0xff]
        %v2273 = vld [vmem:[#allocation2 + $0x1658] sm:$0xff]
        %v2274 = vld [vmem:[#allocation2 + $0x1660] sm:$0xff]
        %v2275 = vld [vmem:[#allocation2 + $0x1668] sm:$0xff]
        %v2276 = vld [vmem:[#allocation2 + $0x1670] sm:$0xff]
        %v2277 = vld [vmem:[#allocation2 + $0x1678] sm:$0xff]
        %v2278 = vld [vmem:[#allocation2 + $0x1680] sm:$0xff]
        %v2279 = vld [vmem:[#allocation2 + $0x1688] sm:$0xff]
        %v2280 = vld [vmem:[#allocation2 + $0x1690] sm:$0xff]
        %v2281 = vld [vmem:[#allocation2 + $0x1698] sm:$0xff]
        %v2282 = vld [vmem:[#allocation2 + $0x16a0] sm:$0xff]
        %v2283 = vld [vmem:[#allocation2 + $0x16a8] sm:$0xff]
        %v2284 = vld [vmem:[#allocation2 + $0x16b0] sm:$0xff]
        %v2285 = vld [vmem:[#allocation2 + $0x16b8] sm:$0xff]
        %v2286 = vld [vmem:[#allocation2 + $0x16c0] sm:$0xff]
        %v2287 = vld [vmem:[#allocation2 + $0x16c8] sm:$0xff]
        %v2288 = vld [vmem:[#allocation2 + $0x16d0] sm:$0xff]
        %v2289 = vld [vmem:[#allocation2 + $0x16d8] sm:$0xff]
        %v2290 = vld [vmem:[#allocation2 + $0x16e0] sm:$0xff]
        %v2291 = vld [vmem:[#allocation2 + $0x16e8] sm:$0xff]
        %v2292 = vld [vmem:[#allocation2 + $0x16f0] sm:$0xff]
        %v2293 = vld [vmem:[#allocation2 + $0x16f8] sm:$0xff]
        %v2294 = vld [vmem:[#allocation2 + $0x1700] sm:$0xff]
        %v2295 = vld [vmem:[#allocation2 + $0x1708] sm:$0xff]
        %v2296 = vld [vmem:[#allocation2 + $0x1710] sm:$0xff]
        %v2297 = vld [vmem:[#allocation2 + $0x1718] sm:$0xff]
        %v2298 = vld [vmem:[#allocation2 + $0x1720] sm:$0xff]
        %v2299 = vld [vmem:[#allocation2 + $0x1728] sm:$0xff]
        %v2300 = vld [vmem:[#allocation2 + $0x1730] sm:$0xff]
        %v2301 = vld [vmem:[#allocation2 + $0x1738] sm:$0xff]
        %v2302 = vld [vmem:[#allocation2 + $0x1740] sm:$0xff]
        %v2303 = vld [vmem:[#allocation2 + $0x1748] sm:$0xff]
        %v2304 = vld [vmem:[#allocation2 + $0x1750] sm:$0xff]
        %v2305 = vld [vmem:[#allocation2 + $0x1758] sm:$0xff]
        %v2306 = vld [vmem:[#allocation2 + $0x1760] sm:$0xff]
        %v2307 = vld [vmem:[#allocation2 + $0x1768] sm:$0xff]
        %v2308 = vld [vmem:[#allocation2 + $0x1770] sm:$0xff]
        %v2309 = vld [vmem:[#allocation2 + $0x1778] sm:$0xff]
        %v2310 = vld [vmem:[#allocation2 + $0x1780] sm:$0xff]
        %v2311 = vld [vmem:[#allocation2 + $0x1788] sm:$0xff]
        %v2312 = vld [vmem:[#allocation2 + $0x1790] sm:$0xff]
        %v2313 = vld [vmem:[#allocation2 + $0x1798] sm:$0xff]
        %v2314 = vld [vmem:[#allocation2 + $0x17a0] sm:$0xff]
        %v2315 = vld [vmem:[#allocation2 + $0x17a8] sm:$0xff]
        %v2316 = vld [vmem:[#allocation2 + $0x17b0] sm:$0xff]
        %v2317 = vld [vmem:[#allocation2 + $0x17b8] sm:$0xff]
        %v2318 = vld [vmem:[#allocation2 + $0x17c0] sm:$0xff]
        %v2319 = vld [vmem:[#allocation2 + $0x17c8] sm:$0xff]
        %v2320 = vld [vmem:[#allocation2 + $0x17d0] sm:$0xff]
        %v2321 = vld [vmem:[#allocation2 + $0x17d8] sm:$0xff]
        %v2322 = vld [vmem:[#allocation2 + $0x17e0] sm:$0xff]
        %v2323 = vld [vmem:[#allocation2 + $0x17e8] sm:$0xff]
        %v2324 = vld [vmem:[#allocation2 + $0x17f0] sm:$0xff]
        %v2325 = vld [vmem:[#allocation2 + $0x17f8] sm:$0xff]
        %v2326 = vld [vmem:[#allocation2 + $0x1800] sm:$0xff]
        %v2327 = vld [vmem:[#allocation2 + $0x1808] sm:$0xff]
        %v2328 = vld [vmem:[#allocation2 + $0x1810] sm:$0xff]
        %v2329 = vld [vmem:[#allocation2 + $0x1818] sm:$0xff]
        %v2330 = vld [vmem:[#allocation2 + $0x1820] sm:$0xff]
        %v2331 = vld [vmem:[#allocation2 + $0x1828] sm:$0xff]
        %v2332 = vld [vmem:[#allocation2 + $0x1830] sm:$0xff]
        %v2333 = vld [vmem:[#allocation2 + $0x1838] sm:$0xff]
        %v2334 = vld [vmem:[#allocation2 + $0x1840] sm:$0xff]
        %v2335 = vld [vmem:[#allocation2 + $0x1848] sm:$0xff]
        %v2336 = vld [vmem:[#allocation2 + $0x1850] sm:$0xff]
        %v2337 = vld [vmem:[#allocation2 + $0x1858] sm:$0xff]
        %v2338 = vld [vmem:[#allocation2 + $0x1860] sm:$0xff]
        %v2339 = vld [vmem:[#allocation2 + $0x1868] sm:$0xff]
        %v2340 = vld [vmem:[#allocation2 + $0x1870] sm:$0xff]
        %v2341 = vld [vmem:[#allocation2 + $0x1878] sm:$0xff]
        %v2342 = vld [vmem:[#allocation2 + $0x1880] sm:$0xff]
        %v2343 = vld [vmem:[#allocation2 + $0x1888] sm:$0xff]
        %v2344 = vld [vmem:[#allocation2 + $0x1890] sm:$0xff]
        %v2345 = vld [vmem:[#allocation2 + $0x1898] sm:$0xff]
        %v2346 = vld [vmem:[#allocation2 + $0x18a0] sm:$0xff]
        %v2347 = vld [vmem:[#allocation2 + $0x18a8] sm:$0xff]
        %v2348 = vld [vmem:[#allocation2 + $0x18b0] sm:$0xff]
        %v2349 = vld [vmem:[#allocation2 + $0x18b8] sm:$0xff]
        %v2350 = vld [vmem:[#allocation2 + $0x18c0] sm:$0xff]
        %v2351 = vld [vmem:[#allocation2 + $0x18c8] sm:$0xff]
        %v2352 = vld [vmem:[#allocation2 + $0x18d0] sm:$0xff]
        %v2353 = vld [vmem:[#allocation2 + $0x18d8] sm:$0xff]
        %v2354 = vld [vmem:[#allocation2 + $0x18e0] sm:$0xff]
        %v2355 = vld [vmem:[#allocation2 + $0x18e8] sm:$0xff]
        %v2356 = vld [vmem:[#allocation2 + $0x18f0] sm:$0xff]
        %v2357 = vld [vmem:[#allocation2 + $0x18f8] sm:$0xff]
        %v2358 = vld [vmem:[#allocation2 + $0x1900] sm:$0xff]
        %v2359 = vld [vmem:[#allocation2 + $0x1908] sm:$0xff]
        %v2360 = vld [vmem:[#allocation2 + $0x1910] sm:$0xff]
        %v2361 = vld [vmem:[#allocation2 + $0x1918] sm:$0xff]
        %v2362 = vld [vmem:[#allocation2 + $0x1920] sm:$0xff]
        %v2363 = vld [vmem:[#allocation2 + $0x1928] sm:$0xff]
        %v2364 = vld [vmem:[#allocation2 + $0x1930] sm:$0xff]
        %v2365 = vld [vmem:[#allocation2 + $0x1938] sm:$0xff]
        %v2366 = vld [vmem:[#allocation2 + $0x1940] sm:$0xff]
        %v2367 = vld [vmem:[#allocation2 + $0x1948] sm:$0xff]
        %v2368 = vld [vmem:[#allocation2 + $0x1950] sm:$0xff]
        %v2369 = vld [vmem:[#allocation2 + $0x1958] sm:$0xff]
        %v2370 = vld [vmem:[#allocation2 + $0x1960] sm:$0xff]
        %v2371 = vld [vmem:[#allocation2 + $0x1968] sm:$0xff]
        %v2372 = vld [vmem:[#allocation2 + $0x1970] sm:$0xff]
        %v2373 = vld [vmem:[#allocation2 + $0x1978] sm:$0xff]
        %v2374 = vld [vmem:[#allocation2 + $0x1980] sm:$0xff]
        %v2375 = vld [vmem:[#allocation2 + $0x1988] sm:$0xff]
        %v2376 = vld [vmem:[#allocation2 + $0x1990] sm:$0xff]
        %v2377 = vld [vmem:[#allocation2 + $0x1998] sm:$0xff]
        %v2378 = vld [vmem:[#allocation2 + $0x19a0] sm:$0xff]
        %v2379 = vld [vmem:[#allocation2 + $0x19a8] sm:$0xff]
        %v2380 = vld [vmem:[#allocation2 + $0x19b0] sm:$0xff]
        %v2381 = vld [vmem:[#allocation2 + $0x19b8] sm:$0xff]
        %v2382 = vld [vmem:[#allocation2 + $0x19c0] sm:$0xff]
        %v2383 = vld [vmem:[#allocation2 + $0x19c8] sm:$0xff]
        %v2384 = vld [vmem:[#allocation2 + $0x19d0] sm:$0xff]
        %v2385 = vld [vmem:[#allocation2 + $0x19d8] sm:$0xff]
        %v2386 = vld [vmem:[#allocation2 + $0x19e0] sm:$0xff]
        %v2387 = vld [vmem:[#allocation2 + $0x19e8] sm:$0xff]
        %v2388 = vld [vmem:[#allocation2 + $0x19f0] sm:$0xff]
        %v2389 = vld [vmem:[#allocation2 + $0x19f8] sm:$0xff]
        %v2390 = vld [vmem:[#allocation2 + $0x1a00] sm:$0xff]
        %v2391 = vld [vmem:[#allocation2 + $0x1a08] sm:$0xff]
        %v2392 = vld [vmem:[#allocation2 + $0x1a10] sm:$0xff]
        %v2393 = vld [vmem:[#allocation2 + $0x1a18] sm:$0xff]
        %v2394 = vld [vmem:[#allocation2 + $0x1a20] sm:$0xff]
        %v2395 = vld [vmem:[#allocation2 + $0x1a28] sm:$0xff]
        %v2396 = vld [vmem:[#allocation2 + $0x1a30] sm:$0xff]
        %v2397 = vld [vmem:[#allocation2 + $0x1a38] sm:$0xff]
        %v2398 = vld [vmem:[#allocation2 + $0x1a40] sm:$0xff]
        %v2399 = vld [vmem:[#allocation2 + $0x1a48] sm:$0xff]
        %v2400 = vld [vmem:[#allocation2 + $0x1a50] sm:$0xff]
        %v2401 = vld [vmem:[#allocation2 + $0x1a58] sm:$0xff]
        %v2402 = vld [vmem:[#allocation2 + $0x1a60] sm:$0xff]
        %v2403 = vld [vmem:[#allocation2 + $0x1a68] sm:$0xff]
        %v2404 = vld [vmem:[#allocation2 + $0x1a70] sm:$0xff]
        %v2405 = vld [vmem:[#allocation2 + $0x1a78] sm:$0xff]
        %v2406 = vld [vmem:[#allocation2 + $0x1a80] sm:$0xff]
        %v2407 = vld [vmem:[#allocation2 + $0x1a88] sm:$0xff]
        %v2408 = vld [vmem:[#allocation2 + $0x1a90] sm:$0xff]
        %v2409 = vld [vmem:[#allocation2 + $0x1a98] sm:$0xff]
        %v2410 = vld [vmem:[#allocation2 + $0x1aa0] sm:$0xff]
        %v2411 = vld [vmem:[#allocation2 + $0x1aa8] sm:$0xff]
        %v2412 = vld [vmem:[#allocation2 + $0x1ab0] sm:$0xff]
        %v2413 = vld [vmem:[#allocation2 + $0x1ab8] sm:$0xff]
        %v2414 = vld [vmem:[#allocation2 + $0x1ac0] sm:$0xff]
        %v2415 = vld [vmem:[#allocation2 + $0x1ac8] sm:$0xff]
        %v2416 = vld [vmem:[#allocation2 + $0x1ad0] sm:$0xff]
        %v2417 = vld [vmem:[#allocation2 + $0x1ad8] sm:$0xff]
        %v2418 = vld [vmem:[#allocation2 + $0x1ae0] sm:$0xff]
        %v2419 = vld [vmem:[#allocation2 + $0x1ae8] sm:$0xff]
        %v2420 = vld [vmem:[#allocation2 + $0x1af0] sm:$0xff]
        %v2421 = vld [vmem:[#allocation2 + $0x1af8] sm:$0xff]
        %v2422 = vrot.slane %v410, 2
        %v2423 = vrot.slane %v411, 2
        %v2425 = vsel %vm993, %v2423, 0
        %2427 = vmatprep.subr.mxu0 %v2135
        %2428 = vmatpush1.msra.mxu0 %v2134
        %2429 = vmatprep.subr.mxu0 %v2151
        %2430 = vmatpush1.msra.mxu0 %v2150
        %2431 = vmatprep.subr.mxu0 %v2167
        %2432 = vmatpush1.msra.mxu0 %v2166
        %2433 = vmatprep.subr.mxu0 %v2183
        %2434 = vmatpush1.msra.mxu0 %v2182
        %2435 = vmatprep.subr.mxu0 %v2199
        %2436 = vmatpush1.msra.mxu0 %v2198
        %2437 = vmatprep.subr.mxu0 %v2215
        %2438 = vmatpush1.msra.mxu0 %v2214
        %2439 = vmatprep.subr.mxu0 %v2231
        %2440 = vmatpush1.msra.mxu0 %v2230
        %2441 = vmatprep.subr.mxu0 %v2247
        %2442 = vmatpush1.msra.mxu0 %v2246
        %2443 = vmatprep.subr.mxu0 %v2263
        %2444 = vmatpush1.msra.mxu0 %v2262
        %2445 = vmatprep.subr.mxu0 %v2279
        %2446 = vmatpush1.msra.mxu0 %v2278
        %2447 = vmatprep.subr.mxu0 %v2295
        %2448 = vmatpush1.msra.mxu0 %v2294
        %2449 = vmatprep.subr.mxu0 %v2311
        %2450 = vmatpush1.msra.mxu0 %v2310
        %2451 = vmatprep.subr.mxu0 %v2327
        %2452 = vmatpush1.msra.mxu0 %v2326
        %2453 = vmatprep.subr.mxu0 %v2343
        %2454 = vmatpush1.msra.mxu0 %v2342
        %2455 = vmatprep.subr.mxu0 %v2359
        %2456 = vmatpush1.msra.mxu0 %v2358
        %2457 = vmatprep.subr.mxu0 %v2375
        %2458 = vmatpush1.msra.mxu0 %v2374
        %2459 = vmatprep.subr.mxu0 %v2391
        %2460 = vmatpush1.msra.mxu0 %v2390
        %2461 = vmatprep.subr.mxu0 %v2407
        %2462 = vmatpush1.msra.mxu0 %v2406
        %2463 = vmatprep.subr.mxu0 0.0
        %2464 = vmatpush1.msra.mxu0 0.0
        %2465 = vmatprep.subr.mxu0 0.0
        %2466 = vmatpush1.msra.mxu0 0.0
        %2467 = vmatprep.subr.mxu0 0.0
        %2468 = vmatpush1.msra.mxu0 0.0
        %2469 = vmatprep.subr.mxu0 0.0
        %2470 = vmatpush1.msra.mxu0 0.0
        %2471 = vmatprep.subr.mxu0 0.0
        %2472 = vmatpush1.msra.mxu0 0.0
        %2473 = vmatprep.subr.mxu0 0.0
        %2474 = vmatpush1.msra.mxu0 0.0
        %2475 = vmatprep.subr.mxu0 0.0
        %2476 = vmatpush1.msra.mxu0 0.0
        %2477 = vmatprep.subr.mxu0 0.0
        %2478 = vmatpush1.msra.mxu0 0.0
        %2479 = vmatprep.subr.mxu0 0.0
        %2480 = vmatpush1.msra.mxu0 0.0
        %2481 = vmatprep.subr.mxu0 0.0
        %2482 = vmatpush1.msra.mxu0 0.0
        %2483 = vmatprep.subr.mxu0 0.0
        %2484 = vmatpush1.msra.mxu0 0.0
        %2485 = vmatprep.subr.mxu0 0.0
        %2486 = vmatpush1.msra.mxu0 0.0
        %2487 = vmatprep.subr.mxu0 0.0
        %2488 = vmatpush1.msra.mxu0 0.0
        %2489 = vmatprep.subr.mxu0 0.0
        %2490 = vmatpush1.msra.mxu0 0.0
        %2491 = vmatprep.mubr.f32.mxu0 %v2425
        %2492 = vmatmul.mubr.f32.gmra.mrb[0].mxu0 %v2422
        %v2493 = vpop.f32.mrb[0].mxu0
        %v2494 = vadd.f32 0.0, %v2493
        %v2495 = vpop.f32.mrb[0].mxu0
        %v2496 = vadd.f32 0.0, %v2495
        %2497 = vdwg.mxu0
        %2498 = vmatprep.subr.mxu0 %v2137
        %2499 = vmatpush1.msra.mxu0 %v2136
        %2500 = vmatprep.subr.mxu0 %v2153
        %2501 = vmatpush1.msra.mxu0 %v2152
        %2502 = vmatprep.subr.mxu0 %v2169
        %2503 = vmatpush1.msra.mxu0 %v2168
        %2504 = vmatprep.subr.mxu0 %v2185
        %2505 = vmatpush1.msra.mxu0 %v2184
        %2506 = vmatprep.subr.mxu0 %v2201
        %2507 = vmatpush1.msra.mxu0 %v2200
        %2508 = vmatprep.subr.mxu0 %v2217
        %2509 = vmatpush1.msra.mxu0 %v2216
        %2510 = vmatprep.subr.mxu0 %v2233
        %2511 = vmatpush1.msra.mxu0 %v2232
        %2512 = vmatprep.subr.mxu0 %v2249
        %2513 = vmatpush1.msra.mxu0 %v2248
        %2514 = vmatprep.subr.mxu0 %v2265
        %2515 = vmatpush1.msra.mxu0 %v2264
        %2516 = vmatprep.subr.mxu0 %v2281
        %2517 = vmatpush1.msra.mxu0 %v2280
        %2518 = vmatprep.subr.mxu0 %v2297
        %2519 = vmatpush1.msra.mxu0 %v2296
        %2520 = vmatprep.subr.mxu0 %v2313
        %2521 = vmatpush1.msra.mxu0 %v2312
        %2522 = vmatprep.subr.mxu0 %v2329
        %2523 = vmatpush1.msra.mxu0 %v2328
        %2524 = vmatprep.subr.mxu0 %v2345
        %2525 = vmatpush1.msra.mxu0 %v2344
        %2526 = vmatprep.subr.mxu0 %v2361
        %2527 = vmatpush1.msra.mxu0 %v2360
        %2528 = vmatprep.subr.mxu0 %v2377
        %2529 = vmatpush1.msra.mxu0 %v2376
        %2530 = vmatprep.subr.mxu0 %v2393
        %2531 = vmatpush1.msra.mxu0 %v2392
        %2532 = vmatprep.subr.mxu0 %v2409
        %2533 = vmatpush1.msra.mxu0 %v2408
        %2534 = vmatprep.subr.mxu0 0.0
        %2535 = vmatpush1.msra.mxu0 0.0
        %2536 = vmatprep.subr.mxu0 0.0
        %2537 = vmatpush1.msra.mxu0 0.0
        %2538 = vmatprep.subr.mxu0 0.0
        %2539 = vmatpush1.msra.mxu0 0.0
        %2540 = vmatprep.subr.mxu0 0.0
        %2541 = vmatpush1.msra.mxu0 0.0
        %2542 = vmatprep.subr.mxu0 0.0
        %2543 = vmatpush1.msra.mxu0 0.0
        %2544 = vmatprep.subr.mxu0 0.0
        %2545 = vmatpush1.msra.mxu0 0.0
        %2546 = vmatprep.subr.mxu0 0.0
        %2547 = vmatpush1.msra.mxu0 0.0
        %2548 = vmatprep.subr.mxu0 0.0
        %2549 = vmatpush1.msra.mxu0 0.0
        %2550 = vmatprep.subr.mxu0 0.0
        %2551 = vmatpush1.msra.mxu0 0.0
        %2552 = vmatprep.subr.mxu0 0.0
        %2553 = vmatpush1.msra.mxu0 0.0
        %2554 = vmatprep.subr.mxu0 0.0
        %2555 = vmatpush1.msra.mxu0 0.0
        %2556 = vmatprep.subr.mxu0 0.0
        %2557 = vmatpush1.msra.mxu0 0.0
        %2558 = vmatprep.subr.mxu0 0.0
        %2559 = vmatpush1.msra.mxu0 0.0
        %2560 = vmatprep.subr.mxu0 0.0
        %2561 = vmatpush1.msra.mxu0 0.0
        %2562 = vmatprep.mubr.f32.mxu0 %v2425
        %2563 = vmatmul.mubr.f32.gmra.mrb[0].mxu0 %v2422
        %v2564 = vpop.f32.mrb[0].mxu0
        %v2565 = vadd.f32 0.0, %v2564
        %v2566 = vpop.f32.mrb[0].mxu0
        %v2567 = vadd.f32 0.0, %v2566
        %2568 = vdwg.mxu0
        %2569 = vmatprep.subr.mxu0 %v2139
        %2570 = vmatpush1.msra.mxu0 %v2138
        %2571 = vmatprep.subr.mxu0 %v2155
        %2572 = vmatpush1.msra.mxu0 %v2154
        %2573 = vmatprep.subr.mxu0 %v2171
        %2574 = vmatpush1.msra.mxu0 %v2170
        %2575 = vmatprep.subr.mxu0 %v2187
        %2576 = vmatpush1.msra.mxu0 %v2186
        %2577 = vmatprep.subr.mxu0 %v2203
        %2578 = vmatpush1.msra.mxu0 %v2202
        %2579 = vmatprep.subr.mxu0 %v2219
        %2580 = vmatpush1.msra.mxu0 %v2218
        %2581 = vmatprep.subr.mxu0 %v2235
        %2582 = vmatpush1.msra.mxu0 %v2234
        %2583 = vmatprep.subr.mxu0 %v2251
        %2584 = vmatpush1.msra.mxu0 %v2250
        %2585 = vmatprep.subr.mxu0 %v2267
        %2586 = vmatpush1.msra.mxu0 %v2266
        %2587 = vmatprep.subr.mxu0 %v2283
        %2588 = vmatpush1.msra.mxu0 %v2282
        %2589 = vmatprep.subr.mxu0 %v2299
        %2590 = vmatpush1.msra.mxu0 %v2298
        %2591 = vmatprep.subr.mxu0 %v2315
        %2592 = vmatpush1.msra.mxu0 %v2314
        %2593 = vmatprep.subr.mxu0 %v2331
        %2594 = vmatpush1.msra.mxu0 %v2330
        %2595 = vmatprep.subr.mxu0 %v2347
        %2596 = vmatpush1.msra.mxu0 %v2346
        %2597 = vmatprep.subr.mxu0 %v2363
        %2598 = vmatpush1.msra.mxu0 %v2362
        %2599 = vmatprep.subr.mxu0 %v2379
        %2600 = vmatpush1.msra.mxu0 %v2378
        %2601 = vmatprep.subr.mxu0 %v2395
        %2602 = vmatpush1.msra.mxu0 %v2394
        %2603 = vmatprep.subr.mxu0 %v2411
        %2604 = vmatpush1.msra.mxu0 %v2410
        %2605 = vmatprep.subr.mxu0 0.0
        %2606 = vmatpush1.msra.mxu0 0.0
        %2607 = vmatprep.subr.mxu0 0.0
        %2608 = vmatpush1.msra.mxu0 0.0
        %2609 = vmatprep.subr.mxu0 0.0
        %2610 = vmatpush1.msra.mxu0 0.0
        %2611 = vmatprep.subr.mxu0 0.0
        %2612 = vmatpush1.msra.mxu0 0.0
        %2613 = vmatprep.subr.mxu0 0.0
        %2614 = vmatpush1.msra.mxu0 0.0
        %2615 = vmatprep.subr.mxu0 0.0
        %2616 = vmatpush1.msra.mxu0 0.0
        %2617 = vmatprep.subr.mxu0 0.0
        %2618 = vmatpush1.msra.mxu0 0.0
        %2619 = vmatprep.subr.mxu0 0.0
        %2620 = vmatpush1.msra.mxu0 0.0
        %2621 = vmatprep.subr.mxu0 0.0
        %2622 = vmatpush1.msra.mxu0 0.0
        %2623 = vmatprep.subr.mxu0 0.0
        %2624 = vmatpush1.msra.mxu0 0.0
        %2625 = vmatprep.subr.mxu0 0.0
        %2626 = vmatpush1.msra.mxu0 0.0
        %2627 = vmatprep.subr.mxu0 0.0
        %2628 = vmatpush1.msra.mxu0 0.0
        %2629 = vmatprep.subr.mxu0 0.0
        %2630 = vmatpush1.msra.mxu0 0.0
        %2631 = vmatprep.subr.mxu0 0.0
        %2632 = vmatpush1.msra.mxu0 0.0
        %2633 = vmatprep.mubr.f32.mxu0 %v2425
        %2634 = vmatmul.mubr.f32.gmra.mrb[0].mxu0 %v2422
        %v2635 = vpop.f32.mrb[0].mxu0
        %v2636 = vadd.f32 0.0, %v2635
        %v2637 = vpop.f32.mrb[0].mxu0
        %v2638 = vadd.f32 0.0, %v2637
        %2639 = vdwg.mxu0
        %2640 = vmatprep.subr.mxu0 %v2141
        %2641 = vmatpush1.msra.mxu0 %v2140
        %2642 = vmatprep.subr.mxu0 %v2157
        %2643 = vmatpush1.msra.mxu0 %v2156
        %2644 = vmatprep.subr.mxu0 %v2173
        %2645 = vmatpush1.msra.mxu0 %v2172
        %2646 = vmatprep.subr.mxu0 %v2189
        %2647 = vmatpush1.msra.mxu0 %v2188
        %2648 = vmatprep.subr.mxu0 %v2205
        %2649 = vmatpush1.msra.mxu0 %v2204
        %2650 = vmatprep.subr.mxu0 %v2221
        %2651 = vmatpush1.msra.mxu0 %v2220
        %2652 = vmatprep.subr.mxu0 %v2237
        %2653 = vmatpush1.msra.mxu0 %v2236
        %2654 = vmatprep.subr.mxu0 %v2253
        %2655 = vmatpush1.msra.mxu0 %v2252
        %2656 = vmatprep.subr.mxu0 %v2269
        %2657 = vmatpush1.msra.mxu0 %v2268
        %2658 = vmatprep.subr.mxu0 %v2285
        %2659 = vmatpush1.msra.mxu0 %v2284
        %2660 = vmatprep.subr.mxu0 %v2301
        %2661 = vmatpush1.msra.mxu0 %v2300
        %2662 = vmatprep.subr.mxu0 %v2317
        %2663 = vmatpush1.msra.mxu0 %v2316
        %2664 = vmatprep.subr.mxu0 %v2333
        %2665 = vmatpush1.msra.mxu0 %v2332
        %2666 = vmatprep.subr.mxu0 %v2349
        %2667 = vmatpush1.msra.mxu0 %v2348
        %2668 = vmatprep.subr.mxu0 %v2365
        %2669 = vmatpush1.msra.mxu0 %v2364
        %2670 = vmatprep.subr.mxu0 %v2381
        %2671 = vmatpush1.msra.mxu0 %v2380
        %2672 = vmatprep.subr.mxu0 %v2397
        %2673 = vmatpush1.msra.mxu0 %v2396
        %2674 = vmatprep.subr.mxu0 %v2413
        %2675 = vmatpush1.msra.mxu0 %v2412
        %2676 = vmatprep.subr.mxu0 0.0
        %2677 = vmatpush1.msra.mxu0 0.0
        %2678 = vmatprep.subr.mxu0 0.0
        %2679 = vmatpush1.msra.mxu0 0.0
        %2680 = vmatprep.subr.mxu0 0.0
        %2681 = vmatpush1.msra.mxu0 0.0
        %2682 = vmatprep.subr.mxu0 0.0
        %2683 = vmatpush1.msra.mxu0 0.0
        %2684 = vmatprep.subr.mxu0 0.0
        %2685 = vmatpush1.msra.mxu0 0.0
        %2686 = vmatprep.subr.mxu0 0.0
        %2687 = vmatpush1.msra.mxu0 0.0
        %2688 = vmatprep.subr.mxu0 0.0
        %2689 = vmatpush1.msra.mxu0 0.0
        %2690 = vmatprep.subr.mxu0 0.0
        %2691 = vmatpush1.msra.mxu0 0.0
        %2692 = vmatprep.subr.mxu0 0.0
        %2693 = vmatpush1.msra.mxu0 0.0
        %2694 = vmatprep.subr.mxu0 0.0
        %2695 = vmatpush1.msra.mxu0 0.0
        %2696 = vmatprep.subr.mxu0 0.0
        %2697 = vmatpush1.msra.mxu0 0.0
        %2698 = vmatprep.subr.mxu0 0.0
        %2699 = vmatpush1.msra.mxu0 0.0
        %2700 = vmatprep.subr.mxu0 0.0
        %2701 = vmatpush1.msra.mxu0 0.0
        %2702 = vmatprep.subr.mxu0 0.0
        %2703 = vmatpush1.msra.mxu0 0.0
        %2704 = vmatprep.mubr.f32.mxu0 %v2425
        %2705 = vmatmul.mubr.f32.gmra.mrb[0].mxu0 %v2422
        %v2706 = vpop.f32.mrb[0].mxu0
        %v2707 = vadd.f32 0.0, %v2706
        %v2708 = vpop.f32.mrb[0].mxu0
        %v2709 = vadd.f32 0.0, %v2708
        %2710 = vdwg.mxu0
        %2711 = vmatprep.subr.mxu0 %v2143
        %2712 = vmatpush1.msra.mxu0 %v2142
        %2713 = vmatprep.subr.mxu0 %v2159
        %2714 = vmatpush1.msra.mxu0 %v2158
        %2715 = vmatprep.subr.mxu0 %v2175
        %2716 = vmatpush1.msra.mxu0 %v2174
        %2717 = vmatprep.subr.mxu0 %v2191
        %2718 = vmatpush1.msra.mxu0 %v2190
        %2719 = vmatprep.subr.mxu0 %v2207
        %2720 = vmatpush1.msra.mxu0 %v2206
        %2721 = vmatprep.subr.mxu0 %v2223
        %2722 = vmatpush1.msra.mxu0 %v2222
        %2723 = vmatprep.subr.mxu0 %v2239
        %2724 = vmatpush1.msra.mxu0 %v2238
        %2725 = vmatprep.subr.mxu0 %v2255
        %2726 = vmatpush1.msra.mxu0 %v2254
        %2727 = vmatprep.subr.mxu0 %v2271
        %2728 = vmatpush1.msra.mxu0 %v2270
        %2729 = vmatprep.subr.mxu0 %v2287
        %2730 = vmatpush1.msra.mxu0 %v2286
        %2731 = vmatprep.subr.mxu0 %v2303
        %2732 = vmatpush1.msra.mxu0 %v2302
        %2733 = vmatprep.subr.mxu0 %v2319
        %2734 = vmatpush1.msra.mxu0 %v2318
        %2735 = vmatprep.subr.mxu0 %v2335
        %2736 = vmatpush1.msra.mxu0 %v2334
        %2737 = vmatprep.subr.mxu0 %v2351
        %2738 = vmatpush1.msra.mxu0 %v2350
        %2739 = vmatprep.subr.mxu0 %v2367
        %2740 = vmatpush1.msra.mxu0 %v2366
        %2741 = vmatprep.subr.mxu0 %v2383
        %2742 = vmatpush1.msra.mxu0 %v2382
        %2743 = vmatprep.subr.mxu0 %v2399
        %2744 = vmatpush1.msra.mxu0 %v2398
        %2745 = vmatprep.subr.mxu0 %v2415
        %2746 = vmatpush1.msra.mxu0 %v2414
        %2747 = vmatprep.subr.mxu0 0.0
        %2748 = vmatpush1.msra.mxu0 0.0
        %2749 = vmatprep.subr.mxu0 0.0
        %2750 = vmatpush1.msra.mxu0 0.0
        %2751 = vmatprep.subr.mxu0 0.0
        %2752 = vmatpush1.msra.mxu0 0.0
        %2753 = vmatprep.subr.mxu0 0.0
        %2754 = vmatpush1.msra.mxu0 0.0
        %2755 = vmatprep.subr.mxu0 0.0
        %2756 = vmatpush1.msra.mxu0 0.0
        %2757 = vmatprep.subr.mxu0 0.0
        %2758 = vmatpush1.msra.mxu0 0.0
        %2759 = vmatprep.subr.mxu0 0.0
        %2760 = vmatpush1.msra.mxu0 0.0
        %2761 = vmatprep.subr.mxu0 0.0
        %2762 = vmatpush1.msra.mxu0 0.0
        %2763 = vmatprep.subr.mxu0 0.0
        %2764 = vmatpush1.msra.mxu0 0.0
        %2765 = vmatprep.subr.mxu0 0.0
        %2766 = vmatpush1.msra.mxu0 0.0
        %2767 = vmatprep.subr.mxu0 0.0
        %2768 = vmatpush1.msra.mxu0 0.0
        %2769 = vmatprep.subr.mxu0 0.0
        %2770 = vmatpush1.msra.mxu0 0.0
        %2771 = vmatprep.subr.mxu0 0.0
        %2772 = vmatpush1.msra.mxu0 0.0
        %2773 = vmatprep.subr.mxu0 0.0
        %2774 = vmatpush1.msra.mxu0 0.0
        %2775 = vmatprep.mubr.f32.mxu0 %v2425
        %2776 = vmatmul.mubr.f32.gmra.mrb[0].mxu0 %v2422
        %v2777 = vpop.f32.mrb[0].mxu0
        %v2778 = vadd.f32 0.0, %v2777
        %v2779 = vpop.f32.mrb[0].mxu0
        %v2780 = vadd.f32 0.0, %v2779
        %2781 = vdwg.mxu0
        %2782 = vmatprep.subr.mxu0 %v2145
        %2783 = vmatpush1.msra.mxu0 %v2144
        %2784 = vmatprep.subr.mxu0 %v2161
        %2785 = vmatpush1.msra.mxu0 %v2160
        %2786 = vmatprep.subr.mxu0 %v2177
        %2787 = vmatpush1.msra.mxu0 %v2176
        %2788 = vmatprep.subr.mxu0 %v2193
        %2789 = vmatpush1.msra.mxu0 %v2192
        %2790 = vmatprep.subr.mxu0 %v2209
        %2791 = vmatpush1.msra.mxu0 %v2208
        %2792 = vmatprep.subr.mxu0 %v2225
        %2793 = vmatpush1.msra.mxu0 %v2224
        %2794 = vmatprep.subr.mxu0 %v2241
        %2795 = vmatpush1.msra.mxu0 %v2240
        %2796 = vmatprep.subr.mxu0 %v2257
        %2797 = vmatpush1.msra.mxu0 %v2256
        %2798 = vmatprep.subr.mxu0 %v2273
        %2799 = vmatpush1.msra.mxu0 %v2272
        %2800 = vmatprep.subr.mxu0 %v2289
        %2801 = vmatpush1.msra.mxu0 %v2288
        %2802 = vmatprep.subr.mxu0 %v2305
        %2803 = vmatpush1.msra.mxu0 %v2304
        %2804 = vmatprep.subr.mxu0 %v2321
        %2805 = vmatpush1.msra.mxu0 %v2320
        %2806 = vmatprep.subr.mxu0 %v2337
        %2807 = vmatpush1.msra.mxu0 %v2336
        %2808 = vmatprep.subr.mxu0 %v2353
        %2809 = vmatpush1.msra.mxu0 %v2352
        %2810 = vmatprep.subr.mxu0 %v2369
        %2811 = vmatpush1.msra.mxu0 %v2368
        %2812 = vmatprep.subr.mxu0 %v2385
        %2813 = vmatpush1.msra.mxu0 %v2384
        %2814 = vmatprep.subr.mxu0 %v2401
        %2815 = vmatpush1.msra.mxu0 %v2400
        %2816 = vmatprep.subr.mxu0 %v2417
        %2817 = vmatpush1.msra.mxu0 %v2416
        %2818 = vmatprep.subr.mxu0 0.0
        %2819 = vmatpush1.msra.mxu0 0.0
        %2820 = vmatprep.subr.mxu0 0.0
        %2821 = vmatpush1.msra.mxu0 0.0
        %2822 = vmatprep.subr.mxu0 0.0
        %2823 = vmatpush1.msra.mxu0 0.0
        %2824 = vmatprep.subr.mxu0 0.0
        %2825 = vmatpush1.msra.mxu0 0.0
        %2826 = vmatprep.subr.mxu0 0.0
        %2827 = vmatpush1.msra.mxu0 0.0
        %2828 = vmatprep.subr.mxu0 0.0
        %2829 = vmatpush1.msra.mxu0 0.0
        %2830 = vmatprep.subr.mxu0 0.0
        %2831 = vmatpush1.msra.mxu0 0.0
        %2832 = vmatprep.subr.mxu0 0.0
        %2833 = vmatpush1.msra.mxu0 0.0
        %2834 = vmatprep.subr.mxu0 0.0
        %2835 = vmatpush1.msra.mxu0 0.0
        %2836 = vmatprep.subr.mxu0 0.0
        %2837 = vmatpush1.msra.mxu0 0.0
        %2838 = vmatprep.subr.mxu0 0.0
        %2839 = vmatpush1.msra.mxu0 0.0
        %2840 = vmatprep.subr.mxu0 0.0
        %2841 = vmatpush1.msra.mxu0 0.0
        %2842 = vmatprep.subr.mxu0 0.0
        %2843 = vmatpush1.msra.mxu0 0.0
        %2844 = vmatprep.subr.mxu0 0.0
        %2845 = vmatpush1.msra.mxu0 0.0
        %2846 = vmatprep.mubr.f32.mxu0 %v2425
        %2847 = vmatmul.mubr.f32.gmra.mrb[0].mxu0 %v2422
        %v2848 = vpop.f32.mrb[0].mxu0
        %v2849 = vadd.f32 0.0, %v2848
        %v2850 = vpop.f32.mrb[0].mxu0
        %v2851 = vadd.f32 0.0, %v2850
        %2852 = vdwg.mxu0
        %2853 = vmatprep.subr.mxu0 %v2147
        %2854 = vmatpush1.msra.mxu0 %v2146
        %2855 = vmatprep.subr.mxu0 %v2163
        %2856 = vmatpush1.msra.mxu0 %v2162
        %2857 = vmatprep.subr.mxu0 %v2179
        %2858 = vmatpush1.msra.mxu0 %v2178
        %2859 = vmatprep.subr.mxu0 %v2195
        %2860 = vmatpush1.msra.mxu0 %v2194
        %2861 = vmatprep.subr.mxu0 %v2211
        %2862 = vmatpush1.msra.mxu0 %v2210
        %2863 = vmatprep.subr.mxu0 %v2227
        %2864 = vmatpush1.msra.mxu0 %v2226
        %2865 = vmatprep.subr.mxu0 %v2243
        %2866 = vmatpush1.msra.mxu0 %v2242
        %2867 = vmatprep.subr.mxu0 %v2259
        %2868 = vmatpush1.msra.mxu0 %v2258
        %2869 = vmatprep.subr.mxu0 %v2275
        %2870 = vmatpush1.msra.mxu0 %v2274
        %2871 = vmatprep.subr.mxu0 %v2291
        %2872 = vmatpush1.msra.mxu0 %v2290
        %2873 = vmatprep.subr.mxu0 %v2307
        %2874 = vmatpush1.msra.mxu0 %v2306
        %2875 = vmatprep.subr.mxu0 %v2323
        %2876 = vmatpush1.msra.mxu0 %v2322
        %2877 = vmatprep.subr.mxu0 %v2339
        %2878 = vmatpush1.msra.mxu0 %v2338
        %2879 = vmatprep.subr.mxu0 %v2355
        %2880 = vmatpush1.msra.mxu0 %v2354
        %2881 = vmatprep.subr.mxu0 %v2371
        %2882 = vmatpush1.msra.mxu0 %v2370
        %2883 = vmatprep.subr.mxu0 %v2387
        %2884 = vmatpush1.msra.mxu0 %v2386
        %2885 = vmatprep.subr.mxu0 %v2403
        %2886 = vmatpush1.msra.mxu0 %v2402
        %2887 = vmatprep.subr.mxu0 %v2419
        %2888 = vmatpush1.msra.mxu0 %v2418
        %2889 = vmatprep.subr.mxu0 0.0
        %2890 = vmatpush1.msra.mxu0 0.0
        %2891 = vmatprep.subr.mxu0 0.0
        %2892 = vmatpush1.msra.mxu0 0.0
        %2893 = vmatprep.subr.mxu0 0.0
        %2894 = vmatpush1.msra.mxu0 0.0
        %2895 = vmatprep.subr.mxu0 0.0
        %2896 = vmatpush1.msra.mxu0 0.0
        %2897 = vmatprep.subr.mxu0 0.0
        %2898 = vmatpush1.msra.mxu0 0.0
        %2899 = vmatprep.subr.mxu0 0.0
        %2900 = vmatpush1.msra.mxu0 0.0
        %2901 = vmatprep.subr.mxu0 0.0
        %2902 = vmatpush1.msra.mxu0 0.0
        %2903 = vmatprep.subr.mxu0 0.0
        %2904 = vmatpush1.msra.mxu0 0.0
        %2905 = vmatprep.subr.mxu0 0.0
        %2906 = vmatpush1.msra.mxu0 0.0
        %2907 = vmatprep.subr.mxu0 0.0
        %2908 = vmatpush1.msra.mxu0 0.0
        %2909 = vmatprep.subr.mxu0 0.0
        %2910 = vmatpush1.msra.mxu0 0.0
        %2911 = vmatprep.subr.mxu0 0.0
        %2912 = vmatpush1.msra.mxu0 0.0
        %2913 = vmatprep.subr.mxu0 0.0
        %2914 = vmatpush1.msra.mxu0 0.0
        %2915 = vmatprep.subr.mxu0 0.0
        %2916 = vmatpush1.msra.mxu0 0.0
        %2917 = vmatprep.mubr.f32.mxu0 %v2425
        %2918 = vmatmul.mubr.f32.gmra.mrb[0].mxu0 %v2422
        %v2919 = vpop.f32.mrb[0].mxu0
        %v2920 = vadd.f32 0.0, %v2919
        %v2921 = vpop.f32.mrb[0].mxu0
        %v2922 = vadd.f32 0.0, %v2921
        %2923 = vdwg.mxu0
        %2924 = vmatprep.subr.mxu0 %v2149
        %2925 = vmatpush1.msra.mxu0 %v2148
        %2926 = vmatprep.subr.mxu0 %v2165
        %2927 = vmatpush1.msra.mxu0 %v2164
        %2928 = vmatprep.subr.mxu0 %v2181
        %2929 = vmatpush1.msra.mxu0 %v2180
        %2930 = vmatprep.subr.mxu0 %v2197
        %2931 = vmatpush1.msra.mxu0 %v2196
        %2932 = vmatprep.subr.mxu0 %v2213
        %2933 = vmatpush1.msra.mxu0 %v2212
        %2934 = vmatprep.subr.mxu0 %v2229
        %2935 = vmatpush1.msra.mxu0 %v2228
        %2936 = vmatprep.subr.mxu0 %v2245
        %2937 = vmatpush1.msra.mxu0 %v2244
        %2938 = vmatprep.subr.mxu0 %v2261
        %2939 = vmatpush1.msra.mxu0 %v2260
        %2940 = vmatprep.subr.mxu0 %v2277
        %2941 = vmatpush1.msra.mxu0 %v2276
        %2942 = vmatprep.subr.mxu0 %v2293
        %2943 = vmatpush1.msra.mxu0 %v2292
        %2944 = vmatprep.subr.mxu0 %v2309
        %2945 = vmatpush1.msra.mxu0 %v2308
        %2946 = vmatprep.subr.mxu0 %v2325
        %2947 = vmatpush1.msra.mxu0 %v2324
        %2948 = vmatprep.subr.mxu0 %v2341
        %2949 = vmatpush1.msra.mxu0 %v2340
        %2950 = vmatprep.subr.mxu0 %v2357
        %2951 = vmatpush1.msra.mxu0 %v2356
        %2952 = vmatprep.subr.mxu0 %v2373
        %2953 = vmatpush1.msra.mxu0 %v2372
        %2954 = vmatprep.subr.mxu0 %v2389
        %2955 = vmatpush1.msra.mxu0 %v2388
        %2956 = vmatprep.subr.mxu0 %v2405
        %2957 = vmatpush1.msra.mxu0 %v2404
        %2958 = vmatprep.subr.mxu0 %v2421
        %2959 = vmatpush1.msra.mxu0 %v2420
        %2960 = vmatprep.subr.mxu0 0.0
        %2961 = vmatpush1.msra.mxu0 0.0
        %2962 = vmatprep.subr.mxu0 0.0
        %2963 = vmatpush1.msra.mxu0 0.0
        %2964 = vmatprep.subr.mxu0 0.0
        %2965 = vmatpush1.msra.mxu0 0.0
        %2966 = vmatprep.subr.mxu0 0.0
        %2967 = vmatpush1.msra.mxu0 0.0
        %2968 = vmatprep.subr.mxu0 0.0
        %2969 = vmatpush1.msra.mxu0 0.0
        %2970 = vmatprep.subr.mxu0 0.0
        %2971 = vmatpush1.msra.mxu0 0.0
        %2972 = vmatprep.subr.mxu0 0.0
        %2973 = vmatpush1.msra.mxu0 0.0
        %2974 = vmatprep.subr.mxu0 0.0
        %2975 = vmatpush1.msra.mxu0 0.0
        %2976 = vmatprep.subr.mxu0 0.0
        %2977 = vmatpush1.msra.mxu0 0.0
        %2978 = vmatprep.subr.mxu0 0.0
        %2979 = vmatpush1.msra.mxu0 0.0
        %2980 = vmatprep.subr.mxu0 0.0
        %2981 = vmatpush1.msra.mxu0 0.0
        %2982 = vmatprep.subr.mxu0 0.0
        %2983 = vmatpush1.msra.mxu0 0.0
        %2984 = vmatprep.subr.mxu0 0.0
        %2985 = vmatpush1.msra.mxu0 0.0
        %2986 = vmatprep.subr.mxu0 0.0
        %2987 = vmatpush1.msra.mxu0 0.0
        %2988 = vmatprep.mubr.f32.mxu0 %v2425
        %2989 = vmatmul.mubr.f32.gmra.mrb[0].mxu0 %v2422
        %v2990 = vpop.f32.mrb[0].mxu0
        %v2991 = vadd.f32 0.0, %v2990
        %v2992 = vpop.f32.mrb[0].mxu0
        %v2993 = vadd.f32 0.0, %v2992
        %2994 = vdwg.mxu0
        %v2995 = vadd.f32 %v1633, %v2494
        %v2996 = vadd.f32 %v1635, %v2496
        %v2997 = vadd.f32 %v1704, %v2565
        %v2998 = vadd.f32 %v1706, %v2567
        %v2999 = vadd.f32 %v1775, %v2636
        %v3000 = vadd.f32 %v1777, %v2638
        %v3001 = vadd.f32 %v1846, %v2707
        %v3002 = vadd.f32 %v1848, %v2709
        %v3003 = vadd.f32 %v1917, %v2778
        %v3004 = vadd.f32 %v1919, %v2780
        %v3005 = vadd.f32 %v1988, %v2849
        %v3006 = vadd.f32 %v1990, %v2851
        %v3007 = vadd.f32 %v2059, %v2920
        %v3008 = vadd.f32 %v2061, %v2922
        %v3009 = vadd.f32 %v2130, %v2991
        %v3010 = vadd.f32 %v2132, %v2993
        %v3011 = vld [vmem:[#allocation5] sm:$0xff]
        %v3012 = vld [vmem:[#allocation5 + $0x8] sm:$0xff]
        %v3015 = vlaneseq
        %v3016 = vshrl.u32 %v3015, 7
        %v3017 = vsub.s32 0, %v3016
        %v3018 = vrot.slane %v3011, %v3017
        %v3019 = vlaneseq
        %v3020 = vshrl.u32 %v3019, 7
        %v3021 = vsub.s32 1, %v3020
        %v3022 = vrot.slane %v3011, %v3021
        %v3023 = vlaneseq
        %v3024 = vshrl.u32 %v3023, 7
        %v3025 = vsub.s32 2, %v3024
        %v3026 = vrot.slane %v3011, %v3025
        %v3027 = vlaneseq
        %v3028 = vshrl.u32 %v3027, 7
        %v3029 = vsub.s32 3, %v3028
        %v3030 = vrot.slane %v3011, %v3029
        %v3031 = vlaneseq
        %v3032 = vshrl.u32 %v3031, 7
        %v3033 = vsub.s32 4, %v3032
        %v3034 = vrot.slane %v3011, %v3033
        %v3035 = vlaneseq
        %v3036 = vshrl.u32 %v3035, 7
        %v3037 = vsub.s32 5, %v3036
        %v3038 = vrot.slane %v3011, %v3037
        %v3039 = vlaneseq
        %v3040 = vshrl.u32 %v3039, 7
        %v3041 = vsub.s32 6, %v3040
        %v3042 = vrot.slane %v3011, %v3041
        %v3043 = vlaneseq
        %v3044 = vshrl.u32 %v3043, 7
        %v3045 = vsub.s32 7, %v3044
        %v3046 = vrot.slane %v3011, %v3045
        %v3047 = vlaneseq
        %v3048 = vshrl.u32 %v3047, 7
        %v3049 = vsub.s32 0, %v3048
        %v3050 = vrot.slane %v3012, %v3049
        %v3051 = vlaneseq
        %v3052 = vshrl.u32 %v3051, 7
        %v3053 = vsub.s32 1, %v3052
        %v3054 = vrot.slane %v3012, %v3053
        %v3055 = vlaneseq
        %v3056 = vshrl.u32 %v3055, 7
        %v3057 = vsub.s32 2, %v3056
        %v3058 = vrot.slane %v3012, %v3057
        %v3059 = vlaneseq
        %v3060 = vshrl.u32 %v3059, 7
        %v3061 = vsub.s32 3, %v3060
        %v3062 = vrot.slane %v3012, %v3061
        %v3063 = vlaneseq
        %v3064 = vshrl.u32 %v3063, 7
        %v3065 = vsub.s32 4, %v3064
        %v3066 = vrot.slane %v3012, %v3065
        %v3067 = vlaneseq
        %v3068 = vshrl.u32 %v3067, 7
        %v3069 = vsub.s32 5, %v3068
        %v3070 = vrot.slane %v3012, %v3069
        %v3071 = vlaneseq
        %v3072 = vshrl.u32 %v3071, 7
        %v3073 = vsub.s32 6, %v3072
        %v3074 = vrot.slane %v3012, %v3073
        %v3075 = vlaneseq
        %v3076 = vshrl.u32 %v3075, 7
        %v3077 = vsub.s32 7, %v3076
        %v3078 = vrot.slane %v3012, %v3077
        %v3095 = vadd.f32 %v2995, %v3018
        %v3096 = vadd.f32 %v2996, %v3022
        %v3097 = vadd.f32 %v2997, %v3026
        %v3098 = vadd.f32 %v2998, %v3030
        %v3099 = vadd.f32 %v2999, %v3034
        %v3100 = vadd.f32 %v3000, %v3038
        %v3101 = vadd.f32 %v3001, %v3042
        %v3102 = vadd.f32 %v3002, %v3046
        %v3103 = vadd.f32 %v3003, %v3050
        %v3104 = vadd.f32 %v3004, %v3054
        %v3105 = vadd.f32 %v3005, %v3058
        %v3106 = vadd.f32 %v3006, %v3062
        %v3107 = vadd.f32 %v3007, %v3066
        %v3108 = vadd.f32 %v3008, %v3070
        %v3109 = vadd.f32 %v3009, %v3074
        %v3110 = vadd.f32 %v3010, %v3078
        %v3111 = vmax.f32 %v3095, 0.0
        %v3112 = vmax.f32 %v3096, 0.0
        %v3113 = vmax.f32 %v3097, 0.0
        %v3114 = vmax.f32 %v3098, 0.0
        %v3115 = vmax.f32 %v3099, 0.0
        %v3116 = vmax.f32 %v3100, 0.0
        %v3117 = vmax.f32 %v3101, 0.0
        %v3118 = vmax.f32 %v3102, 0.0
        %v3119 = vmax.f32 %v3103, 0.0
        %v3120 = vmax.f32 %v3104, 0.0
        %v3121 = vmax.f32 %v3105, 0.0
        %v3122 = vmax.f32 %v3106, 0.0
        %v3123 = vmax.f32 %v3107, 0.0
        %v3124 = vmax.f32 %v3108, 0.0
        %v3125 = vmax.f32 %v3109, 0.0
        %v3126 = vmax.f32 %v3110, 0.0
        %v3127 = vmax.f32 %v3111, %v3115
        %v3128 = vmax.f32 %v3112, %v3116
        %v3129 = vmax.f32 %v3113, %v3117
        %v3130 = vmax.f32 %v3114, %v3118
        %v3131 = vmax.f32 %v3119, %v3123
        %v3132 = vmax.f32 %v3120, %v3124
        %v3133 = vmax.f32 %v3121, %v3125
        %v3134 = vmax.f32 %v3122, %v3126
        %v3135 = vmax.f32 %v3127, %v3131
        %v3136 = vmax.f32 %v3128, %v3132
        %v3137 = vmax.f32 %v3129, %v3133
        %v3138 = vmax.f32 %v3130, %v3134
        %v3139 = vld [vmem:[#allocation7] sm:$0xff]
        %v3140 = vld [vmem:[#allocation7 + $0x8] sm:$0xff]
        %v3141 = vld [vmem:[#allocation7 + $0x10] sm:$0xff]
        %v3142 = vld [vmem:[#allocation7 + $0x18] sm:$0xff]
        %v3143 = vld [vmem:[#allocation7 + $0x20] sm:$0xff]
        %v3144 = vld [vmem:[#allocation7 + $0x28] sm:$0xff]
        %v3145 = vld [vmem:[#allocation7 + $0x30] sm:$0xff]
        %v3146 = vld [vmem:[#allocation7 + $0x38] sm:$0xff]
        %v3147 = vld [vmem:[#allocation7 + $0x40] sm:$0xff]
        %v3148 = vld [vmem:[#allocation7 + $0x48] sm:$0xff]
        %v3149 = vld [vmem:[#allocation7 + $0x50] sm:$0xff]
        %v3150 = vld [vmem:[#allocation7 + $0x58] sm:$0xff]
        %v3151 = vld [vmem:[#allocation7 + $0x60] sm:$0xff]
        %v3152 = vld [vmem:[#allocation7 + $0x68] sm:$0xff]
        %v3153 = vld [vmem:[#allocation7 + $0x70] sm:$0xff]
        %v3154 = vld [vmem:[#allocation7 + $0x78] sm:$0xff]
        %v3155 = vld [vmem:[#allocation7 + $0x80] sm:$0xff]
        %v3156 = vld [vmem:[#allocation7 + $0x88] sm:$0xff]
        %v3157 = vld [vmem:[#allocation7 + $0x90] sm:$0xff]
        %v3158 = vld [vmem:[#allocation7 + $0x98] sm:$0xff]
        %v3159 = vld [vmem:[#allocation7 + $0xa0] sm:$0xff]
        %v3160 = vld [vmem:[#allocation7 + $0xa8] sm:$0xff]
        %v3161 = vld [vmem:[#allocation7 + $0xb0] sm:$0xff]
        %v3162 = vld [vmem:[#allocation7 + $0xb8] sm:$0xff]
        %v3163 = vld [vmem:[#allocation7 + $0xc0] sm:$0xff]
        %v3164 = vld [vmem:[#allocation7 + $0xc8] sm:$0xff]
        %v3165 = vld [vmem:[#allocation7 + $0xd0] sm:$0xff]
        %v3166 = vld [vmem:[#allocation7 + $0xd8] sm:$0xff]
        %v3167 = vld [vmem:[#allocation7 + $0xe0] sm:$0xff]
        %v3168 = vld [vmem:[#allocation7 + $0xe8] sm:$0xff]
        %v3169 = vld [vmem:[#allocation7 + $0xf0] sm:$0xff]
        %v3170 = vld [vmem:[#allocation7 + $0xf8] sm:$0xff]
        %v3171 = vld [vmem:[#allocation7 + $0x100] sm:$0xff]
        %v3172 = vld [vmem:[#allocation7 + $0x108] sm:$0xff]
        %v3173 = vld [vmem:[#allocation7 + $0x110] sm:$0xff]
        %v3174 = vld [vmem:[#allocation7 + $0x118] sm:$0xff]
        %v3175 = vld [vmem:[#allocation7 + $0x120] sm:$0xff]
        %v3176 = vld [vmem:[#allocation7 + $0x128] sm:$0xff]
        %v3177 = vld [vmem:[#allocation7 + $0x130] sm:$0xff]
        %v3178 = vld [vmem:[#allocation7 + $0x138] sm:$0xff]
        %v3179 = vld [vmem:[#allocation7 + $0x140] sm:$0xff]
        %v3180 = vld [vmem:[#allocation7 + $0x148] sm:$0xff]
        %v3181 = vld [vmem:[#allocation7 + $0x150] sm:$0xff]
        %v3182 = vld [vmem:[#allocation7 + $0x158] sm:$0xff]
        %v3183 = vld [vmem:[#allocation7 + $0x160] sm:$0xff]
        %v3184 = vld [vmem:[#allocation7 + $0x168] sm:$0xff]
        %v3185 = vld [vmem:[#allocation7 + $0x170] sm:$0xff]
        %v3186 = vld [vmem:[#allocation7 + $0x178] sm:$0xff]
        %v3187 = vld [vmem:[#allocation7 + $0x180] sm:$0xff]
        %v3188 = vld [vmem:[#allocation7 + $0x188] sm:$0xff]
        %v3189 = vld [vmem:[#allocation7 + $0x190] sm:$0xff]
        %v3190 = vld [vmem:[#allocation7 + $0x198] sm:$0xff]
        %v3191 = vld [vmem:[#allocation7 + $0x1a0] sm:$0xff]
        %v3192 = vld [vmem:[#allocation7 + $0x1a8] sm:$0xff]
        %v3193 = vld [vmem:[#allocation7 + $0x1b0] sm:$0xff]
        %v3194 = vld [vmem:[#allocation7 + $0x1b8] sm:$0xff]
        %v3195 = vld [vmem:[#allocation7 + $0x1c0] sm:$0xff]
        %v3196 = vld [vmem:[#allocation7 + $0x1c8] sm:$0xff]
        %v3197 = vld [vmem:[#allocation7 + $0x1d0] sm:$0xff]
        %v3198 = vld [vmem:[#allocation7 + $0x1d8] sm:$0xff]
        %v3199 = vld [vmem:[#allocation7 + $0x1e0] sm:$0xff]
        %v3200 = vld [vmem:[#allocation7 + $0x1e8] sm:$0xff]
        %v3201 = vld [vmem:[#allocation7 + $0x1f0] sm:$0xff]
        %v3202 = vld [vmem:[#allocation7 + $0x1f8] sm:$0xff]
        %v3203 = vld [vmem:[#allocation7 + $0x200] sm:$0xff]
        %v3204 = vld [vmem:[#allocation7 + $0x208] sm:$0xff]
        %v3205 = vld [vmem:[#allocation7 + $0x210] sm:$0xff]
        %v3206 = vld [vmem:[#allocation7 + $0x218] sm:$0xff]
        %v3207 = vld [vmem:[#allocation7 + $0x220] sm:$0xff]
        %v3208 = vld [vmem:[#allocation7 + $0x228] sm:$0xff]
        %v3209 = vld [vmem:[#allocation7 + $0x230] sm:$0xff]
        %v3210 = vld [vmem:[#allocation7 + $0x238] sm:$0xff]
        %v3211 = vld [vmem:[#allocation7 + $0x240] sm:$0xff]
        %v3212 = vld [vmem:[#allocation7 + $0x248] sm:$0xff]
        %v3213 = vld [vmem:[#allocation7 + $0x250] sm:$0xff]
        %v3214 = vld [vmem:[#allocation7 + $0x258] sm:$0xff]
        %v3215 = vld [vmem:[#allocation7 + $0x260] sm:$0xff]
        %v3216 = vld [vmem:[#allocation7 + $0x268] sm:$0xff]
        %v3217 = vld [vmem:[#allocation7 + $0x270] sm:$0xff]
        %v3218 = vld [vmem:[#allocation7 + $0x278] sm:$0xff]
        %v3219 = vld [vmem:[#allocation7 + $0x280] sm:$0xff]
        %v3220 = vld [vmem:[#allocation7 + $0x288] sm:$0xff]
        %v3221 = vld [vmem:[#allocation7 + $0x290] sm:$0xff]
        %v3222 = vld [vmem:[#allocation7 + $0x298] sm:$0xff]
        %v3223 = vld [vmem:[#allocation7 + $0x2a0] sm:$0xff]
        %v3224 = vld [vmem:[#allocation7 + $0x2a8] sm:$0xff]
        %v3225 = vld [vmem:[#allocation7 + $0x2b0] sm:$0xff]
        %v3226 = vld [vmem:[#allocation7 + $0x2b8] sm:$0xff]
        %v3227 = vld [vmem:[#allocation7 + $0x2c0] sm:$0xff]
        %v3228 = vld [vmem:[#allocation7 + $0x2c8] sm:$0xff]
        %v3229 = vld [vmem:[#allocation7 + $0x2d0] sm:$0xff]
        %v3230 = vld [vmem:[#allocation7 + $0x2d8] sm:$0xff]
        %v3231 = vld [vmem:[#allocation7 + $0x2e0] sm:$0xff]
        %v3232 = vld [vmem:[#allocation7 + $0x2e8] sm:$0xff]
        %v3233 = vld [vmem:[#allocation7 + $0x2f0] sm:$0xff]
        %v3234 = vld [vmem:[#allocation7 + $0x2f8] sm:$0xff]
        %v3235 = vld [vmem:[#allocation7 + $0x300] sm:$0xff]
        %v3236 = vld [vmem:[#allocation7 + $0x308] sm:$0xff]
        %v3237 = vld [vmem:[#allocation7 + $0x310] sm:$0xff]
        %v3238 = vld [vmem:[#allocation7 + $0x318] sm:$0xff]
        %v3239 = vld [vmem:[#allocation7 + $0x320] sm:$0xff]
        %v3240 = vld [vmem:[#allocation7 + $0x328] sm:$0xff]
        %v3241 = vld [vmem:[#allocation7 + $0x330] sm:$0xff]
        %v3242 = vld [vmem:[#allocation7 + $0x338] sm:$0xff]
        %v3243 = vld [vmem:[#allocation7 + $0x340] sm:$0xff]
        %v3244 = vld [vmem:[#allocation7 + $0x348] sm:$0xff]
        %v3245 = vld [vmem:[#allocation7 + $0x350] sm:$0xff]
        %v3246 = vld [vmem:[#allocation7 + $0x358] sm:$0xff]
        %v3247 = vld [vmem:[#allocation7 + $0x360] sm:$0xff]
        %v3248 = vld [vmem:[#allocation7 + $0x368] sm:$0xff]
        %v3249 = vld [vmem:[#allocation7 + $0x370] sm:$0xff]
        %v3250 = vld [vmem:[#allocation7 + $0x378] sm:$0xff]
        %v3251 = vld [vmem:[#allocation7 + $0x380] sm:$0xff]
        %v3252 = vld [vmem:[#allocation7 + $0x388] sm:$0xff]
        %v3253 = vld [vmem:[#allocation7 + $0x390] sm:$0xff]
        %v3254 = vld [vmem:[#allocation7 + $0x398] sm:$0xff]
        %v3255 = vld [vmem:[#allocation7 + $0x3a0] sm:$0xff]
        %v3256 = vld [vmem:[#allocation7 + $0x3a8] sm:$0xff]
        %v3257 = vld [vmem:[#allocation7 + $0x3b0] sm:$0xff]
        %v3258 = vld [vmem:[#allocation7 + $0x3b8] sm:$0xff]
        %v3259 = vld [vmem:[#allocation7 + $0x3c0] sm:$0xff]
        %v3260 = vld [vmem:[#allocation7 + $0x3c8] sm:$0xff]
        %v3261 = vld [vmem:[#allocation7 + $0x3d0] sm:$0xff]
        %v3262 = vld [vmem:[#allocation7 + $0x3d8] sm:$0xff]
        %v3263 = vld [vmem:[#allocation7 + $0x3e0] sm:$0xff]
        %v3264 = vld [vmem:[#allocation7 + $0x3e8] sm:$0xff]
        %v3265 = vld [vmem:[#allocation7 + $0x3f0] sm:$0xff]
        %v3266 = vld [vmem:[#allocation7 + $0x3f8] sm:$0xff]
        %v3267 = vld [vmem:[#allocation7 + $0x400] sm:$0xff]
        %v3268 = vld [vmem:[#allocation7 + $0x408] sm:$0xff]
        %v3269 = vld [vmem:[#allocation7 + $0x410] sm:$0xff]
        %v3270 = vld [vmem:[#allocation7 + $0x418] sm:$0xff]
        %v3271 = vld [vmem:[#allocation7 + $0x420] sm:$0xff]
        %v3272 = vld [vmem:[#allocation7 + $0x428] sm:$0xff]
        %v3273 = vld [vmem:[#allocation7 + $0x430] sm:$0xff]
        %v3274 = vld [vmem:[#allocation7 + $0x438] sm:$0xff]
        %v3275 = vld [vmem:[#allocation7 + $0x440] sm:$0xff]
        %v3276 = vld [vmem:[#allocation7 + $0x448] sm:$0xff]
        %v3277 = vld [vmem:[#allocation7 + $0x450] sm:$0xff]
        %v3278 = vld [vmem:[#allocation7 + $0x458] sm:$0xff]
        %v3279 = vld [vmem:[#allocation7 + $0x460] sm:$0xff]
        %v3280 = vld [vmem:[#allocation7 + $0x468] sm:$0xff]
        %v3281 = vld [vmem:[#allocation7 + $0x470] sm:$0xff]
        %v3282 = vld [vmem:[#allocation7 + $0x478] sm:$0xff]
        %v3283 = vld [vmem:[#allocation7 + $0x480] sm:$0xff]
        %v3284 = vld [vmem:[#allocation7 + $0x488] sm:$0xff]
        %v3285 = vld [vmem:[#allocation7 + $0x490] sm:$0xff]
        %v3286 = vld [vmem:[#allocation7 + $0x498] sm:$0xff]
        %v3287 = vld [vmem:[#allocation7 + $0x4a0] sm:$0xff]
        %v3288 = vld [vmem:[#allocation7 + $0x4a8] sm:$0xff]
        %v3289 = vld [vmem:[#allocation7 + $0x4b0] sm:$0xff]
        %v3290 = vld [vmem:[#allocation7 + $0x4b8] sm:$0xff]
        %v3291 = vld [vmem:[#allocation7 + $0x4c0] sm:$0xff]
        %v3292 = vld [vmem:[#allocation7 + $0x4c8] sm:$0xff]
        %v3293 = vld [vmem:[#allocation7 + $0x4d0] sm:$0xff]
        %v3294 = vld [vmem:[#allocation7 + $0x4d8] sm:$0xff]
        %v3295 = vld [vmem:[#allocation7 + $0x4e0] sm:$0xff]
        %v3296 = vld [vmem:[#allocation7 + $0x4e8] sm:$0xff]
        %v3297 = vld [vmem:[#allocation7 + $0x4f0] sm:$0xff]
        %v3298 = vld [vmem:[#allocation7 + $0x4f8] sm:$0xff]
        %v3299 = vld [vmem:[#allocation7 + $0x500] sm:$0xff]
        %v3300 = vld [vmem:[#allocation7 + $0x508] sm:$0xff]
        %v3301 = vld [vmem:[#allocation7 + $0x510] sm:$0xff]
        %v3302 = vld [vmem:[#allocation7 + $0x518] sm:$0xff]
        %v3303 = vld [vmem:[#allocation7 + $0x520] sm:$0xff]
        %v3304 = vld [vmem:[#allocation7 + $0x528] sm:$0xff]
        %v3305 = vld [vmem:[#allocation7 + $0x530] sm:$0xff]
        %v3306 = vld [vmem:[#allocation7 + $0x538] sm:$0xff]
        %v3307 = vld [vmem:[#allocation7 + $0x540] sm:$0xff]
        %v3308 = vld [vmem:[#allocation7 + $0x548] sm:$0xff]
        %v3309 = vld [vmem:[#allocation7 + $0x550] sm:$0xff]
        %v3310 = vld [vmem:[#allocation7 + $0x558] sm:$0xff]
        %v3311 = vld [vmem:[#allocation7 + $0x560] sm:$0xff]
        %v3312 = vld [vmem:[#allocation7 + $0x568] sm:$0xff]
        %v3313 = vld [vmem:[#allocation7 + $0x570] sm:$0xff]
        %v3314 = vld [vmem:[#allocation7 + $0x578] sm:$0xff]
        %v3315 = vld [vmem:[#allocation7 + $0x580] sm:$0xff]
        %v3316 = vld [vmem:[#allocation7 + $0x588] sm:$0xff]
        %v3317 = vld [vmem:[#allocation7 + $0x590] sm:$0xff]
        %v3318 = vld [vmem:[#allocation7 + $0x598] sm:$0xff]
        %v3319 = vld [vmem:[#allocation7 + $0x5a0] sm:$0xff]
        %v3320 = vld [vmem:[#allocation7 + $0x5a8] sm:$0xff]
        %v3321 = vld [vmem:[#allocation7 + $0x5b0] sm:$0xff]
        %v3322 = vld [vmem:[#allocation7 + $0x5b8] sm:$0xff]
        %v3323 = vld [vmem:[#allocation7 + $0x5c0] sm:$0xff]
        %v3324 = vld [vmem:[#allocation7 + $0x5c8] sm:$0xff]
        %v3325 = vld [vmem:[#allocation7 + $0x5d0] sm:$0xff]
        %v3326 = vld [vmem:[#allocation7 + $0x5d8] sm:$0xff]
        %v3327 = vld [vmem:[#allocation7 + $0x5e0] sm:$0xff]
        %v3328 = vld [vmem:[#allocation7 + $0x5e8] sm:$0xff]
        %v3329 = vld [vmem:[#allocation7 + $0x5f0] sm:$0xff]
        %v3330 = vld [vmem:[#allocation7 + $0x5f8] sm:$0xff]
        %v3331 = vld [vmem:[#allocation7 + $0x600] sm:$0xff]
        %v3332 = vld [vmem:[#allocation7 + $0x608] sm:$0xff]
        %v3333 = vld [vmem:[#allocation7 + $0x610] sm:$0xff]
        %v3334 = vld [vmem:[#allocation7 + $0x618] sm:$0xff]
        %v3335 = vld [vmem:[#allocation7 + $0x620] sm:$0xff]
        %v3336 = vld [vmem:[#allocation7 + $0x628] sm:$0xff]
        %v3337 = vld [vmem:[#allocation7 + $0x630] sm:$0xff]
        %v3338 = vld [vmem:[#allocation7 + $0x638] sm:$0xff]
        %v3339 = vld [vmem:[#allocation7 + $0x640] sm:$0xff]
        %v3340 = vld [vmem:[#allocation7 + $0x648] sm:$0xff]
        %v3341 = vld [vmem:[#allocation7 + $0x650] sm:$0xff]
        %v3342 = vld [vmem:[#allocation7 + $0x658] sm:$0xff]
        %v3343 = vld [vmem:[#allocation7 + $0x660] sm:$0xff]
        %v3344 = vld [vmem:[#allocation7 + $0x668] sm:$0xff]
        %v3345 = vld [vmem:[#allocation7 + $0x670] sm:$0xff]
        %v3346 = vld [vmem:[#allocation7 + $0x678] sm:$0xff]
        %v3347 = vld [vmem:[#allocation7 + $0x680] sm:$0xff]
        %v3348 = vld [vmem:[#allocation7 + $0x688] sm:$0xff]
        %v3349 = vld [vmem:[#allocation7 + $0x690] sm:$0xff]
        %v3350 = vld [vmem:[#allocation7 + $0x698] sm:$0xff]
        %v3351 = vld [vmem:[#allocation7 + $0x6a0] sm:$0xff]
        %v3352 = vld [vmem:[#allocation7 + $0x6a8] sm:$0xff]
        %v3353 = vld [vmem:[#allocation7 + $0x6b0] sm:$0xff]
        %v3354 = vld [vmem:[#allocation7 + $0x6b8] sm:$0xff]
        %v3355 = vld [vmem:[#allocation7 + $0x6c0] sm:$0xff]
        %v3356 = vld [vmem:[#allocation7 + $0x6c8] sm:$0xff]
        %v3357 = vld [vmem:[#allocation7 + $0x6d0] sm:$0xff]
        %v3358 = vld [vmem:[#allocation7 + $0x6d8] sm:$0xff]
        %v3359 = vld [vmem:[#allocation7 + $0x6e0] sm:$0xff]
        %v3360 = vld [vmem:[#allocation7 + $0x6e8] sm:$0xff]
        %v3361 = vld [vmem:[#allocation7 + $0x6f0] sm:$0xff]
        %v3362 = vld [vmem:[#allocation7 + $0x6f8] sm:$0xff]
        %v3363 = vld [vmem:[#allocation7 + $0x700] sm:$0xff]
        %v3364 = vld [vmem:[#allocation7 + $0x708] sm:$0xff]
        %v3365 = vld [vmem:[#allocation7 + $0x710] sm:$0xff]
        %v3366 = vld [vmem:[#allocation7 + $0x718] sm:$0xff]
        %v3367 = vld [vmem:[#allocation7 + $0x720] sm:$0xff]
        %v3368 = vld [vmem:[#allocation7 + $0x728] sm:$0xff]
        %v3369 = vld [vmem:[#allocation7 + $0x730] sm:$0xff]
        %v3370 = vld [vmem:[#allocation7 + $0x738] sm:$0xff]
        %v3371 = vld [vmem:[#allocation7 + $0x740] sm:$0xff]
        %v3372 = vld [vmem:[#allocation7 + $0x748] sm:$0xff]
        %v3373 = vld [vmem:[#allocation7 + $0x750] sm:$0xff]
        %v3374 = vld [vmem:[#allocation7 + $0x758] sm:$0xff]
        %v3375 = vld [vmem:[#allocation7 + $0x760] sm:$0xff]
        %v3376 = vld [vmem:[#allocation7 + $0x768] sm:$0xff]
        %v3377 = vld [vmem:[#allocation7 + $0x770] sm:$0xff]
        %v3378 = vld [vmem:[#allocation7 + $0x778] sm:$0xff]
        %v3379 = vld [vmem:[#allocation7 + $0x780] sm:$0xff]
        %v3380 = vld [vmem:[#allocation7 + $0x788] sm:$0xff]
        %v3381 = vld [vmem:[#allocation7 + $0x790] sm:$0xff]
        %v3382 = vld [vmem:[#allocation7 + $0x798] sm:$0xff]
        %v3383 = vld [vmem:[#allocation7 + $0x7a0] sm:$0xff]
        %v3384 = vld [vmem:[#allocation7 + $0x7a8] sm:$0xff]
        %v3385 = vld [vmem:[#allocation7 + $0x7b0] sm:$0xff]
        %v3386 = vld [vmem:[#allocation7 + $0x7b8] sm:$0xff]
        %v3387 = vld [vmem:[#allocation7 + $0x7c0] sm:$0xff]
        %v3388 = vld [vmem:[#allocation7 + $0x7c8] sm:$0xff]
        %v3389 = vld [vmem:[#allocation7 + $0x7d0] sm:$0xff]
        %v3390 = vld [vmem:[#allocation7 + $0x7d8] sm:$0xff]
        %v3391 = vld [vmem:[#allocation7 + $0x7e0] sm:$0xff]
        %v3392 = vld [vmem:[#allocation7 + $0x7e8] sm:$0xff]
        %v3393 = vld [vmem:[#allocation7 + $0x7f0] sm:$0xff]
        %v3394 = vld [vmem:[#allocation7 + $0x7f8] sm:$0xff]
        %v3395 = vld [vmem:[#allocation7 + $0x800] sm:$0xff]
        %v3396 = vld [vmem:[#allocation7 + $0x808] sm:$0xff]
        %v3397 = vld [vmem:[#allocation7 + $0x810] sm:$0xff]
        %v3398 = vld [vmem:[#allocation7 + $0x818] sm:$0xff]
        %v3399 = vld [vmem:[#allocation7 + $0x820] sm:$0xff]
        %v3400 = vld [vmem:[#allocation7 + $0x828] sm:$0xff]
        %v3401 = vld [vmem:[#allocation7 + $0x830] sm:$0xff]
        %v3402 = vld [vmem:[#allocation7 + $0x838] sm:$0xff]
        %v3403 = vld [vmem:[#allocation7 + $0x840] sm:$0xff]
        %v3404 = vld [vmem:[#allocation7 + $0x848] sm:$0xff]
        %v3405 = vld [vmem:[#allocation7 + $0x850] sm:$0xff]
        %v3406 = vld [vmem:[#allocation7 + $0x858] sm:$0xff]
        %v3407 = vld [vmem:[#allocation7 + $0x860] sm:$0xff]
        %v3408 = vld [vmem:[#allocation7 + $0x868] sm:$0xff]
        %v3409 = vld [vmem:[#allocation7 + $0x870] sm:$0xff]
        %v3410 = vld [vmem:[#allocation7 + $0x878] sm:$0xff]
        %v3411 = vld [vmem:[#allocation7 + $0x880] sm:$0xff]
        %v3412 = vld [vmem:[#allocation7 + $0x888] sm:$0xff]
        %v3413 = vld [vmem:[#allocation7 + $0x890] sm:$0xff]
        %v3414 = vld [vmem:[#allocation7 + $0x898] sm:$0xff]
        %v3415 = vld [vmem:[#allocation7 + $0x8a0] sm:$0xff]
        %v3416 = vld [vmem:[#allocation7 + $0x8a8] sm:$0xff]
        %v3417 = vld [vmem:[#allocation7 + $0x8b0] sm:$0xff]
        %v3418 = vld [vmem:[#allocation7 + $0x8b8] sm:$0xff]
        %v3419 = vld [vmem:[#allocation7 + $0x8c0] sm:$0xff]
        %v3420 = vld [vmem:[#allocation7 + $0x8c8] sm:$0xff]
        %v3421 = vld [vmem:[#allocation7 + $0x8d0] sm:$0xff]
        %v3422 = vld [vmem:[#allocation7 + $0x8d8] sm:$0xff]
        %v3423 = vld [vmem:[#allocation7 + $0x8e0] sm:$0xff]
        %v3424 = vld [vmem:[#allocation7 + $0x8e8] sm:$0xff]
        %v3425 = vld [vmem:[#allocation7 + $0x8f0] sm:$0xff]
        %v3426 = vld [vmem:[#allocation7 + $0x8f8] sm:$0xff]
        %v3427 = vld [vmem:[#allocation7 + $0x900] sm:$0xff]
        %v3428 = vld [vmem:[#allocation7 + $0x908] sm:$0xff]
        %v3429 = vld [vmem:[#allocation7 + $0x910] sm:$0xff]
        %v3430 = vld [vmem:[#allocation7 + $0x918] sm:$0xff]
        %v3431 = vld [vmem:[#allocation7 + $0x920] sm:$0xff]
        %v3432 = vld [vmem:[#allocation7 + $0x928] sm:$0xff]
        %v3433 = vld [vmem:[#allocation7 + $0x930] sm:$0xff]
        %v3434 = vld [vmem:[#allocation7 + $0x938] sm:$0xff]
        %v3435 = vld [vmem:[#allocation7 + $0x940] sm:$0xff]
        %v3436 = vld [vmem:[#allocation7 + $0x948] sm:$0xff]
        %v3437 = vld [vmem:[#allocation7 + $0x950] sm:$0xff]
        %v3438 = vld [vmem:[#allocation7 + $0x958] sm:$0xff]
        %v3439 = vld [vmem:[#allocation7 + $0x960] sm:$0xff]
        %v3440 = vld [vmem:[#allocation7 + $0x968] sm:$0xff]
        %v3441 = vld [vmem:[#allocation7 + $0x970] sm:$0xff]
        %v3442 = vld [vmem:[#allocation7 + $0x978] sm:$0xff]
        %v3443 = vld [vmem:[#allocation7 + $0x980] sm:$0xff]
        %v3444 = vld [vmem:[#allocation7 + $0x988] sm:$0xff]
        %v3445 = vld [vmem:[#allocation7 + $0x990] sm:$0xff]
        %v3446 = vld [vmem:[#allocation7 + $0x998] sm:$0xff]
        %v3447 = vld [vmem:[#allocation7 + $0x9a0] sm:$0xff]
        %v3448 = vld [vmem:[#allocation7 + $0x9a8] sm:$0xff]
        %v3449 = vld [vmem:[#allocation7 + $0x9b0] sm:$0xff]
        %v3450 = vld [vmem:[#allocation7 + $0x9b8] sm:$0xff]
        %v3451 = vld [vmem:[#allocation7 + $0x9c0] sm:$0xff]
        %v3452 = vld [vmem:[#allocation7 + $0x9c8] sm:$0xff]
        %v3453 = vld [vmem:[#allocation7 + $0x9d0] sm:$0xff]
        %v3454 = vld [vmem:[#allocation7 + $0x9d8] sm:$0xff]
        %v3455 = vld [vmem:[#allocation7 + $0x9e0] sm:$0xff]
        %v3456 = vld [vmem:[#allocation7 + $0x9e8] sm:$0xff]
        %v3457 = vld [vmem:[#allocation7 + $0x9f0] sm:$0xff]
        %v3458 = vld [vmem:[#allocation7 + $0x9f8] sm:$0xff]
        %v3459 = vld [vmem:[#allocation7 + $0xa00] sm:$0xff]
        %v3460 = vld [vmem:[#allocation7 + $0xa08] sm:$0xff]
        %v3461 = vld [vmem:[#allocation7 + $0xa10] sm:$0xff]
        %v3462 = vld [vmem:[#allocation7 + $0xa18] sm:$0xff]
        %v3463 = vld [vmem:[#allocation7 + $0xa20] sm:$0xff]
        %v3464 = vld [vmem:[#allocation7 + $0xa28] sm:$0xff]
        %v3465 = vld [vmem:[#allocation7 + $0xa30] sm:$0xff]
        %v3466 = vld [vmem:[#allocation7 + $0xa38] sm:$0xff]
        %v3467 = vld [vmem:[#allocation7 + $0xa40] sm:$0xff]
        %v3468 = vld [vmem:[#allocation7 + $0xa48] sm:$0xff]
        %v3469 = vld [vmem:[#allocation7 + $0xa50] sm:$0xff]
        %v3470 = vld [vmem:[#allocation7 + $0xa58] sm:$0xff]
        %v3471 = vld [vmem:[#allocation7 + $0xa60] sm:$0xff]
        %v3472 = vld [vmem:[#allocation7 + $0xa68] sm:$0xff]
        %v3473 = vld [vmem:[#allocation7 + $0xa70] sm:$0xff]
        %v3474 = vld [vmem:[#allocation7 + $0xa78] sm:$0xff]
        %v3475 = vld [vmem:[#allocation7 + $0xa80] sm:$0xff]
        %v3476 = vld [vmem:[#allocation7 + $0xa88] sm:$0xff]
        %v3477 = vld [vmem:[#allocation7 + $0xa90] sm:$0xff]
        %v3478 = vld [vmem:[#allocation7 + $0xa98] sm:$0xff]
        %v3479 = vld [vmem:[#allocation7 + $0xaa0] sm:$0xff]
        %v3480 = vld [vmem:[#allocation7 + $0xaa8] sm:$0xff]
        %v3481 = vld [vmem:[#allocation7 + $0xab0] sm:$0xff]
        %v3482 = vld [vmem:[#allocation7 + $0xab8] sm:$0xff]
        %v3483 = vld [vmem:[#allocation7 + $0xac0] sm:$0xff]
        %v3484 = vld [vmem:[#allocation7 + $0xac8] sm:$0xff]
        %v3485 = vld [vmem:[#allocation7 + $0xad0] sm:$0xff]
        %v3486 = vld [vmem:[#allocation7 + $0xad8] sm:$0xff]
        %v3487 = vld [vmem:[#allocation7 + $0xae0] sm:$0xff]
        %v3488 = vld [vmem:[#allocation7 + $0xae8] sm:$0xff]
        %v3489 = vld [vmem:[#allocation7 + $0xaf0] sm:$0xff]
        %v3490 = vld [vmem:[#allocation7 + $0xaf8] sm:$0xff]
        %v3491 = vld [vmem:[#allocation7 + $0xb00] sm:$0xff]
        %v3492 = vld [vmem:[#allocation7 + $0xb08] sm:$0xff]
        %v3493 = vld [vmem:[#allocation7 + $0xb10] sm:$0xff]
        %v3494 = vld [vmem:[#allocation7 + $0xb18] sm:$0xff]
        %v3495 = vld [vmem:[#allocation7 + $0xb20] sm:$0xff]
        %v3496 = vld [vmem:[#allocation7 + $0xb28] sm:$0xff]
        %v3497 = vld [vmem:[#allocation7 + $0xb30] sm:$0xff]
        %v3498 = vld [vmem:[#allocation7 + $0xb38] sm:$0xff]
        %v3499 = vld [vmem:[#allocation7 + $0xb40] sm:$0xff]
        %v3500 = vld [vmem:[#allocation7 + $0xb48] sm:$0xff]
        %v3501 = vld [vmem:[#allocation7 + $0xb50] sm:$0xff]
        %v3502 = vld [vmem:[#allocation7 + $0xb58] sm:$0xff]
        %v3503 = vld [vmem:[#allocation7 + $0xb60] sm:$0xff]
        %v3504 = vld [vmem:[#allocation7 + $0xb68] sm:$0xff]
        %v3505 = vld [vmem:[#allocation7 + $0xb70] sm:$0xff]
        %v3506 = vld [vmem:[#allocation7 + $0xb78] sm:$0xff]
        %v3507 = vld [vmem:[#allocation7 + $0xb80] sm:$0xff]
        %v3508 = vld [vmem:[#allocation7 + $0xb88] sm:$0xff]
        %v3509 = vld [vmem:[#allocation7 + $0xb90] sm:$0xff]
        %v3510 = vld [vmem:[#allocation7 + $0xb98] sm:$0xff]
        %v3511 = vld [vmem:[#allocation7 + $0xba0] sm:$0xff]
        %v3512 = vld [vmem:[#allocation7 + $0xba8] sm:$0xff]
        %v3513 = vld [vmem:[#allocation7 + $0xbb0] sm:$0xff]
        %v3514 = vld [vmem:[#allocation7 + $0xbb8] sm:$0xff]
        %v3515 = vld [vmem:[#allocation7 + $0xbc0] sm:$0xff]
        %v3516 = vld [vmem:[#allocation7 + $0xbc8] sm:$0xff]
        %v3517 = vld [vmem:[#allocation7 + $0xbd0] sm:$0xff]
        %v3518 = vld [vmem:[#allocation7 + $0xbd8] sm:$0xff]
        %v3519 = vld [vmem:[#allocation7 + $0xbe0] sm:$0xff]
        %v3520 = vld [vmem:[#allocation7 + $0xbe8] sm:$0xff]
        %v3521 = vld [vmem:[#allocation7 + $0xbf0] sm:$0xff]
        %v3522 = vld [vmem:[#allocation7 + $0xbf8] sm:$0xff]
        %v3523 = vld [vmem:[#allocation7 + $0xc00] sm:$0xff]
        %v3524 = vld [vmem:[#allocation7 + $0xc08] sm:$0xff]
        %v3525 = vld [vmem:[#allocation7 + $0xc10] sm:$0xff]
        %v3526 = vld [vmem:[#allocation7 + $0xc18] sm:$0xff]
        %v3527 = vld [vmem:[#allocation7 + $0xc20] sm:$0xff]
        %v3528 = vld [vmem:[#allocation7 + $0xc28] sm:$0xff]
        %v3529 = vld [vmem:[#allocation7 + $0xc30] sm:$0xff]
        %v3530 = vld [vmem:[#allocation7 + $0xc38] sm:$0xff]
        %v3531 = vld [vmem:[#allocation7 + $0xc40] sm:$0xff]
        %v3532 = vld [vmem:[#allocation7 + $0xc48] sm:$0xff]
        %v3533 = vld [vmem:[#allocation7 + $0xc50] sm:$0xff]
        %v3534 = vld [vmem:[#allocation7 + $0xc58] sm:$0xff]
        %v3535 = vld [vmem:[#allocation7 + $0xc60] sm:$0xff]
        %v3536 = vld [vmem:[#allocation7 + $0xc68] sm:$0xff]
        %v3537 = vld [vmem:[#allocation7 + $0xc70] sm:$0xff]
        %v3538 = vld [vmem:[#allocation7 + $0xc78] sm:$0xff]
        %v3539 = vld [vmem:[#allocation7 + $0xc80] sm:$0xff]
        %v3540 = vld [vmem:[#allocation7 + $0xc88] sm:$0xff]
        %v3541 = vld [vmem:[#allocation7 + $0xc90] sm:$0xff]
        %v3542 = vld [vmem:[#allocation7 + $0xc98] sm:$0xff]
        %v3543 = vld [vmem:[#allocation7 + $0xca0] sm:$0xff]
        %v3544 = vld [vmem:[#allocation7 + $0xca8] sm:$0xff]
        %v3545 = vld [vmem:[#allocation7 + $0xcb0] sm:$0xff]
        %v3546 = vld [vmem:[#allocation7 + $0xcb8] sm:$0xff]
        %v3547 = vld [vmem:[#allocation7 + $0xcc0] sm:$0xff]
        %v3548 = vld [vmem:[#allocation7 + $0xcc8] sm:$0xff]
        %v3549 = vld [vmem:[#allocation7 + $0xcd0] sm:$0xff]
        %v3550 = vld [vmem:[#allocation7 + $0xcd8] sm:$0xff]
        %v3551 = vld [vmem:[#allocation7 + $0xce0] sm:$0xff]
        %v3552 = vld [vmem:[#allocation7 + $0xce8] sm:$0xff]
        %v3553 = vld [vmem:[#allocation7 + $0xcf0] sm:$0xff]
        %v3554 = vld [vmem:[#allocation7 + $0xcf8] sm:$0xff]
        %v3555 = vld [vmem:[#allocation7 + $0xd00] sm:$0xff]
        %v3556 = vld [vmem:[#allocation7 + $0xd08] sm:$0xff]
        %v3557 = vld [vmem:[#allocation7 + $0xd10] sm:$0xff]
        %v3558 = vld [vmem:[#allocation7 + $0xd18] sm:$0xff]
        %v3559 = vld [vmem:[#allocation7 + $0xd20] sm:$0xff]
        %v3560 = vld [vmem:[#allocation7 + $0xd28] sm:$0xff]
        %v3561 = vld [vmem:[#allocation7 + $0xd30] sm:$0xff]
        %v3562 = vld [vmem:[#allocation7 + $0xd38] sm:$0xff]
        %v3563 = vld [vmem:[#allocation7 + $0xd40] sm:$0xff]
        %v3564 = vld [vmem:[#allocation7 + $0xd48] sm:$0xff]
        %v3565 = vld [vmem:[#allocation7 + $0xd50] sm:$0xff]
        %v3566 = vld [vmem:[#allocation7 + $0xd58] sm:$0xff]
        %v3567 = vld [vmem:[#allocation7 + $0xd60] sm:$0xff]
        %v3568 = vld [vmem:[#allocation7 + $0xd68] sm:$0xff]
        %v3569 = vld [vmem:[#allocation7 + $0xd70] sm:$0xff]
        %v3570 = vld [vmem:[#allocation7 + $0xd78] sm:$0xff]
        %v3571 = vld [vmem:[#allocation7 + $0xd80] sm:$0xff]
        %v3572 = vld [vmem:[#allocation7 + $0xd88] sm:$0xff]
        %v3573 = vld [vmem:[#allocation7 + $0xd90] sm:$0xff]
        %v3574 = vld [vmem:[#allocation7 + $0xd98] sm:$0xff]
        %v3575 = vld [vmem:[#allocation7 + $0xda0] sm:$0xff]
        %v3576 = vld [vmem:[#allocation7 + $0xda8] sm:$0xff]
        %v3577 = vld [vmem:[#allocation7 + $0xdb0] sm:$0xff]
        %v3578 = vld [vmem:[#allocation7 + $0xdb8] sm:$0xff]
        %v3579 = vld [vmem:[#allocation7 + $0xdc0] sm:$0xff]
        %v3580 = vld [vmem:[#allocation7 + $0xdc8] sm:$0xff]
        %v3581 = vld [vmem:[#allocation7 + $0xdd0] sm:$0xff]
        %v3582 = vld [vmem:[#allocation7 + $0xdd8] sm:$0xff]
        %v3583 = vld [vmem:[#allocation7 + $0xde0] sm:$0xff]
        %v3584 = vld [vmem:[#allocation7 + $0xde8] sm:$0xff]
        %v3585 = vld [vmem:[#allocation7 + $0xdf0] sm:$0xff]
        %v3586 = vld [vmem:[#allocation7 + $0xdf8] sm:$0xff]
        %v3587 = vld [vmem:[#allocation7 + $0xe00] sm:$0xff]
        %v3588 = vld [vmem:[#allocation7 + $0xe08] sm:$0xff]
        %v3589 = vld [vmem:[#allocation7 + $0xe10] sm:$0xff]
        %v3590 = vld [vmem:[#allocation7 + $0xe18] sm:$0xff]
        %v3591 = vld [vmem:[#allocation7 + $0xe20] sm:$0xff]
        %v3592 = vld [vmem:[#allocation7 + $0xe28] sm:$0xff]
        %v3593 = vld [vmem:[#allocation7 + $0xe30] sm:$0xff]
        %v3594 = vld [vmem:[#allocation7 + $0xe38] sm:$0xff]
        %v3595 = vld [vmem:[#allocation7 + $0xe40] sm:$0xff]
        %v3596 = vld [vmem:[#allocation7 + $0xe48] sm:$0xff]
        %v3597 = vld [vmem:[#allocation7 + $0xe50] sm:$0xff]
        %v3598 = vld [vmem:[#allocation7 + $0xe58] sm:$0xff]
        %v3599 = vld [vmem:[#allocation7 + $0xe60] sm:$0xff]
        %v3600 = vld [vmem:[#allocation7 + $0xe68] sm:$0xff]
        %v3601 = vld [vmem:[#allocation7 + $0xe70] sm:$0xff]
        %v3602 = vld [vmem:[#allocation7 + $0xe78] sm:$0xff]
        %v3603 = vld [vmem:[#allocation7 + $0xe80] sm:$0xff]
        %v3604 = vld [vmem:[#allocation7 + $0xe88] sm:$0xff]
        %v3605 = vld [vmem:[#allocation7 + $0xe90] sm:$0xff]
        %v3606 = vld [vmem:[#allocation7 + $0xe98] sm:$0xff]
        %v3607 = vld [vmem:[#allocation7 + $0xea0] sm:$0xff]
        %v3608 = vld [vmem:[#allocation7 + $0xea8] sm:$0xff]
        %v3609 = vld [vmem:[#allocation7 + $0xeb0] sm:$0xff]
        %v3610 = vld [vmem:[#allocation7 + $0xeb8] sm:$0xff]
        %v3611 = vld [vmem:[#allocation7 + $0xec0] sm:$0xff]
        %v3612 = vld [vmem:[#allocation7 + $0xec8] sm:$0xff]
        %v3613 = vld [vmem:[#allocation7 + $0xed0] sm:$0xff]
        %v3614 = vld [vmem:[#allocation7 + $0xed8] sm:$0xff]
        %v3615 = vld [vmem:[#allocation7 + $0xee0] sm:$0xff]
        %v3616 = vld [vmem:[#allocation7 + $0xee8] sm:$0xff]
        %v3617 = vld [vmem:[#allocation7 + $0xef0] sm:$0xff]
        %v3618 = vld [vmem:[#allocation7 + $0xef8] sm:$0xff]
        %v3619 = vld [vmem:[#allocation7 + $0xf00] sm:$0xff]
        %v3620 = vld [vmem:[#allocation7 + $0xf08] sm:$0xff]
        %v3621 = vld [vmem:[#allocation7 + $0xf10] sm:$0xff]
        %v3622 = vld [vmem:[#allocation7 + $0xf18] sm:$0xff]
        %v3623 = vld [vmem:[#allocation7 + $0xf20] sm:$0xff]
        %v3624 = vld [vmem:[#allocation7 + $0xf28] sm:$0xff]
        %v3625 = vld [vmem:[#allocation7 + $0xf30] sm:$0xff]
        %v3626 = vld [vmem:[#allocation7 + $0xf38] sm:$0xff]
        %v3627 = vld [vmem:[#allocation7 + $0xf40] sm:$0xff]
        %v3628 = vld [vmem:[#allocation7 + $0xf48] sm:$0xff]
        %v3629 = vld [vmem:[#allocation7 + $0xf50] sm:$0xff]
        %v3630 = vld [vmem:[#allocation7 + $0xf58] sm:$0xff]
        %v3631 = vld [vmem:[#allocation7 + $0xf60] sm:$0xff]
        %v3632 = vld [vmem:[#allocation7 + $0xf68] sm:$0xff]
        %v3633 = vld [vmem:[#allocation7 + $0xf70] sm:$0xff]
        %v3634 = vld [vmem:[#allocation7 + $0xf78] sm:$0xff]
        %v3635 = vld [vmem:[#allocation7 + $0xf80] sm:$0xff]
        %v3636 = vld [vmem:[#allocation7 + $0xf88] sm:$0xff]
        %v3637 = vld [vmem:[#allocation7 + $0xf90] sm:$0xff]
        %v3638 = vld [vmem:[#allocation7 + $0xf98] sm:$0xff]
        %v3639 = vld [vmem:[#allocation7 + $0xfa0] sm:$0xff]
        %v3640 = vld [vmem:[#allocation7 + $0xfa8] sm:$0xff]
        %v3641 = vld [vmem:[#allocation7 + $0xfb0] sm:$0xff]
        %v3642 = vld [vmem:[#allocation7 + $0xfb8] sm:$0xff]
        %v3643 = vld [vmem:[#allocation7 + $0xfc0] sm:$0xff]
        %v3644 = vld [vmem:[#allocation7 + $0xfc8] sm:$0xff]
        %v3645 = vld [vmem:[#allocation7 + $0xfd0] sm:$0xff]
        %v3646 = vld [vmem:[#allocation7 + $0xfd8] sm:$0xff]
        %v3647 = vld [vmem:[#allocation7 + $0xfe0] sm:$0xff]
        %v3648 = vld [vmem:[#allocation7 + $0xfe8] sm:$0xff]
        %v3649 = vld [vmem:[#allocation7 + $0xff0] sm:$0xff]
        %v3650 = vld [vmem:[#allocation7 + $0xff8] sm:$0xff]
        %v3655 = vrot.slane %v3135, 1
        %v3656 = vrot.slane %v3136, 1
        %v3657 = vrot.slane %v3137, 1
        %v3658 = vrot.slane %v3138, 1
        %3663 = vmatprep.subr.mxu0 %v3396
        %3664 = vmatpush1.msra.mxu0 %v3395
        %3665 = vmatprep.subr.mxu0 %v3400
        %3666 = vmatpush1.msra.mxu0 %v3399
        %3667 = vmatprep.subr.mxu0 %v3404
        %3668 = vmatpush1.msra.mxu0 %v3403
        %3669 = vmatprep.subr.mxu0 %v3408
        %3670 = vmatpush1.msra.mxu0 %v3407
        %3671 = vmatprep.subr.mxu0 %v3412
        %3672 = vmatpush1.msra.mxu0 %v3411
        %3673 = vmatprep.subr.mxu0 %v3416
        %3674 = vmatpush1.msra.mxu0 %v3415
        %3675 = vmatprep.subr.mxu0 %v3420
        %3676 = vmatpush1.msra.mxu0 %v3419
        %3677 = vmatprep.subr.mxu0 %v3424
        %3678 = vmatpush1.msra.mxu0 %v3423
        %3679 = vmatprep.subr.mxu0 %v3428
        %3680 = vmatpush1.msra.mxu0 %v3427
        %3681 = vmatprep.subr.mxu0 %v3432
        %3682 = vmatpush1.msra.mxu0 %v3431
        %3683 = vmatprep.subr.mxu0 %v3436
        %3684 = vmatpush1.msra.mxu0 %v3435
        %3685 = vmatprep.subr.mxu0 %v3440
        %3686 = vmatpush1.msra.mxu0 %v3439
        %3687 = vmatprep.subr.mxu0 %v3444
        %3688 = vmatpush1.msra.mxu0 %v3443
        %3689 = vmatprep.subr.mxu0 %v3448
        %3690 = vmatpush1.msra.mxu0 %v3447
        %3691 = vmatprep.subr.mxu0 %v3452
        %3692 = vmatpush1.msra.mxu0 %v3451
        %3693 = vmatprep.subr.mxu0 %v3456
        %3694 = vmatpush1.msra.mxu0 %v3455
        %3695 = vmatprep.subr.mxu0 %v3460
        %3696 = vmatpush1.msra.mxu0 %v3459
        %3697 = vmatprep.subr.mxu0 %v3464
        %3698 = vmatpush1.msra.mxu0 %v3463
        %3699 = vmatprep.subr.mxu0 %v3468
        %3700 = vmatpush1.msra.mxu0 %v3467
        %3701 = vmatprep.subr.mxu0 %v3472
        %3702 = vmatpush1.msra.mxu0 %v3471
        %3703 = vmatprep.subr.mxu0 %v3476
        %3704 = vmatpush1.msra.mxu0 %v3475
        %3705 = vmatprep.subr.mxu0 %v3480
        %3706 = vmatpush1.msra.mxu0 %v3479
        %3707 = vmatprep.subr.mxu0 %v3484
        %3708 = vmatpush1.msra.mxu0 %v3483
        %3709 = vmatprep.subr.mxu0 %v3488
        %3710 = vmatpush1.msra.mxu0 %v3487
        %3711 = vmatprep.subr.mxu0 %v3492
        %3712 = vmatpush1.msra.mxu0 %v3491
        %3713 = vmatprep.subr.mxu0 %v3496
        %3714 = vmatpush1.msra.mxu0 %v3495
        %3715 = vmatprep.subr.mxu0 %v3500
        %3716 = vmatpush1.msra.mxu0 %v3499
        %3717 = vmatprep.subr.mxu0 %v3504
        %3718 = vmatpush1.msra.mxu0 %v3503
        %3719 = vmatprep.subr.mxu0 %v3508
        %3720 = vmatpush1.msra.mxu0 %v3507
        %3721 = vmatprep.subr.mxu0 %v3512
        %3722 = vmatpush1.msra.mxu0 %v3511
        %3723 = vmatprep.subr.mxu0 %v3516
        %3724 = vmatpush1.msra.mxu0 %v3515
        %3725 = vmatprep.subr.mxu0 %v3520
        %3726 = vmatpush1.msra.mxu0 %v3519
        %3727 = vmatprep.mubr.f32.mxu0 %v3656
        %3728 = vmatmul.mubr.f32.gmra.mrb[0].mxu0 %v3655
        %v3729 = vpop.f32.mrb[0].mxu0
        %v3730 = vadd.f32 0.0, %v3729
        %v3731 = vpop.f32.mrb[0].mxu0
        %v3732 = vadd.f32 0.0, %v3731
        %3733 = vdwg.mxu0
        %3734 = vmatprep.subr.mxu0 %v3524
        %3735 = vmatpush1.msra.mxu0 %v3523
        %3736 = vmatprep.subr.mxu0 %v3528
        %3737 = vmatpush1.msra.mxu0 %v3527
        %3738 = vmatprep.subr.mxu0 %v3532
        %3739 = vmatpush1.msra.mxu0 %v3531
        %3740 = vmatprep.subr.mxu0 %v3536
        %3741 = vmatpush1.msra.mxu0 %v3535
        %3742 = vmatprep.subr.mxu0 %v3540
        %3743 = vmatpush1.msra.mxu0 %v3539
        %3744 = vmatprep.subr.mxu0 %v3544
        %3745 = vmatpush1.msra.mxu0 %v3543
        %3746 = vmatprep.subr.mxu0 %v3548
        %3747 = vmatpush1.msra.mxu0 %v3547
        %3748 = vmatprep.subr.mxu0 %v3552
        %3749 = vmatpush1.msra.mxu0 %v3551
        %3750 = vmatprep.subr.mxu0 %v3556
        %3751 = vmatpush1.msra.mxu0 %v3555
        %3752 = vmatprep.subr.mxu0 %v3560
        %3753 = vmatpush1.msra.mxu0 %v3559
        %3754 = vmatprep.subr.mxu0 %v3564
        %3755 = vmatpush1.msra.mxu0 %v3563
        %3756 = vmatprep.subr.mxu0 %v3568
        %3757 = vmatpush1.msra.mxu0 %v3567
        %3758 = vmatprep.subr.mxu0 %v3572
        %3759 = vmatpush1.msra.mxu0 %v3571
        %3760 = vmatprep.subr.mxu0 %v3576
        %3761 = vmatpush1.msra.mxu0 %v3575
        %3762 = vmatprep.subr.mxu0 %v3580
        %3763 = vmatpush1.msra.mxu0 %v3579
        %3764 = vmatprep.subr.mxu0 %v3584
        %3765 = vmatpush1.msra.mxu0 %v3583
        %3766 = vmatprep.subr.mxu0 %v3588
        %3767 = vmatpush1.msra.mxu0 %v3587
        %3768 = vmatprep.subr.mxu0 %v3592
        %3769 = vmatpush1.msra.mxu0 %v3591
        %3770 = vmatprep.subr.mxu0 %v3596
        %3771 = vmatpush1.msra.mxu0 %v3595
        %3772 = vmatprep.subr.mxu0 %v3600
        %3773 = vmatpush1.msra.mxu0 %v3599
        %3774 = vmatprep.subr.mxu0 %v3604
        %3775 = vmatpush1.msra.mxu0 %v3603
        %3776 = vmatprep.subr.mxu0 %v3608
        %3777 = vmatpush1.msra.mxu0 %v3607
        %3778 = vmatprep.subr.mxu0 %v3612
        %3779 = vmatpush1.msra.mxu0 %v3611
        %3780 = vmatprep.subr.mxu0 %v3616
        %3781 = vmatpush1.msra.mxu0 %v3615
        %3782 = vmatprep.subr.mxu0 %v3620
        %3783 = vmatpush1.msra.mxu0 %v3619
        %3784 = vmatprep.subr.mxu0 %v3624
        %3785 = vmatpush1.msra.mxu0 %v3623
        %3786 = vmatprep.subr.mxu0 %v3628
        %3787 = vmatpush1.msra.mxu0 %v3627
        %3788 = vmatprep.subr.mxu0 %v3632
        %3789 = vmatpush1.msra.mxu0 %v3631
        %3790 = vmatprep.subr.mxu0 %v3636
        %3791 = vmatpush1.msra.mxu0 %v3635
        %3792 = vmatprep.subr.mxu0 %v3640
        %3793 = vmatpush1.msra.mxu0 %v3639
        %3794 = vmatprep.subr.mxu0 %v3644
        %3795 = vmatpush1.msra.mxu0 %v3643
        %3796 = vmatprep.subr.mxu0 %v3648
        %3797 = vmatpush1.msra.mxu0 %v3647
        %3798 = vmatprep.mubr.f32.mxu0 %v3658
        %3799 = vmatmul.mubr.f32.gmra.mrb[0].mxu0 %v3657
        %v3800 = vpop.f32.mrb[0].mxu0
        %v3801 = vadd.f32 %v3730, %v3800
        %v3802 = vpop.f32.mrb[0].mxu0
        %v3803 = vadd.f32 %v3732, %v3802
        %3804 = vdwg.mxu0
        %3805 = vmatprep.subr.mxu0 %v3398
        %3806 = vmatpush1.msra.mxu0 %v3397
        %3807 = vmatprep.subr.mxu0 %v3402
        %3808 = vmatpush1.msra.mxu0 %v3401
        %3809 = vmatprep.subr.mxu0 %v3406
        %3810 = vmatpush1.msra.mxu0 %v3405
        %3811 = vmatprep.subr.mxu0 %v3410
        %3812 = vmatpush1.msra.mxu0 %v3409
        %3813 = vmatprep.subr.mxu0 %v3414
        %3814 = vmatpush1.msra.mxu0 %v3413
        %3815 = vmatprep.subr.mxu0 %v3418
        %3816 = vmatpush1.msra.mxu0 %v3417
        %3817 = vmatprep.subr.mxu0 %v3422
        %3818 = vmatpush1.msra.mxu0 %v3421
        %3819 = vmatprep.subr.mxu0 %v3426
        %3820 = vmatpush1.msra.mxu0 %v3425
        %3821 = vmatprep.subr.mxu0 %v3430
        %3822 = vmatpush1.msra.mxu0 %v3429
        %3823 = vmatprep.subr.mxu0 %v3434
        %3824 = vmatpush1.msra.mxu0 %v3433
        %3825 = vmatprep.subr.mxu0 %v3438
        %3826 = vmatpush1.msra.mxu0 %v3437
        %3827 = vmatprep.subr.mxu0 %v3442
        %3828 = vmatpush1.msra.mxu0 %v3441
        %3829 = vmatprep.subr.mxu0 %v3446
        %3830 = vmatpush1.msra.mxu0 %v3445
        %3831 = vmatprep.subr.mxu0 %v3450
        %3832 = vmatpush1.msra.mxu0 %v3449
        %3833 = vmatprep.subr.mxu0 %v3454
        %3834 = vmatpush1.msra.mxu0 %v3453
        %3835 = vmatprep.subr.mxu0 %v3458
        %3836 = vmatpush1.msra.mxu0 %v3457
        %3837 = vmatprep.subr.mxu0 %v3462
        %3838 = vmatpush1.msra.mxu0 %v3461
        %3839 = vmatprep.subr.mxu0 %v3466
        %3840 = vmatpush1.msra.mxu0 %v3465
        %3841 = vmatprep.subr.mxu0 %v3470
        %3842 = vmatpush1.msra.mxu0 %v3469
        %3843 = vmatprep.subr.mxu0 %v3474
        %3844 = vmatpush1.msra.mxu0 %v3473
        %3845 = vmatprep.subr.mxu0 %v3478
        %3846 = vmatpush1.msra.mxu0 %v3477
        %3847 = vmatprep.subr.mxu0 %v3482
        %3848 = vmatpush1.msra.mxu0 %v3481
        %3849 = vmatprep.subr.mxu0 %v3486
        %3850 = vmatpush1.msra.mxu0 %v3485
        %3851 = vmatprep.subr.mxu0 %v3490
        %3852 = vmatpush1.msra.mxu0 %v3489
        %3853 = vmatprep.subr.mxu0 %v3494
        %3854 = vmatpush1.msra.mxu0 %v3493
        %3855 = vmatprep.subr.mxu0 %v3498
        %3856 = vmatpush1.msra.mxu0 %v3497
        %3857 = vmatprep.subr.mxu0 %v3502
        %3858 = vmatpush1.msra.mxu0 %v3501
        %3859 = vmatprep.subr.mxu0 %v3506
        %3860 = vmatpush1.msra.mxu0 %v3505
        %3861 = vmatprep.subr.mxu0 %v3510
        %3862 = vmatpush1.msra.mxu0 %v3509
        %3863 = vmatprep.subr.mxu0 %v3514
        %3864 = vmatpush1.msra.mxu0 %v3513
        %3865 = vmatprep.subr.mxu0 %v3518
        %3866 = vmatpush1.msra.mxu0 %v3517
        %3867 = vmatprep.subr.mxu0 %v3522
        %3868 = vmatpush1.msra.mxu0 %v3521
        %3869 = vmatprep.mubr.f32.mxu0 %v3656
        %3870 = vmatmul.mubr.f32.gmra.mrb[0].mxu0 %v3655
        %v3871 = vpop.f32.mrb[0].mxu0
        %v3872 = vadd.f32 0.0, %v3871
        %v3873 = vpop.f32.mrb[0].mxu0
        %v3874 = vadd.f32 0.0, %v3873
        %3875 = vdwg.mxu0
        %3876 = vmatprep.subr.mxu0 %v3526
        %3877 = vmatpush1.msra.mxu0 %v3525
        %3878 = vmatprep.subr.mxu0 %v3530
        %3879 = vmatpush1.msra.mxu0 %v3529
        %3880 = vmatprep.subr.mxu0 %v3534
        %3881 = vmatpush1.msra.mxu0 %v3533
        %3882 = vmatprep.subr.mxu0 %v3538
        %3883 = vmatpush1.msra.mxu0 %v3537
        %3884 = vmatprep.subr.mxu0 %v3542
        %3885 = vmatpush1.msra.mxu0 %v3541
        %3886 = vmatprep.subr.mxu0 %v3546
        %3887 = vmatpush1.msra.mxu0 %v3545
        %3888 = vmatprep.subr.mxu0 %v3550
        %3889 = vmatpush1.msra.mxu0 %v3549
        %3890 = vmatprep.subr.mxu0 %v3554
        %3891 = vmatpush1.msra.mxu0 %v3553
        %3892 = vmatprep.subr.mxu0 %v3558
        %3893 = vmatpush1.msra.mxu0 %v3557
        %3894 = vmatprep.subr.mxu0 %v3562
        %3895 = vmatpush1.msra.mxu0 %v3561
        %3896 = vmatprep.subr.mxu0 %v3566
        %3897 = vmatpush1.msra.mxu0 %v3565
        %3898 = vmatprep.subr.mxu0 %v3570
        %3899 = vmatpush1.msra.mxu0 %v3569
        %3900 = vmatprep.subr.mxu0 %v3574
        %3901 = vmatpush1.msra.mxu0 %v3573
        %3902 = vmatprep.subr.mxu0 %v3578
        %3903 = vmatpush1.msra.mxu0 %v3577
        %3904 = vmatprep.subr.mxu0 %v3582
        %3905 = vmatpush1.msra.mxu0 %v3581
        %3906 = vmatprep.subr.mxu0 %v3586
        %3907 = vmatpush1.msra.mxu0 %v3585
        %3908 = vmatprep.subr.mxu0 %v3590
        %3909 = vmatpush1.msra.mxu0 %v3589
        %3910 = vmatprep.subr.mxu0 %v3594
        %3911 = vmatpush1.msra.mxu0 %v3593
        %3912 = vmatprep.subr.mxu0 %v3598
        %3913 = vmatpush1.msra.mxu0 %v3597
        %3914 = vmatprep.subr.mxu0 %v3602
        %3915 = vmatpush1.msra.mxu0 %v3601
        %3916 = vmatprep.subr.mxu0 %v3606
        %3917 = vmatpush1.msra.mxu0 %v3605
        %3918 = vmatprep.subr.mxu0 %v3610
        %3919 = vmatpush1.msra.mxu0 %v3609
        %3920 = vmatprep.subr.mxu0 %v3614
        %3921 = vmatpush1.msra.mxu0 %v3613
        %3922 = vmatprep.subr.mxu0 %v3618
        %3923 = vmatpush1.msra.mxu0 %v3617
        %3924 = vmatprep.subr.mxu0 %v3622
        %3925 = vmatpush1.msra.mxu0 %v3621
        %3926 = vmatprep.subr.mxu0 %v3626
        %3927 = vmatpush1.msra.mxu0 %v3625
        %3928 = vmatprep.subr.mxu0 %v3630
        %3929 = vmatpush1.msra.mxu0 %v3629
        %3930 = vmatprep.subr.mxu0 %v3634
        %3931 = vmatpush1.msra.mxu0 %v3633
        %3932 = vmatprep.subr.mxu0 %v3638
        %3933 = vmatpush1.msra.mxu0 %v3637
        %3934 = vmatprep.subr.mxu0 %v3642
        %3935 = vmatpush1.msra.mxu0 %v3641
        %3936 = vmatprep.subr.mxu0 %v3646
        %3937 = vmatpush1.msra.mxu0 %v3645
        %3938 = vmatprep.subr.mxu0 %v3650
        %3939 = vmatpush1.msra.mxu0 %v3649
        %3940 = vmatprep.mubr.f32.mxu0 %v3658
        %3941 = vmatmul.mubr.f32.gmra.mrb[0].mxu0 %v3657
        %v3942 = vpop.f32.mrb[0].mxu0
        %v3943 = vadd.f32 %v3872, %v3942
        %v3944 = vpop.f32.mrb[0].mxu0
        %v3945 = vadd.f32 %v3874, %v3944
        %3946 = vdwg.mxu0
        %3947 = vmatprep.subr.mxu0 %v3140
        %3948 = vmatpush1.msra.mxu0 %v3139
        %3949 = vmatprep.subr.mxu0 %v3144
        %3950 = vmatpush1.msra.mxu0 %v3143
        %3951 = vmatprep.subr.mxu0 %v3148
        %3952 = vmatpush1.msra.mxu0 %v3147
        %3953 = vmatprep.subr.mxu0 %v3152
        %3954 = vmatpush1.msra.mxu0 %v3151
        %3955 = vmatprep.subr.mxu0 %v3156
        %3956 = vmatpush1.msra.mxu0 %v3155
        %3957 = vmatprep.subr.mxu0 %v3160
        %3958 = vmatpush1.msra.mxu0 %v3159
        %3959 = vmatprep.subr.mxu0 %v3164
        %3960 = vmatpush1.msra.mxu0 %v3163
        %3961 = vmatprep.subr.mxu0 %v3168
        %3962 = vmatpush1.msra.mxu0 %v3167
        %3963 = vmatprep.subr.mxu0 %v3172
        %3964 = vmatpush1.msra.mxu0 %v3171
        %3965 = vmatprep.subr.mxu0 %v3176
        %3966 = vmatpush1.msra.mxu0 %v3175
        %3967 = vmatprep.subr.mxu0 %v3180
        %3968 = vmatpush1.msra.mxu0 %v3179
        %3969 = vmatprep.subr.mxu0 %v3184
        %3970 = vmatpush1.msra.mxu0 %v3183
        %3971 = vmatprep.subr.mxu0 %v3188
        %3972 = vmatpush1.msra.mxu0 %v3187
        %3973 = vmatprep.subr.mxu0 %v3192
        %3974 = vmatpush1.msra.mxu0 %v3191
        %3975 = vmatprep.subr.mxu0 %v3196
        %3976 = vmatpush1.msra.mxu0 %v3195
        %3977 = vmatprep.subr.mxu0 %v3200
        %3978 = vmatpush1.msra.mxu0 %v3199
        %3979 = vmatprep.subr.mxu0 %v3204
        %3980 = vmatpush1.msra.mxu0 %v3203
        %3981 = vmatprep.subr.mxu0 %v3208
        %3982 = vmatpush1.msra.mxu0 %v3207
        %3983 = vmatprep.subr.mxu0 %v3212
        %3984 = vmatpush1.msra.mxu0 %v3211
        %3985 = vmatprep.subr.mxu0 %v3216
        %3986 = vmatpush1.msra.mxu0 %v3215
        %3987 = vmatprep.subr.mxu0 %v3220
        %3988 = vmatpush1.msra.mxu0 %v3219
        %3989 = vmatprep.subr.mxu0 %v3224
        %3990 = vmatpush1.msra.mxu0 %v3223
        %3991 = vmatprep.subr.mxu0 %v3228
        %3992 = vmatpush1.msra.mxu0 %v3227
        %3993 = vmatprep.subr.mxu0 %v3232
        %3994 = vmatpush1.msra.mxu0 %v3231
        %3995 = vmatprep.subr.mxu0 %v3236
        %3996 = vmatpush1.msra.mxu0 %v3235
        %3997 = vmatprep.subr.mxu0 %v3240
        %3998 = vmatpush1.msra.mxu0 %v3239
        %3999 = vmatprep.subr.mxu0 %v3244
        %4000 = vmatpush1.msra.mxu0 %v3243
        %4001 = vmatprep.subr.mxu0 %v3248
        %4002 = vmatpush1.msra.mxu0 %v3247
        %4003 = vmatprep.subr.mxu0 %v3252
        %4004 = vmatpush1.msra.mxu0 %v3251
        %4005 = vmatprep.subr.mxu0 %v3256
        %4006 = vmatpush1.msra.mxu0 %v3255
        %4007 = vmatprep.subr.mxu0 %v3260
        %4008 = vmatpush1.msra.mxu0 %v3259
        %4009 = vmatprep.subr.mxu0 %v3264
        %4010 = vmatpush1.msra.mxu0 %v3263
        %4011 = vmatprep.mubr.f32.mxu0 %v3136
        %4012 = vmatmul.mubr.f32.gmra.mrb[0].mxu0 %v3135
        %v4013 = vpop.f32.mrb[0].mxu0
        %v4014 = vadd.f32 %v3801, %v4013
        %v4015 = vpop.f32.mrb[0].mxu0
        %v4016 = vadd.f32 %v3803, %v4015
        %4017 = vdwg.mxu0
        %4018 = vmatprep.subr.mxu0 %v3268
        %4019 = vmatpush1.msra.mxu0 %v3267
        %4020 = vmatprep.subr.mxu0 %v3272
        %4021 = vmatpush1.msra.mxu0 %v3271
        %4022 = vmatprep.subr.mxu0 %v3276
        %4023 = vmatpush1.msra.mxu0 %v3275
        %4024 = vmatprep.subr.mxu0 %v3280
        %4025 = vmatpush1.msra.mxu0 %v3279
        %4026 = vmatprep.subr.mxu0 %v3284
        %4027 = vmatpush1.msra.mxu0 %v3283
        %4028 = vmatprep.subr.mxu0 %v3288
        %4029 = vmatpush1.msra.mxu0 %v3287
        %4030 = vmatprep.subr.mxu0 %v3292
        %4031 = vmatpush1.msra.mxu0 %v3291
        %4032 = vmatprep.subr.mxu0 %v3296
        %4033 = vmatpush1.msra.mxu0 %v3295
        %4034 = vmatprep.subr.mxu0 %v3300
        %4035 = vmatpush1.msra.mxu0 %v3299
        %4036 = vmatprep.subr.mxu0 %v3304
        %4037 = vmatpush1.msra.mxu0 %v3303
        %4038 = vmatprep.subr.mxu0 %v3308
        %4039 = vmatpush1.msra.mxu0 %v3307
        %4040 = vmatprep.subr.mxu0 %v3312
        %4041 = vmatpush1.msra.mxu0 %v3311
        %4042 = vmatprep.subr.mxu0 %v3316
        %4043 = vmatpush1.msra.mxu0 %v3315
        %4044 = vmatprep.subr.mxu0 %v3320
        %4045 = vmatpush1.msra.mxu0 %v3319
        %4046 = vmatprep.subr.mxu0 %v3324
        %4047 = vmatpush1.msra.mxu0 %v3323
        %4048 = vmatprep.subr.mxu0 %v3328
        %4049 = vmatpush1.msra.mxu0 %v3327
        %4050 = vmatprep.subr.mxu0 %v3332
        %4051 = vmatpush1.msra.mxu0 %v3331
        %4052 = vmatprep.subr.mxu0 %v3336
        %4053 = vmatpush1.msra.mxu0 %v3335
        %4054 = vmatprep.subr.mxu0 %v3340
        %4055 = vmatpush1.msra.mxu0 %v3339
        %4056 = vmatprep.subr.mxu0 %v3344
        %4057 = vmatpush1.msra.mxu0 %v3343
        %4058 = vmatprep.subr.mxu0 %v3348
        %4059 = vmatpush1.msra.mxu0 %v3347
        %4060 = vmatprep.subr.mxu0 %v3352
        %4061 = vmatpush1.msra.mxu0 %v3351
        %4062 = vmatprep.subr.mxu0 %v3356
        %4063 = vmatpush1.msra.mxu0 %v3355
        %4064 = vmatprep.subr.mxu0 %v3360
        %4065 = vmatpush1.msra.mxu0 %v3359
        %4066 = vmatprep.subr.mxu0 %v3364
        %4067 = vmatpush1.msra.mxu0 %v3363
        %4068 = vmatprep.subr.mxu0 %v3368
        %4069 = vmatpush1.msra.mxu0 %v3367
        %4070 = vmatprep.subr.mxu0 %v3372
        %4071 = vmatpush1.msra.mxu0 %v3371
        %4072 = vmatprep.subr.mxu0 %v3376
        %4073 = vmatpush1.msra.mxu0 %v3375
        %4074 = vmatprep.subr.mxu0 %v3380
        %4075 = vmatpush1.msra.mxu0 %v3379
        %4076 = vmatprep.subr.mxu0 %v3384
        %4077 = vmatpush1.msra.mxu0 %v3383
        %4078 = vmatprep.subr.mxu0 %v3388
        %4079 = vmatpush1.msra.mxu0 %v3387
        %4080 = vmatprep.subr.mxu0 %v3392
        %4081 = vmatpush1.msra.mxu0 %v3391
        %4082 = vmatprep.mubr.f32.mxu0 %v3138
        %4083 = vmatmul.mubr.f32.gmra.mrb[0].mxu0 %v3137
        %v4084 = vpop.f32.mrb[0].mxu0
        %v4085 = vadd.f32 %v4014, %v4084
        %v4086 = vpop.f32.mrb[0].mxu0
        %v4087 = vadd.f32 %v4016, %v4086
        %4088 = vdwg.mxu0
        %4089 = vmatprep.subr.mxu0 %v3142
        %4090 = vmatpush1.msra.mxu0 %v3141
        %4091 = vmatprep.subr.mxu0 %v3146
        %4092 = vmatpush1.msra.mxu0 %v3145
        %4093 = vmatprep.subr.mxu0 %v3150
        %4094 = vmatpush1.msra.mxu0 %v3149
        %4095 = vmatprep.subr.mxu0 %v3154
        %4096 = vmatpush1.msra.mxu0 %v3153
        %4097 = vmatprep.subr.mxu0 %v3158
        %4098 = vmatpush1.msra.mxu0 %v3157
        %4099 = vmatprep.subr.mxu0 %v3162
        %4100 = vmatpush1.msra.mxu0 %v3161
        %4101 = vmatprep.subr.mxu0 %v3166
        %4102 = vmatpush1.msra.mxu0 %v3165
        %4103 = vmatprep.subr.mxu0 %v3170
        %4104 = vmatpush1.msra.mxu0 %v3169
        %4105 = vmatprep.subr.mxu0 %v3174
        %4106 = vmatpush1.msra.mxu0 %v3173
        %4107 = vmatprep.subr.mxu0 %v3178
        %4108 = vmatpush1.msra.mxu0 %v3177
        %4109 = vmatprep.subr.mxu0 %v3182
        %4110 = vmatpush1.msra.mxu0 %v3181
        %4111 = vmatprep.subr.mxu0 %v3186
        %4112 = vmatpush1.msra.mxu0 %v3185
        %4113 = vmatprep.subr.mxu0 %v3190
        %4114 = vmatpush1.msra.mxu0 %v3189
        %4115 = vmatprep.subr.mxu0 %v3194
        %4116 = vmatpush1.msra.mxu0 %v3193
        %4117 = vmatprep.subr.mxu0 %v3198
        %4118 = vmatpush1.msra.mxu0 %v3197
        %4119 = vmatprep.subr.mxu0 %v3202
        %4120 = vmatpush1.msra.mxu0 %v3201
        %4121 = vmatprep.subr.mxu0 %v3206
        %4122 = vmatpush1.msra.mxu0 %v3205
        %4123 = vmatprep.subr.mxu0 %v3210
        %4124 = vmatpush1.msra.mxu0 %v3209
        %4125 = vmatprep.subr.mxu0 %v3214
        %4126 = vmatpush1.msra.mxu0 %v3213
        %4127 = vmatprep.subr.mxu0 %v3218
        %4128 = vmatpush1.msra.mxu0 %v3217
        %4129 = vmatprep.subr.mxu0 %v3222
        %4130 = vmatpush1.msra.mxu0 %v3221
        %4131 = vmatprep.subr.mxu0 %v3226
        %4132 = vmatpush1.msra.mxu0 %v3225
        %4133 = vmatprep.subr.mxu0 %v3230
        %4134 = vmatpush1.msra.mxu0 %v3229
        %4135 = vmatprep.subr.mxu0 %v3234
        %4136 = vmatpush1.msra.mxu0 %v3233
        %4137 = vmatprep.subr.mxu0 %v3238
        %4138 = vmatpush1.msra.mxu0 %v3237
        %4139 = vmatprep.subr.mxu0 %v3242
        %4140 = vmatpush1.msra.mxu0 %v3241
        %4141 = vmatprep.subr.mxu0 %v3246
        %4142 = vmatpush1.msra.mxu0 %v3245
        %4143 = vmatprep.subr.mxu0 %v3250
        %4144 = vmatpush1.msra.mxu0 %v3249
        %4145 = vmatprep.subr.mxu0 %v3254
        %4146 = vmatpush1.msra.mxu0 %v3253
        %4147 = vmatprep.subr.mxu0 %v3258
        %4148 = vmatpush1.msra.mxu0 %v3257
        %4149 = vmatprep.subr.mxu0 %v3262
        %4150 = vmatpush1.msra.mxu0 %v3261
        %4151 = vmatprep.subr.mxu0 %v3266
        %4152 = vmatpush1.msra.mxu0 %v3265
        %4153 = vmatprep.mubr.f32.mxu0 %v3136
        %4154 = vmatmul.mubr.f32.gmra.mrb[0].mxu0 %v3135
        %v4155 = vpop.f32.mrb[0].mxu0
        %v4156 = vadd.f32 %v3943, %v4155
        %v4157 = vpop.f32.mrb[0].mxu0
        %v4158 = vadd.f32 %v3945, %v4157
        %4159 = vdwg.mxu0
        %4160 = vmatprep.subr.mxu0 %v3270
        %4161 = vmatpush1.msra.mxu0 %v3269
        %4162 = vmatprep.subr.mxu0 %v3274
        %4163 = vmatpush1.msra.mxu0 %v3273
        %4164 = vmatprep.subr.mxu0 %v3278
        %4165 = vmatpush1.msra.mxu0 %v3277
        %4166 = vmatprep.subr.mxu0 %v3282
        %4167 = vmatpush1.msra.mxu0 %v3281
        %4168 = vmatprep.subr.mxu0 %v3286
        %4169 = vmatpush1.msra.mxu0 %v3285
        %4170 = vmatprep.subr.mxu0 %v3290
        %4171 = vmatpush1.msra.mxu0 %v3289
        %4172 = vmatprep.subr.mxu0 %v3294
        %4173 = vmatpush1.msra.mxu0 %v3293
        %4174 = vmatprep.subr.mxu0 %v3298
        %4175 = vmatpush1.msra.mxu0 %v3297
        %4176 = vmatprep.subr.mxu0 %v3302
        %4177 = vmatpush1.msra.mxu0 %v3301
        %4178 = vmatprep.subr.mxu0 %v3306
        %4179 = vmatpush1.msra.mxu0 %v3305
        %4180 = vmatprep.subr.mxu0 %v3310
        %4181 = vmatpush1.msra.mxu0 %v3309
        %4182 = vmatprep.subr.mxu0 %v3314
        %4183 = vmatpush1.msra.mxu0 %v3313
        %4184 = vmatprep.subr.mxu0 %v3318
        %4185 = vmatpush1.msra.mxu0 %v3317
        %4186 = vmatprep.subr.mxu0 %v3322
        %4187 = vmatpush1.msra.mxu0 %v3321
        %4188 = vmatprep.subr.mxu0 %v3326
        %4189 = vmatpush1.msra.mxu0 %v3325
        %4190 = vmatprep.subr.mxu0 %v3330
        %4191 = vmatpush1.msra.mxu0 %v3329
        %4192 = vmatprep.subr.mxu0 %v3334
        %4193 = vmatpush1.msra.mxu0 %v3333
        %4194 = vmatprep.subr.mxu0 %v3338
        %4195 = vmatpush1.msra.mxu0 %v3337
        %4196 = vmatprep.subr.mxu0 %v3342
        %4197 = vmatpush1.msra.mxu0 %v3341
        %4198 = vmatprep.subr.mxu0 %v3346
        %4199 = vmatpush1.msra.mxu0 %v3345
        %4200 = vmatprep.subr.mxu0 %v3350
        %4201 = vmatpush1.msra.mxu0 %v3349
        %4202 = vmatprep.subr.mxu0 %v3354
        %4203 = vmatpush1.msra.mxu0 %v3353
        %4204 = vmatprep.subr.mxu0 %v3358
        %4205 = vmatpush1.msra.mxu0 %v3357
        %4206 = vmatprep.subr.mxu0 %v3362
        %4207 = vmatpush1.msra.mxu0 %v3361
        %4208 = vmatprep.subr.mxu0 %v3366
        %4209 = vmatpush1.msra.mxu0 %v3365
        %4210 = vmatprep.subr.mxu0 %v3370
        %4211 = vmatpush1.msra.mxu0 %v3369
        %4212 = vmatprep.subr.mxu0 %v3374
        %4213 = vmatpush1.msra.mxu0 %v3373
        %4214 = vmatprep.subr.mxu0 %v3378
        %4215 = vmatpush1.msra.mxu0 %v3377
        %4216 = vmatprep.subr.mxu0 %v3382
        %4217 = vmatpush1.msra.mxu0 %v3381
        %4218 = vmatprep.subr.mxu0 %v3386
        %4219 = vmatpush1.msra.mxu0 %v3385
        %4220 = vmatprep.subr.mxu0 %v3390
        %4221 = vmatpush1.msra.mxu0 %v3389
        %4222 = vmatprep.subr.mxu0 %v3394
        %4223 = vmatpush1.msra.mxu0 %v3393
        %4224 = vmatprep.mubr.f32.mxu0 %v3138
        %4225 = vmatmul.mubr.f32.gmra.mrb[0].mxu0 %v3137
        %v4226 = vpop.f32.mrb[0].mxu0
        %v4227 = vadd.f32 %v4156, %v4226
        %v4228 = vpop.f32.mrb[0].mxu0
        %v4229 = vadd.f32 %v4158, %v4228
        %4230 = vdwg.mxu0
        %v4231 = vld [vmem:[#allocation7 + $0x1000] sm:$0xff]
        %v4232 = vld [vmem:[#allocation7 + $0x1008] sm:$0xff]
        %v4233 = vld [vmem:[#allocation7 + $0x1010] sm:$0xff]
        %v4234 = vld [vmem:[#allocation7 + $0x1018] sm:$0xff]
        %v4235 = vld [vmem:[#allocation7 + $0x1020] sm:$0xff]
        %v4236 = vld [vmem:[#allocation7 + $0x1028] sm:$0xff]
        %v4237 = vld [vmem:[#allocation7 + $0x1030] sm:$0xff]
        %v4238 = vld [vmem:[#allocation7 + $0x1038] sm:$0xff]
        %v4239 = vld [vmem:[#allocation7 + $0x1040] sm:$0xff]
        %v4240 = vld [vmem:[#allocation7 + $0x1048] sm:$0xff]
        %v4241 = vld [vmem:[#allocation7 + $0x1050] sm:$0xff]
        %v4242 = vld [vmem:[#allocation7 + $0x1058] sm:$0xff]
        %v4243 = vld [vmem:[#allocation7 + $0x1060] sm:$0xff]
        %v4244 = vld [vmem:[#allocation7 + $0x1068] sm:$0xff]
        %v4245 = vld [vmem:[#allocation7 + $0x1070] sm:$0xff]
        %v4246 = vld [vmem:[#allocation7 + $0x1078] sm:$0xff]
        %v4247 = vld [vmem:[#allocation7 + $0x1080] sm:$0xff]
        %v4248 = vld [vmem:[#allocation7 + $0x1088] sm:$0xff]
        %v4249 = vld [vmem:[#allocation7 + $0x1090] sm:$0xff]
        %v4250 = vld [vmem:[#allocation7 + $0x1098] sm:$0xff]
        %v4251 = vld [vmem:[#allocation7 + $0x10a0] sm:$0xff]
        %v4252 = vld [vmem:[#allocation7 + $0x10a8] sm:$0xff]
        %v4253 = vld [vmem:[#allocation7 + $0x10b0] sm:$0xff]
        %v4254 = vld [vmem:[#allocation7 + $0x10b8] sm:$0xff]
        %v4255 = vld [vmem:[#allocation7 + $0x10c0] sm:$0xff]
        %v4256 = vld [vmem:[#allocation7 + $0x10c8] sm:$0xff]
        %v4257 = vld [vmem:[#allocation7 + $0x10d0] sm:$0xff]
        %v4258 = vld [vmem:[#allocation7 + $0x10d8] sm:$0xff]
        %v4259 = vld [vmem:[#allocation7 + $0x10e0] sm:$0xff]
        %v4260 = vld [vmem:[#allocation7 + $0x10e8] sm:$0xff]
        %v4261 = vld [vmem:[#allocation7 + $0x10f0] sm:$0xff]
        %v4262 = vld [vmem:[#allocation7 + $0x10f8] sm:$0xff]
        %v4263 = vld [vmem:[#allocation7 + $0x1100] sm:$0xff]
        %v4264 = vld [vmem:[#allocation7 + $0x1108] sm:$0xff]
        %v4265 = vld [vmem:[#allocation7 + $0x1110] sm:$0xff]
        %v4266 = vld [vmem:[#allocation7 + $0x1118] sm:$0xff]
        %v4267 = vld [vmem:[#allocation7 + $0x1120] sm:$0xff]
        %v4268 = vld [vmem:[#allocation7 + $0x1128] sm:$0xff]
        %v4269 = vld [vmem:[#allocation7 + $0x1130] sm:$0xff]
        %v4270 = vld [vmem:[#allocation7 + $0x1138] sm:$0xff]
        %v4271 = vld [vmem:[#allocation7 + $0x1140] sm:$0xff]
        %v4272 = vld [vmem:[#allocation7 + $0x1148] sm:$0xff]
        %v4273 = vld [vmem:[#allocation7 + $0x1150] sm:$0xff]
        %v4274 = vld [vmem:[#allocation7 + $0x1158] sm:$0xff]
        %v4275 = vld [vmem:[#allocation7 + $0x1160] sm:$0xff]
        %v4276 = vld [vmem:[#allocation7 + $0x1168] sm:$0xff]
        %v4277 = vld [vmem:[#allocation7 + $0x1170] sm:$0xff]
        %v4278 = vld [vmem:[#allocation7 + $0x1178] sm:$0xff]
        %v4279 = vld [vmem:[#allocation7 + $0x1180] sm:$0xff]
        %v4280 = vld [vmem:[#allocation7 + $0x1188] sm:$0xff]
        %v4281 = vld [vmem:[#allocation7 + $0x1190] sm:$0xff]
        %v4282 = vld [vmem:[#allocation7 + $0x1198] sm:$0xff]
        %v4283 = vld [vmem:[#allocation7 + $0x11a0] sm:$0xff]
        %v4284 = vld [vmem:[#allocation7 + $0x11a8] sm:$0xff]
        %v4285 = vld [vmem:[#allocation7 + $0x11b0] sm:$0xff]
        %v4286 = vld [vmem:[#allocation7 + $0x11b8] sm:$0xff]
        %v4287 = vld [vmem:[#allocation7 + $0x11c0] sm:$0xff]
        %v4288 = vld [vmem:[#allocation7 + $0x11c8] sm:$0xff]
        %v4289 = vld [vmem:[#allocation7 + $0x11d0] sm:$0xff]
        %v4290 = vld [vmem:[#allocation7 + $0x11d8] sm:$0xff]
        %v4291 = vld [vmem:[#allocation7 + $0x11e0] sm:$0xff]
        %v4292 = vld [vmem:[#allocation7 + $0x11e8] sm:$0xff]
        %v4293 = vld [vmem:[#allocation7 + $0x11f0] sm:$0xff]
        %v4294 = vld [vmem:[#allocation7 + $0x11f8] sm:$0xff]
        %v4295 = vld [vmem:[#allocation7 + $0x1200] sm:$0xff]
        %v4296 = vld [vmem:[#allocation7 + $0x1208] sm:$0xff]
        %v4297 = vld [vmem:[#allocation7 + $0x1210] sm:$0xff]
        %v4298 = vld [vmem:[#allocation7 + $0x1218] sm:$0xff]
        %v4299 = vld [vmem:[#allocation7 + $0x1220] sm:$0xff]
        %v4300 = vld [vmem:[#allocation7 + $0x1228] sm:$0xff]
        %v4301 = vld [vmem:[#allocation7 + $0x1230] sm:$0xff]
        %v4302 = vld [vmem:[#allocation7 + $0x1238] sm:$0xff]
        %v4303 = vld [vmem:[#allocation7 + $0x1240] sm:$0xff]
        %v4304 = vld [vmem:[#allocation7 + $0x1248] sm:$0xff]
        %v4305 = vld [vmem:[#allocation7 + $0x1250] sm:$0xff]
        %v4306 = vld [vmem:[#allocation7 + $0x1258] sm:$0xff]
        %v4307 = vld [vmem:[#allocation7 + $0x1260] sm:$0xff]
        %v4308 = vld [vmem:[#allocation7 + $0x1268] sm:$0xff]
        %v4309 = vld [vmem:[#allocation7 + $0x1270] sm:$0xff]
        %v4310 = vld [vmem:[#allocation7 + $0x1278] sm:$0xff]
        %v4311 = vld [vmem:[#allocation7 + $0x1280] sm:$0xff]
        %v4312 = vld [vmem:[#allocation7 + $0x1288] sm:$0xff]
        %v4313 = vld [vmem:[#allocation7 + $0x1290] sm:$0xff]
        %v4314 = vld [vmem:[#allocation7 + $0x1298] sm:$0xff]
        %v4315 = vld [vmem:[#allocation7 + $0x12a0] sm:$0xff]
        %v4316 = vld [vmem:[#allocation7 + $0x12a8] sm:$0xff]
        %v4317 = vld [vmem:[#allocation7 + $0x12b0] sm:$0xff]
        %v4318 = vld [vmem:[#allocation7 + $0x12b8] sm:$0xff]
        %v4319 = vld [vmem:[#allocation7 + $0x12c0] sm:$0xff]
        %v4320 = vld [vmem:[#allocation7 + $0x12c8] sm:$0xff]
        %v4321 = vld [vmem:[#allocation7 + $0x12d0] sm:$0xff]
        %v4322 = vld [vmem:[#allocation7 + $0x12d8] sm:$0xff]
        %v4323 = vld [vmem:[#allocation7 + $0x12e0] sm:$0xff]
        %v4324 = vld [vmem:[#allocation7 + $0x12e8] sm:$0xff]
        %v4325 = vld [vmem:[#allocation7 + $0x12f0] sm:$0xff]
        %v4326 = vld [vmem:[#allocation7 + $0x12f8] sm:$0xff]
        %v4327 = vld [vmem:[#allocation7 + $0x1300] sm:$0xff]
        %v4328 = vld [vmem:[#allocation7 + $0x1308] sm:$0xff]
        %v4329 = vld [vmem:[#allocation7 + $0x1310] sm:$0xff]
        %v4330 = vld [vmem:[#allocation7 + $0x1318] sm:$0xff]
        %v4331 = vld [vmem:[#allocation7 + $0x1320] sm:$0xff]
        %v4332 = vld [vmem:[#allocation7 + $0x1328] sm:$0xff]
        %v4333 = vld [vmem:[#allocation7 + $0x1330] sm:$0xff]
        %v4334 = vld [vmem:[#allocation7 + $0x1338] sm:$0xff]
        %v4335 = vld [vmem:[#allocation7 + $0x1340] sm:$0xff]
        %v4336 = vld [vmem:[#allocation7 + $0x1348] sm:$0xff]
        %v4337 = vld [vmem:[#allocation7 + $0x1350] sm:$0xff]
        %v4338 = vld [vmem:[#allocation7 + $0x1358] sm:$0xff]
        %v4339 = vld [vmem:[#allocation7 + $0x1360] sm:$0xff]
        %v4340 = vld [vmem:[#allocation7 + $0x1368] sm:$0xff]
        %v4341 = vld [vmem:[#allocation7 + $0x1370] sm:$0xff]
        %v4342 = vld [vmem:[#allocation7 + $0x1378] sm:$0xff]
        %v4343 = vld [vmem:[#allocation7 + $0x1380] sm:$0xff]
        %v4344 = vld [vmem:[#allocation7 + $0x1388] sm:$0xff]
        %v4345 = vld [vmem:[#allocation7 + $0x1390] sm:$0xff]
        %v4346 = vld [vmem:[#allocation7 + $0x1398] sm:$0xff]
        %v4347 = vld [vmem:[#allocation7 + $0x13a0] sm:$0xff]
        %v4348 = vld [vmem:[#allocation7 + $0x13a8] sm:$0xff]
        %v4349 = vld [vmem:[#allocation7 + $0x13b0] sm:$0xff]
        %v4350 = vld [vmem:[#allocation7 + $0x13b8] sm:$0xff]
        %v4351 = vld [vmem:[#allocation7 + $0x13c0] sm:$0xff]
        %v4352 = vld [vmem:[#allocation7 + $0x13c8] sm:$0xff]
        %v4353 = vld [vmem:[#allocation7 + $0x13d0] sm:$0xff]
        %v4354 = vld [vmem:[#allocation7 + $0x13d8] sm:$0xff]
        %v4355 = vld [vmem:[#allocation7 + $0x13e0] sm:$0xff]
        %v4356 = vld [vmem:[#allocation7 + $0x13e8] sm:$0xff]
        %v4357 = vld [vmem:[#allocation7 + $0x13f0] sm:$0xff]
        %v4358 = vld [vmem:[#allocation7 + $0x13f8] sm:$0xff]
        %v4359 = vld [vmem:[#allocation7 + $0x1400] sm:$0xff]
        %v4360 = vld [vmem:[#allocation7 + $0x1408] sm:$0xff]
        %v4361 = vld [vmem:[#allocation7 + $0x1410] sm:$0xff]
        %v4362 = vld [vmem:[#allocation7 + $0x1418] sm:$0xff]
        %v4363 = vld [vmem:[#allocation7 + $0x1420] sm:$0xff]
        %v4364 = vld [vmem:[#allocation7 + $0x1428] sm:$0xff]
        %v4365 = vld [vmem:[#allocation7 + $0x1430] sm:$0xff]
        %v4366 = vld [vmem:[#allocation7 + $0x1438] sm:$0xff]
        %v4367 = vld [vmem:[#allocation7 + $0x1440] sm:$0xff]
        %v4368 = vld [vmem:[#allocation7 + $0x1448] sm:$0xff]
        %v4369 = vld [vmem:[#allocation7 + $0x1450] sm:$0xff]
        %v4370 = vld [vmem:[#allocation7 + $0x1458] sm:$0xff]
        %v4371 = vld [vmem:[#allocation7 + $0x1460] sm:$0xff]
        %v4372 = vld [vmem:[#allocation7 + $0x1468] sm:$0xff]
        %v4373 = vld [vmem:[#allocation7 + $0x1470] sm:$0xff]
        %v4374 = vld [vmem:[#allocation7 + $0x1478] sm:$0xff]
        %v4375 = vld [vmem:[#allocation7 + $0x1480] sm:$0xff]
        %v4376 = vld [vmem:[#allocation7 + $0x1488] sm:$0xff]
        %v4377 = vld [vmem:[#allocation7 + $0x1490] sm:$0xff]
        %v4378 = vld [vmem:[#allocation7 + $0x1498] sm:$0xff]
        %v4379 = vld [vmem:[#allocation7 + $0x14a0] sm:$0xff]
        %v4380 = vld [vmem:[#allocation7 + $0x14a8] sm:$0xff]
        %v4381 = vld [vmem:[#allocation7 + $0x14b0] sm:$0xff]
        %v4382 = vld [vmem:[#allocation7 + $0x14b8] sm:$0xff]
        %v4383 = vld [vmem:[#allocation7 + $0x14c0] sm:$0xff]
        %v4384 = vld [vmem:[#allocation7 + $0x14c8] sm:$0xff]
        %v4385 = vld [vmem:[#allocation7 + $0x14d0] sm:$0xff]
        %v4386 = vld [vmem:[#allocation7 + $0x14d8] sm:$0xff]
        %v4387 = vld [vmem:[#allocation7 + $0x14e0] sm:$0xff]
        %v4388 = vld [vmem:[#allocation7 + $0x14e8] sm:$0xff]
        %v4389 = vld [vmem:[#allocation7 + $0x14f0] sm:$0xff]
        %v4390 = vld [vmem:[#allocation7 + $0x14f8] sm:$0xff]
        %v4391 = vld [vmem:[#allocation7 + $0x1500] sm:$0xff]
        %v4392 = vld [vmem:[#allocation7 + $0x1508] sm:$0xff]
        %v4393 = vld [vmem:[#allocation7 + $0x1510] sm:$0xff]
        %v4394 = vld [vmem:[#allocation7 + $0x1518] sm:$0xff]
        %v4395 = vld [vmem:[#allocation7 + $0x1520] sm:$0xff]
        %v4396 = vld [vmem:[#allocation7 + $0x1528] sm:$0xff]
        %v4397 = vld [vmem:[#allocation7 + $0x1530] sm:$0xff]
        %v4398 = vld [vmem:[#allocation7 + $0x1538] sm:$0xff]
        %v4399 = vld [vmem:[#allocation7 + $0x1540] sm:$0xff]
        %v4400 = vld [vmem:[#allocation7 + $0x1548] sm:$0xff]
        %v4401 = vld [vmem:[#allocation7 + $0x1550] sm:$0xff]
        %v4402 = vld [vmem:[#allocation7 + $0x1558] sm:$0xff]
        %v4403 = vld [vmem:[#allocation7 + $0x1560] sm:$0xff]
        %v4404 = vld [vmem:[#allocation7 + $0x1568] sm:$0xff]
        %v4405 = vld [vmem:[#allocation7 + $0x1570] sm:$0xff]
        %v4406 = vld [vmem:[#allocation7 + $0x1578] sm:$0xff]
        %v4407 = vld [vmem:[#allocation7 + $0x1580] sm:$0xff]
        %v4408 = vld [vmem:[#allocation7 + $0x1588] sm:$0xff]
        %v4409 = vld [vmem:[#allocation7 + $0x1590] sm:$0xff]
        %v4410 = vld [vmem:[#allocation7 + $0x1598] sm:$0xff]
        %v4411 = vld [vmem:[#allocation7 + $0x15a0] sm:$0xff]
        %v4412 = vld [vmem:[#allocation7 + $0x15a8] sm:$0xff]
        %v4413 = vld [vmem:[#allocation7 + $0x15b0] sm:$0xff]
        %v4414 = vld [vmem:[#allocation7 + $0x15b8] sm:$0xff]
        %v4415 = vld [vmem:[#allocation7 + $0x15c0] sm:$0xff]
        %v4416 = vld [vmem:[#allocation7 + $0x15c8] sm:$0xff]
        %v4417 = vld [vmem:[#allocation7 + $0x15d0] sm:$0xff]
        %v4418 = vld [vmem:[#allocation7 + $0x15d8] sm:$0xff]
        %v4419 = vld [vmem:[#allocation7 + $0x15e0] sm:$0xff]
        %v4420 = vld [vmem:[#allocation7 + $0x15e8] sm:$0xff]
        %v4421 = vld [vmem:[#allocation7 + $0x15f0] sm:$0xff]
        %v4422 = vld [vmem:[#allocation7 + $0x15f8] sm:$0xff]
        %v4423 = vld [vmem:[#allocation7 + $0x1600] sm:$0xff]
        %v4424 = vld [vmem:[#allocation7 + $0x1608] sm:$0xff]
        %v4425 = vld [vmem:[#allocation7 + $0x1610] sm:$0xff]
        %v4426 = vld [vmem:[#allocation7 + $0x1618] sm:$0xff]
        %v4427 = vld [vmem:[#allocation7 + $0x1620] sm:$0xff]
        %v4428 = vld [vmem:[#allocation7 + $0x1628] sm:$0xff]
        %v4429 = vld [vmem:[#allocation7 + $0x1630] sm:$0xff]
        %v4430 = vld [vmem:[#allocation7 + $0x1638] sm:$0xff]
        %v4431 = vld [vmem:[#allocation7 + $0x1640] sm:$0xff]
        %v4432 = vld [vmem:[#allocation7 + $0x1648] sm:$0xff]
        %v4433 = vld [vmem:[#allocation7 + $0x1650] sm:$0xff]
        %v4434 = vld [vmem:[#allocation7 + $0x1658] sm:$0xff]
        %v4435 = vld [vmem:[#allocation7 + $0x1660] sm:$0xff]
        %v4436 = vld [vmem:[#allocation7 + $0x1668] sm:$0xff]
        %v4437 = vld [vmem:[#allocation7 + $0x1670] sm:$0xff]
        %v4438 = vld [vmem:[#allocation7 + $0x1678] sm:$0xff]
        %v4439 = vld [vmem:[#allocation7 + $0x1680] sm:$0xff]
        %v4440 = vld [vmem:[#allocation7 + $0x1688] sm:$0xff]
        %v4441 = vld [vmem:[#allocation7 + $0x1690] sm:$0xff]
        %v4442 = vld [vmem:[#allocation7 + $0x1698] sm:$0xff]
        %v4443 = vld [vmem:[#allocation7 + $0x16a0] sm:$0xff]
        %v4444 = vld [vmem:[#allocation7 + $0x16a8] sm:$0xff]
        %v4445 = vld [vmem:[#allocation7 + $0x16b0] sm:$0xff]
        %v4446 = vld [vmem:[#allocation7 + $0x16b8] sm:$0xff]
        %v4447 = vld [vmem:[#allocation7 + $0x16c0] sm:$0xff]
        %v4448 = vld [vmem:[#allocation7 + $0x16c8] sm:$0xff]
        %v4449 = vld [vmem:[#allocation7 + $0x16d0] sm:$0xff]
        %v4450 = vld [vmem:[#allocation7 + $0x16d8] sm:$0xff]
        %v4451 = vld [vmem:[#allocation7 + $0x16e0] sm:$0xff]
        %v4452 = vld [vmem:[#allocation7 + $0x16e8] sm:$0xff]
        %v4453 = vld [vmem:[#allocation7 + $0x16f0] sm:$0xff]
        %v4454 = vld [vmem:[#allocation7 + $0x16f8] sm:$0xff]
        %v4455 = vld [vmem:[#allocation7 + $0x1700] sm:$0xff]
        %v4456 = vld [vmem:[#allocation7 + $0x1708] sm:$0xff]
        %v4457 = vld [vmem:[#allocation7 + $0x1710] sm:$0xff]
        %v4458 = vld [vmem:[#allocation7 + $0x1718] sm:$0xff]
        %v4459 = vld [vmem:[#allocation7 + $0x1720] sm:$0xff]
        %v4460 = vld [vmem:[#allocation7 + $0x1728] sm:$0xff]
        %v4461 = vld [vmem:[#allocation7 + $0x1730] sm:$0xff]
        %v4462 = vld [vmem:[#allocation7 + $0x1738] sm:$0xff]
        %v4463 = vld [vmem:[#allocation7 + $0x1740] sm:$0xff]
        %v4464 = vld [vmem:[#allocation7 + $0x1748] sm:$0xff]
        %v4465 = vld [vmem:[#allocation7 + $0x1750] sm:$0xff]
        %v4466 = vld [vmem:[#allocation7 + $0x1758] sm:$0xff]
        %v4467 = vld [vmem:[#allocation7 + $0x1760] sm:$0xff]
        %v4468 = vld [vmem:[#allocation7 + $0x1768] sm:$0xff]
        %v4469 = vld [vmem:[#allocation7 + $0x1770] sm:$0xff]
        %v4470 = vld [vmem:[#allocation7 + $0x1778] sm:$0xff]
        %v4471 = vld [vmem:[#allocation7 + $0x1780] sm:$0xff]
        %v4472 = vld [vmem:[#allocation7 + $0x1788] sm:$0xff]
        %v4473 = vld [vmem:[#allocation7 + $0x1790] sm:$0xff]
        %v4474 = vld [vmem:[#allocation7 + $0x1798] sm:$0xff]
        %v4475 = vld [vmem:[#allocation7 + $0x17a0] sm:$0xff]
        %v4476 = vld [vmem:[#allocation7 + $0x17a8] sm:$0xff]
        %v4477 = vld [vmem:[#allocation7 + $0x17b0] sm:$0xff]
        %v4478 = vld [vmem:[#allocation7 + $0x17b8] sm:$0xff]
        %v4479 = vld [vmem:[#allocation7 + $0x17c0] sm:$0xff]
        %v4480 = vld [vmem:[#allocation7 + $0x17c8] sm:$0xff]
        %v4481 = vld [vmem:[#allocation7 + $0x17d0] sm:$0xff]
        %v4482 = vld [vmem:[#allocation7 + $0x17d8] sm:$0xff]
        %v4483 = vld [vmem:[#allocation7 + $0x17e0] sm:$0xff]
        %v4484 = vld [vmem:[#allocation7 + $0x17e8] sm:$0xff]
        %v4485 = vld [vmem:[#allocation7 + $0x17f0] sm:$0xff]
        %v4486 = vld [vmem:[#allocation7 + $0x17f8] sm:$0xff]
        %v4487 = vrot.slane %v3135, 2
        %v4488 = vrot.slane %v3136, 2
        %v4489 = vrot.slane %v3137, 2
        %v4490 = vrot.slane %v3138, 2
        %4495 = vmatprep.subr.mxu0 %v4232
        %4496 = vmatpush1.msra.mxu0 %v4231
        %4497 = vmatprep.subr.mxu0 %v4236
        %4498 = vmatpush1.msra.mxu0 %v4235
        %4499 = vmatprep.subr.mxu0 %v4240
        %4500 = vmatpush1.msra.mxu0 %v4239
        %4501 = vmatprep.subr.mxu0 %v4244
        %4502 = vmatpush1.msra.mxu0 %v4243
        %4503 = vmatprep.subr.mxu0 %v4248
        %4504 = vmatpush1.msra.mxu0 %v4247
        %4505 = vmatprep.subr.mxu0 %v4252
        %4506 = vmatpush1.msra.mxu0 %v4251
        %4507 = vmatprep.subr.mxu0 %v4256
        %4508 = vmatpush1.msra.mxu0 %v4255
        %4509 = vmatprep.subr.mxu0 %v4260
        %4510 = vmatpush1.msra.mxu0 %v4259
        %4511 = vmatprep.subr.mxu0 %v4264
        %4512 = vmatpush1.msra.mxu0 %v4263
        %4513 = vmatprep.subr.mxu0 %v4268
        %4514 = vmatpush1.msra.mxu0 %v4267
        %4515 = vmatprep.subr.mxu0 %v4272
        %4516 = vmatpush1.msra.mxu0 %v4271
        %4517 = vmatprep.subr.mxu0 %v4276
        %4518 = vmatpush1.msra.mxu0 %v4275
        %4519 = vmatprep.subr.mxu0 %v4280
        %4520 = vmatpush1.msra.mxu0 %v4279
        %4521 = vmatprep.subr.mxu0 %v4284
        %4522 = vmatpush1.msra.mxu0 %v4283
        %4523 = vmatprep.subr.mxu0 %v4288
        %4524 = vmatpush1.msra.mxu0 %v4287
        %4525 = vmatprep.subr.mxu0 %v4292
        %4526 = vmatpush1.msra.mxu0 %v4291
        %4527 = vmatprep.subr.mxu0 %v4296
        %4528 = vmatpush1.msra.mxu0 %v4295
        %4529 = vmatprep.subr.mxu0 %v4300
        %4530 = vmatpush1.msra.mxu0 %v4299
        %4531 = vmatprep.subr.mxu0 %v4304
        %4532 = vmatpush1.msra.mxu0 %v4303
        %4533 = vmatprep.subr.mxu0 %v4308
        %4534 = vmatpush1.msra.mxu0 %v4307
        %4535 = vmatprep.subr.mxu0 %v4312
        %4536 = vmatpush1.msra.mxu0 %v4311
        %4537 = vmatprep.subr.mxu0 %v4316
        %4538 = vmatpush1.msra.mxu0 %v4315
        %4539 = vmatprep.subr.mxu0 %v4320
        %4540 = vmatpush1.msra.mxu0 %v4319
        %4541 = vmatprep.subr.mxu0 %v4324
        %4542 = vmatpush1.msra.mxu0 %v4323
        %4543 = vmatprep.subr.mxu0 %v4328
        %4544 = vmatpush1.msra.mxu0 %v4327
        %4545 = vmatprep.subr.mxu0 %v4332
        %4546 = vmatpush1.msra.mxu0 %v4331
        %4547 = vmatprep.subr.mxu0 %v4336
        %4548 = vmatpush1.msra.mxu0 %v4335
        %4549 = vmatprep.subr.mxu0 %v4340
        %4550 = vmatpush1.msra.mxu0 %v4339
        %4551 = vmatprep.subr.mxu0 %v4344
        %4552 = vmatpush1.msra.mxu0 %v4343
        %4553 = vmatprep.subr.mxu0 %v4348
        %4554 = vmatpush1.msra.mxu0 %v4347
        %4555 = vmatprep.subr.mxu0 %v4352
        %4556 = vmatpush1.msra.mxu0 %v4351
        %4557 = vmatprep.subr.mxu0 %v4356
        %4558 = vmatpush1.msra.mxu0 %v4355
        %4559 = vmatprep.mubr.f32.mxu0 %v4488
        %4560 = vmatmul.mubr.f32.gmra.mrb[0].mxu0 %v4487
        %v4561 = vpop.f32.mrb[0].mxu0
        %v4562 = vadd.f32 0.0, %v4561
        %v4563 = vpop.f32.mrb[0].mxu0
        %v4564 = vadd.f32 0.0, %v4563
        %4565 = vdwg.mxu0
        %4566 = vmatprep.subr.mxu0 %v4360
        %4567 = vmatpush1.msra.mxu0 %v4359
        %4568 = vmatprep.subr.mxu0 %v4364
        %4569 = vmatpush1.msra.mxu0 %v4363
        %4570 = vmatprep.subr.mxu0 %v4368
        %4571 = vmatpush1.msra.mxu0 %v4367
        %4572 = vmatprep.subr.mxu0 %v4372
        %4573 = vmatpush1.msra.mxu0 %v4371
        %4574 = vmatprep.subr.mxu0 %v4376
        %4575 = vmatpush1.msra.mxu0 %v4375
        %4576 = vmatprep.subr.mxu0 %v4380
        %4577 = vmatpush1.msra.mxu0 %v4379
        %4578 = vmatprep.subr.mxu0 %v4384
        %4579 = vmatpush1.msra.mxu0 %v4383
        %4580 = vmatprep.subr.mxu0 %v4388
        %4581 = vmatpush1.msra.mxu0 %v4387
        %4582 = vmatprep.subr.mxu0 %v4392
        %4583 = vmatpush1.msra.mxu0 %v4391
        %4584 = vmatprep.subr.mxu0 %v4396
        %4585 = vmatpush1.msra.mxu0 %v4395
        %4586 = vmatprep.subr.mxu0 %v4400
        %4587 = vmatpush1.msra.mxu0 %v4399
        %4588 = vmatprep.subr.mxu0 %v4404
        %4589 = vmatpush1.msra.mxu0 %v4403
        %4590 = vmatprep.subr.mxu0 %v4408
        %4591 = vmatpush1.msra.mxu0 %v4407
        %4592 = vmatprep.subr.mxu0 %v4412
        %4593 = vmatpush1.msra.mxu0 %v4411
        %4594 = vmatprep.subr.mxu0 %v4416
        %4595 = vmatpush1.msra.mxu0 %v4415
        %4596 = vmatprep.subr.mxu0 %v4420
        %4597 = vmatpush1.msra.mxu0 %v4419
        %4598 = vmatprep.subr.mxu0 %v4424
        %4599 = vmatpush1.msra.mxu0 %v4423
        %4600 = vmatprep.subr.mxu0 %v4428
        %4601 = vmatpush1.msra.mxu0 %v4427
        %4602 = vmatprep.subr.mxu0 %v4432
        %4603 = vmatpush1.msra.mxu0 %v4431
        %4604 = vmatprep.subr.mxu0 %v4436
        %4605 = vmatpush1.msra.mxu0 %v4435
        %4606 = vmatprep.subr.mxu0 %v4440
        %4607 = vmatpush1.msra.mxu0 %v4439
        %4608 = vmatprep.subr.mxu0 %v4444
        %4609 = vmatpush1.msra.mxu0 %v4443
        %4610 = vmatprep.subr.mxu0 %v4448
        %4611 = vmatpush1.msra.mxu0 %v4447
        %4612 = vmatprep.subr.mxu0 %v4452
        %4613 = vmatpush1.msra.mxu0 %v4451
        %4614 = vmatprep.subr.mxu0 %v4456
        %4615 = vmatpush1.msra.mxu0 %v4455
        %4616 = vmatprep.subr.mxu0 %v4460
        %4617 = vmatpush1.msra.mxu0 %v4459
        %4618 = vmatprep.subr.mxu0 %v4464
        %4619 = vmatpush1.msra.mxu0 %v4463
        %4620 = vmatprep.subr.mxu0 %v4468
        %4621 = vmatpush1.msra.mxu0 %v4467
        %4622 = vmatprep.subr.mxu0 %v4472
        %4623 = vmatpush1.msra.mxu0 %v4471
        %4624 = vmatprep.subr.mxu0 %v4476
        %4625 = vmatpush1.msra.mxu0 %v4475
        %4626 = vmatprep.subr.mxu0 %v4480
        %4627 = vmatpush1.msra.mxu0 %v4479
        %4628 = vmatprep.subr.mxu0 %v4484
        %4629 = vmatpush1.msra.mxu0 %v4483
        %4630 = vmatprep.mubr.f32.mxu0 %v4490
        %4631 = vmatmul.mubr.f32.gmra.mrb[0].mxu0 %v4489
        %v4632 = vpop.f32.mrb[0].mxu0
        %v4633 = vadd.f32 %v4562, %v4632
        %v4634 = vpop.f32.mrb[0].mxu0
        %v4635 = vadd.f32 %v4564, %v4634
        %4636 = vdwg.mxu0
        %4637 = vmatprep.subr.mxu0 %v4234
        %4638 = vmatpush1.msra.mxu0 %v4233
        %4639 = vmatprep.subr.mxu0 %v4238
        %4640 = vmatpush1.msra.mxu0 %v4237
        %4641 = vmatprep.subr.mxu0 %v4242
        %4642 = vmatpush1.msra.mxu0 %v4241
        %4643 = vmatprep.subr.mxu0 %v4246
        %4644 = vmatpush1.msra.mxu0 %v4245
        %4645 = vmatprep.subr.mxu0 %v4250
        %4646 = vmatpush1.msra.mxu0 %v4249
        %4647 = vmatprep.subr.mxu0 %v4254
        %4648 = vmatpush1.msra.mxu0 %v4253
        %4649 = vmatprep.subr.mxu0 %v4258
        %4650 = vmatpush1.msra.mxu0 %v4257
        %4651 = vmatprep.subr.mxu0 %v4262
        %4652 = vmatpush1.msra.mxu0 %v4261
        %4653 = vmatprep.subr.mxu0 %v4266
        %4654 = vmatpush1.msra.mxu0 %v4265
        %4655 = vmatprep.subr.mxu0 %v4270
        %4656 = vmatpush1.msra.mxu0 %v4269
        %4657 = vmatprep.subr.mxu0 %v4274
        %4658 = vmatpush1.msra.mxu0 %v4273
        %4659 = vmatprep.subr.mxu0 %v4278
        %4660 = vmatpush1.msra.mxu0 %v4277
        %4661 = vmatprep.subr.mxu0 %v4282
        %4662 = vmatpush1.msra.mxu0 %v4281
        %4663 = vmatprep.subr.mxu0 %v4286
        %4664 = vmatpush1.msra.mxu0 %v4285
        %4665 = vmatprep.subr.mxu0 %v4290
        %4666 = vmatpush1.msra.mxu0 %v4289
        %4667 = vmatprep.subr.mxu0 %v4294
        %4668 = vmatpush1.msra.mxu0 %v4293
        %4669 = vmatprep.subr.mxu0 %v4298
        %4670 = vmatpush1.msra.mxu0 %v4297
        %4671 = vmatprep.subr.mxu0 %v4302
        %4672 = vmatpush1.msra.mxu0 %v4301
        %4673 = vmatprep.subr.mxu0 %v4306
        %4674 = vmatpush1.msra.mxu0 %v4305
        %4675 = vmatprep.subr.mxu0 %v4310
        %4676 = vmatpush1.msra.mxu0 %v4309
        %4677 = vmatprep.subr.mxu0 %v4314
        %4678 = vmatpush1.msra.mxu0 %v4313
        %4679 = vmatprep.subr.mxu0 %v4318
        %4680 = vmatpush1.msra.mxu0 %v4317
        %4681 = vmatprep.subr.mxu0 %v4322
        %4682 = vmatpush1.msra.mxu0 %v4321
        %4683 = vmatprep.subr.mxu0 %v4326
        %4684 = vmatpush1.msra.mxu0 %v4325
        %4685 = vmatprep.subr.mxu0 %v4330
        %4686 = vmatpush1.msra.mxu0 %v4329
        %4687 = vmatprep.subr.mxu0 %v4334
        %4688 = vmatpush1.msra.mxu0 %v4333
        %4689 = vmatprep.subr.mxu0 %v4338
        %4690 = vmatpush1.msra.mxu0 %v4337
        %4691 = vmatprep.subr.mxu0 %v4342
        %4692 = vmatpush1.msra.mxu0 %v4341
        %4693 = vmatprep.subr.mxu0 %v4346
        %4694 = vmatpush1.msra.mxu0 %v4345
        %4695 = vmatprep.subr.mxu0 %v4350
        %4696 = vmatpush1.msra.mxu0 %v4349
        %4697 = vmatprep.subr.mxu0 %v4354
        %4698 = vmatpush1.msra.mxu0 %v4353
        %4699 = vmatprep.subr.mxu0 %v4358
        %4700 = vmatpush1.msra.mxu0 %v4357
        %4701 = vmatprep.mubr.f32.mxu0 %v4488
        %4702 = vmatmul.mubr.f32.gmra.mrb[0].mxu0 %v4487
        %v4703 = vpop.f32.mrb[0].mxu0
        %v4704 = vadd.f32 0.0, %v4703
        %v4705 = vpop.f32.mrb[0].mxu0
        %v4706 = vadd.f32 0.0, %v4705
        %4707 = vdwg.mxu0
        %4708 = vmatprep.subr.mxu0 %v4362
        %4709 = vmatpush1.msra.mxu0 %v4361
        %4710 = vmatprep.subr.mxu0 %v4366
        %4711 = vmatpush1.msra.mxu0 %v4365
        %4712 = vmatprep.subr.mxu0 %v4370
        %4713 = vmatpush1.msra.mxu0 %v4369
        %4714 = vmatprep.subr.mxu0 %v4374
        %4715 = vmatpush1.msra.mxu0 %v4373
        %4716 = vmatprep.subr.mxu0 %v4378
        %4717 = vmatpush1.msra.mxu0 %v4377
        %4718 = vmatprep.subr.mxu0 %v4382
        %4719 = vmatpush1.msra.mxu0 %v4381
        %4720 = vmatprep.subr.mxu0 %v4386
        %4721 = vmatpush1.msra.mxu0 %v4385
        %4722 = vmatprep.subr.mxu0 %v4390
        %4723 = vmatpush1.msra.mxu0 %v4389
        %4724 = vmatprep.subr.mxu0 %v4394
        %4725 = vmatpush1.msra.mxu0 %v4393
        %4726 = vmatprep.subr.mxu0 %v4398
        %4727 = vmatpush1.msra.mxu0 %v4397
        %4728 = vmatprep.subr.mxu0 %v4402
        %4729 = vmatpush1.msra.mxu0 %v4401
        %4730 = vmatprep.subr.mxu0 %v4406
        %4731 = vmatpush1.msra.mxu0 %v4405
        %4732 = vmatprep.subr.mxu0 %v4410
        %4733 = vmatpush1.msra.mxu0 %v4409
        %4734 = vmatprep.subr.mxu0 %v4414
        %4735 = vmatpush1.msra.mxu0 %v4413
        %4736 = vmatprep.subr.mxu0 %v4418
        %4737 = vmatpush1.msra.mxu0 %v4417
        %4738 = vmatprep.subr.mxu0 %v4422
        %4739 = vmatpush1.msra.mxu0 %v4421
        %4740 = vmatprep.subr.mxu0 %v4426
        %4741 = vmatpush1.msra.mxu0 %v4425
        %4742 = vmatprep.subr.mxu0 %v4430
        %4743 = vmatpush1.msra.mxu0 %v4429
        %4744 = vmatprep.subr.mxu0 %v4434
        %4745 = vmatpush1.msra.mxu0 %v4433
        %4746 = vmatprep.subr.mxu0 %v4438
        %4747 = vmatpush1.msra.mxu0 %v4437
        %4748 = vmatprep.subr.mxu0 %v4442
        %4749 = vmatpush1.msra.mxu0 %v4441
        %4750 = vmatprep.subr.mxu0 %v4446
        %4751 = vmatpush1.msra.mxu0 %v4445
        %4752 = vmatprep.subr.mxu0 %v4450
        %4753 = vmatpush1.msra.mxu0 %v4449
        %4754 = vmatprep.subr.mxu0 %v4454
        %4755 = vmatpush1.msra.mxu0 %v4453
        %4756 = vmatprep.subr.mxu0 %v4458
        %4757 = vmatpush1.msra.mxu0 %v4457
        %4758 = vmatprep.subr.mxu0 %v4462
        %4759 = vmatpush1.msra.mxu0 %v4461
        %4760 = vmatprep.subr.mxu0 %v4466
        %4761 = vmatpush1.msra.mxu0 %v4465
        %4762 = vmatprep.subr.mxu0 %v4470
        %4763 = vmatpush1.msra.mxu0 %v4469
        %4764 = vmatprep.subr.mxu0 %v4474
        %4765 = vmatpush1.msra.mxu0 %v4473
        %4766 = vmatprep.subr.mxu0 %v4478
        %4767 = vmatpush1.msra.mxu0 %v4477
        %4768 = vmatprep.subr.mxu0 %v4482
        %4769 = vmatpush1.msra.mxu0 %v4481
        %4770 = vmatprep.subr.mxu0 %v4486
        %4771 = vmatpush1.msra.mxu0 %v4485
        %4772 = vmatprep.mubr.f32.mxu0 %v4490
        %4773 = vmatmul.mubr.f32.gmra.mrb[0].mxu0 %v4489
        %v4774 = vpop.f32.mrb[0].mxu0
        %v4775 = vadd.f32 %v4704, %v4774
        %v4776 = vpop.f32.mrb[0].mxu0
        %v4777 = vadd.f32 %v4706, %v4776
        %4778 = vdwg.mxu0
        %v4779 = vadd.f32 %v4085, %v4633
        %v4780 = vadd.f32 %v4087, %v4635
        %v4781 = vadd.f32 %v4227, %v4775
        %v4782 = vadd.f32 %v4229, %v4777
        %v4783 = vld [vmem:[#allocation8] sm:$0xf]
        %v4785 = vlaneseq
        %v4786 = vshrl.u32 %v4785, 7
        %v4787 = vsub.s32 0, %v4786
        %v4788 = vrot.slane %v4783, %v4787
        %v4789 = vlaneseq
        %v4790 = vshrl.u32 %v4789, 7
        %v4791 = vsub.s32 1, %v4790
        %v4792 = vrot.slane %v4783, %v4791
        %v4793 = vlaneseq
        %v4794 = vshrl.u32 %v4793, 7
        %v4795 = vsub.s32 2, %v4794
        %v4796 = vrot.slane %v4783, %v4795
        %v4797 = vlaneseq
        %v4798 = vshrl.u32 %v4797, 7
        %v4799 = vsub.s32 3, %v4798
        %v4800 = vrot.slane %v4783, %v4799
        %v4805 = vadd.f32 %v4779, %v4788
        %v4806 = vadd.f32 %v4780, %v4792
        %v4807 = vadd.f32 %v4781, %v4796
        %v4808 = vadd.f32 %v4782, %v4800
        %v4809 = vmax.f32 %v4805, 0.0
        %v4810 = vmax.f32 %v4806, 0.0
        %v4811 = vmax.f32 %v4807, 0.0
        %v4812 = vmax.f32 %v4808, 0.0
        %v4813 = vmax.f32 %v4809, %v4810
        %v4814 = vmax.f32 %v4811, %v4812
        %v4815 = vmax.f32 %v4813, %v4814
        %v4816 = vld [vmem:[#allocation10] sm:$0x1]
        %v4817 = vld [vmem:[%s5] sm:$0xff]
        %v4818 = vld [vmem:[%s5 + $0x8] sm:$0xff]
        %v4819 = vld [vmem:[%s5 + $0x10] sm:$0xff]
        %v4820 = vld [vmem:[%s5 + $0x18] sm:$0xff]
        %v4821 = vld [vmem:[%s5 + $0x20] sm:$0xff]
        %v4822 = vld [vmem:[%s5 + $0x28] sm:$0xff]
        %v4823 = vld [vmem:[%s5 + $0x30] sm:$0xff]
        %v4824 = vld [vmem:[%s5 + $0x38] sm:$0xff]
        %v4825 = vld [vmem:[%s5 + $0x40] sm:$0xff]
        %v4826 = vld [vmem:[%s5 + $0x48] sm:$0xff]
        %v4827 = vld [vmem:[%s5 + $0x50] sm:$0xff]
        %v4828 = vld [vmem:[%s5 + $0x58] sm:$0xff]
        %v4829 = vld [vmem:[%s5 + $0x60] sm:$0xff]
        %v4830 = vld [vmem:[%s5 + $0x68] sm:$0xff]
        %v4831 = vld [vmem:[%s5 + $0x70] sm:$0xff]
        %v4832 = vld [vmem:[%s5 + $0x78] sm:$0xff]
        %4833 = vmatprep.subr.mxu0 0.0
        %4834 = vmatpush1.msra.mxu0 %v4817
        %4835 = vmatprep.subr.mxu0 0.0
        %4836 = vmatpush1.msra.mxu0 %v4818
        %4837 = vmatprep.subr.mxu0 0.0
        %4838 = vmatpush1.msra.mxu0 %v4819
        %4839 = vmatprep.subr.mxu0 0.0
        %4840 = vmatpush1.msra.mxu0 %v4820
        %4841 = vmatprep.subr.mxu0 0.0
        %4842 = vmatpush1.msra.mxu0 %v4821
        %4843 = vmatprep.subr.mxu0 0.0
        %4844 = vmatpush1.msra.mxu0 %v4822
        %4845 = vmatprep.subr.mxu0 0.0
        %4846 = vmatpush1.msra.mxu0 %v4823
        %4847 = vmatprep.subr.mxu0 0.0
        %4848 = vmatpush1.msra.mxu0 %v4824
        %4849 = vmatprep.subr.mxu0 0.0
        %4850 = vmatpush1.msra.mxu0 %v4825
        %4851 = vmatprep.subr.mxu0 0.0
        %4852 = vmatpush1.msra.mxu0 %v4826
        %4853 = vmatprep.subr.mxu0 0.0
        %4854 = vmatpush1.msra.mxu0 %v4827
        %4855 = vmatprep.subr.mxu0 0.0
        %4856 = vmatpush1.msra.mxu0 %v4828
        %4857 = vmatprep.subr.mxu0 0.0
        %4858 = vmatpush1.msra.mxu0 %v4829
        %4859 = vmatprep.subr.mxu0 0.0
        %4860 = vmatpush1.msra.mxu0 %v4830
        %4861 = vmatprep.subr.mxu0 0.0
        %4862 = vmatpush1.msra.mxu0 %v4831
        %4863 = vmatprep.subr.mxu0 0.0
        %4864 = vmatpush1.msra.mxu0 %v4832
        %4865 = vmatprep.subr.mxu0 0.0
        %4866 = vmatpush1.msra.mxu0 0.0
        %4867 = vmatprep.subr.mxu0 0.0
        %4868 = vmatpush1.msra.mxu0 0.0
        %4869 = vmatprep.subr.mxu0 0.0
        %4870 = vmatpush1.msra.mxu0 0.0
        %4871 = vmatprep.subr.mxu0 0.0
        %4872 = vmatpush1.msra.mxu0 0.0
        %4873 = vmatprep.subr.mxu0 0.0
        %4874 = vmatpush1.msra.mxu0 0.0
        %4875 = vmatprep.subr.mxu0 0.0
        %4876 = vmatpush1.msra.mxu0 0.0
        %4877 = vmatprep.subr.mxu0 0.0
        %4878 = vmatpush1.msra.mxu0 0.0
        %4879 = vmatprep.subr.mxu0 0.0
        %4880 = vmatpush1.msra.mxu0 0.0
        %4881 = vmatprep.subr.mxu0 0.0
        %4882 = vmatpush1.msra.mxu0 0.0
        %4883 = vmatprep.subr.mxu0 0.0
        %4884 = vmatpush1.msra.mxu0 0.0
        %4885 = vmatprep.subr.mxu0 0.0
        %4886 = vmatpush1.msra.mxu0 0.0
        %4887 = vmatprep.subr.mxu0 0.0
        %4888 = vmatpush1.msra.mxu0 0.0
        %4889 = vmatprep.subr.mxu0 0.0
        %4890 = vmatpush1.msra.mxu0 0.0
        %4891 = vmatprep.subr.mxu0 0.0
        %4892 = vmatpush1.msra.mxu0 0.0
        %4893 = vmatprep.subr.mxu0 0.0
        %4894 = vmatpush1.msra.mxu0 0.0
        %4895 = vmatprep.subr.mxu0 0.0
        %4896 = vmatpush1.msra.mxu0 0.0
        %4897 = vmatprep.mubr.f32.mxu0 0.0
        %4898 = vmatmul.mubr.f32.gmra.mrb[0].mxu0 %v4815
        %v4899 = vpop.f32.mrb[0].mxu0
        %v4900 = vadd.f32 0.0, %v4899
        %v4901 = vpop.f32.mrb[0].mxu0
        %4902 = vdwg.mxu0
        %v4903 = vadd.f32 %v4816, %v4900
        %v4904 = vld [vmem:[%s5 + $0x80] sm:$0xff]
        %v4905 = vld [vmem:[%s5 + $0x88] sm:$0xff]
        %v4906 = vld [vmem:[%s5 + $0x90] sm:$0xff]
        %v4907 = vld [vmem:[%s5 + $0x98] sm:$0xff]
        %v4908 = vld [vmem:[%s5 + $0xa0] sm:$0xff]
        %v4909 = vld [vmem:[%s5 + $0xa8] sm:$0xff]
        %v4910 = vld [vmem:[%s5 + $0xb0] sm:$0xff]
        %v4911 = vld [vmem:[%s5 + $0xb8] sm:$0xff]
        %v4912 = vld [vmem:[%s5 + $0xc0] sm:$0xff]
        %v4913 = vld [vmem:[%s5 + $0xc8] sm:$0xff]
        %v4914 = vld [vmem:[%s5 + $0xd0] sm:$0xff]
        %v4915 = vld [vmem:[%s5 + $0xd8] sm:$0xff]
        %v4916 = vld [vmem:[%s5 + $0xe0] sm:$0xff]
        %v4917 = vld [vmem:[%s5 + $0xe8] sm:$0xff]
        %v4918 = vld [vmem:[%s5 + $0xf0] sm:$0xff]
        %v4919 = vld [vmem:[%s5 + $0xf8] sm:$0xff]
        %v4921 = vrot.slane %v4815, 1
        %4923 = vmatprep.subr.mxu0 0.0
        %4924 = vmatpush1.msra.mxu0 %v4904
        %4925 = vmatprep.subr.mxu0 0.0
        %4926 = vmatpush1.msra.mxu0 %v4905
        %4927 = vmatprep.subr.mxu0 0.0
        %4928 = vmatpush1.msra.mxu0 %v4906
        %4929 = vmatprep.subr.mxu0 0.0
        %4930 = vmatpush1.msra.mxu0 %v4907
        %4931 = vmatprep.subr.mxu0 0.0
        %4932 = vmatpush1.msra.mxu0 %v4908
        %4933 = vmatprep.subr.mxu0 0.0
        %4934 = vmatpush1.msra.mxu0 %v4909
        %4935 = vmatprep.subr.mxu0 0.0
        %4936 = vmatpush1.msra.mxu0 %v4910
        %4937 = vmatprep.subr.mxu0 0.0
        %4938 = vmatpush1.msra.mxu0 %v4911
        %4939 = vmatprep.subr.mxu0 0.0
        %4940 = vmatpush1.msra.mxu0 %v4912
        %4941 = vmatprep.subr.mxu0 0.0
        %4942 = vmatpush1.msra.mxu0 %v4913
        %4943 = vmatprep.subr.mxu0 0.0
        %4944 = vmatpush1.msra.mxu0 %v4914
        %4945 = vmatprep.subr.mxu0 0.0
        %4946 = vmatpush1.msra.mxu0 %v4915
        %4947 = vmatprep.subr.mxu0 0.0
        %4948 = vmatpush1.msra.mxu0 %v4916
        %4949 = vmatprep.subr.mxu0 0.0
        %4950 = vmatpush1.msra.mxu0 %v4917
        %4951 = vmatprep.subr.mxu0 0.0
        %4952 = vmatpush1.msra.mxu0 %v4918
        %4953 = vmatprep.subr.mxu0 0.0
        %4954 = vmatpush1.msra.mxu0 %v4919
        %4955 = vmatprep.subr.mxu0 0.0
        %4956 = vmatpush1.msra.mxu0 0.0
        %4957 = vmatprep.subr.mxu0 0.0
        %4958 = vmatpush1.msra.mxu0 0.0
        %4959 = vmatprep.subr.mxu0 0.0
        %4960 = vmatpush1.msra.mxu0 0.0
        %4961 = vmatprep.subr.mxu0 0.0
        %4962 = vmatpush1.msra.mxu0 0.0
        %4963 = vmatprep.subr.mxu0 0.0
        %4964 = vmatpush1.msra.mxu0 0.0
        %4965 = vmatprep.subr.mxu0 0.0
        %4966 = vmatpush1.msra.mxu0 0.0
        %4967 = vmatprep.subr.mxu0 0.0
        %4968 = vmatpush1.msra.mxu0 0.0
        %4969 = vmatprep.subr.mxu0 0.0
        %4970 = vmatpush1.msra.mxu0 0.0
        %4971 = vmatprep.subr.mxu0 0.0
        %4972 = vmatpush1.msra.mxu0 0.0
        %4973 = vmatprep.subr.mxu0 0.0
        %4974 = vmatpush1.msra.mxu0 0.0
        %4975 = vmatprep.subr.mxu0 0.0
        %4976 = vmatpush1.msra.mxu0 0.0
        %4977 = vmatprep.subr.mxu0 0.0
        %4978 = vmatpush1.msra.mxu0 0.0
        %4979 = vmatprep.subr.mxu0 0.0
        %4980 = vmatpush1.msra.mxu0 0.0
        %4981 = vmatprep.subr.mxu0 0.0
        %4982 = vmatpush1.msra.mxu0 0.0
        %4983 = vmatprep.subr.mxu0 0.0
        %4984 = vmatpush1.msra.mxu0 0.0
        %4985 = vmatprep.subr.mxu0 0.0
        %4986 = vmatpush1.msra.mxu0 0.0
        %4987 = vmatprep.mubr.f32.mxu0 0.0
        %4988 = vmatmul.mubr.f32.gmra.mrb[0].mxu0 %v4921
        %v4989 = vpop.f32.mrb[0].mxu0
        %v4990 = vadd.f32 0.0, %v4989
        %v4991 = vpop.f32.mrb[0].mxu0
        %4992 = vdwg.mxu0
        %v4993 = vadd.f32 %v4903, %v4990
        %v4994 = vld [vmem:[%s5 + $0x100] sm:$0xff]
        %v4995 = vld [vmem:[%s5 + $0x108] sm:$0xff]
        %v4996 = vld [vmem:[%s5 + $0x110] sm:$0xff]
        %v4997 = vld [vmem:[%s5 + $0x118] sm:$0xff]
        %v4998 = vld [vmem:[%s5 + $0x120] sm:$0xff]
        %v4999 = vld [vmem:[%s5 + $0x128] sm:$0xff]
        %v5000 = vld [vmem:[%s5 + $0x130] sm:$0xff]
        %v5001 = vld [vmem:[%s5 + $0x138] sm:$0xff]
        %v5002 = vld [vmem:[%s5 + $0x140] sm:$0xff]
        %v5003 = vld [vmem:[%s5 + $0x148] sm:$0xff]
        %v5004 = vld [vmem:[%s5 + $0x150] sm:$0xff]
        %v5005 = vld [vmem:[%s5 + $0x158] sm:$0xff]
        %v5006 = vld [vmem:[%s5 + $0x160] sm:$0xff]
        %v5007 = vld [vmem:[%s5 + $0x168] sm:$0xff]
        %v5008 = vld [vmem:[%s5 + $0x170] sm:$0xff]
        %v5009 = vld [vmem:[%s5 + $0x178] sm:$0xff]
        %v5010 = vrot.slane %v4815, 2
        %5012 = vmatprep.subr.mxu0 0.0
        %5013 = vmatpush1.msra.mxu0 %v4994
        %5014 = vmatprep.subr.mxu0 0.0
        %5015 = vmatpush1.msra.mxu0 %v4995
        %5016 = vmatprep.subr.mxu0 0.0
        %5017 = vmatpush1.msra.mxu0 %v4996
        %5018 = vmatprep.subr.mxu0 0.0
        %5019 = vmatpush1.msra.mxu0 %v4997
        %5020 = vmatprep.subr.mxu0 0.0
        %5021 = vmatpush1.msra.mxu0 %v4998
        %5022 = vmatprep.subr.mxu0 0.0
        %5023 = vmatpush1.msra.mxu0 %v4999
        %5024 = vmatprep.subr.mxu0 0.0
        %5025 = vmatpush1.msra.mxu0 %v5000
        %5026 = vmatprep.subr.mxu0 0.0
        %5027 = vmatpush1.msra.mxu0 %v5001
        %5028 = vmatprep.subr.mxu0 0.0
        %5029 = vmatpush1.msra.mxu0 %v5002
        %5030 = vmatprep.subr.mxu0 0.0
        %5031 = vmatpush1.msra.mxu0 %v5003
        %5032 = vmatprep.subr.mxu0 0.0
        %5033 = vmatpush1.msra.mxu0 %v5004
        %5034 = vmatprep.subr.mxu0 0.0
        %5035 = vmatpush1.msra.mxu0 %v5005
        %5036 = vmatprep.subr.mxu0 0.0
        %5037 = vmatpush1.msra.mxu0 %v5006
        %5038 = vmatprep.subr.mxu0 0.0
        %5039 = vmatpush1.msra.mxu0 %v5007
        %5040 = vmatprep.subr.mxu0 0.0
        %5041 = vmatpush1.msra.mxu0 %v5008
        %5042 = vmatprep.subr.mxu0 0.0
        %5043 = vmatpush1.msra.mxu0 %v5009
        %5044 = vmatprep.subr.mxu0 0.0
        %5045 = vmatpush1.msra.mxu0 0.0
        %5046 = vmatprep.subr.mxu0 0.0
        %5047 = vmatpush1.msra.mxu0 0.0
        %5048 = vmatprep.subr.mxu0 0.0
        %5049 = vmatpush1.msra.mxu0 0.0
        %5050 = vmatprep.subr.mxu0 0.0
        %5051 = vmatpush1.msra.mxu0 0.0
        %5052 = vmatprep.subr.mxu0 0.0
        %5053 = vmatpush1.msra.mxu0 0.0
        %5054 = vmatprep.subr.mxu0 0.0
        %5055 = vmatpush1.msra.mxu0 0.0
        %5056 = vmatprep.subr.mxu0 0.0
        %5057 = vmatpush1.msra.mxu0 0.0
        %5058 = vmatprep.subr.mxu0 0.0
        %5059 = vmatpush1.msra.mxu0 0.0
        %5060 = vmatprep.subr.mxu0 0.0
        %5061 = vmatpush1.msra.mxu0 0.0
        %5062 = vmatprep.subr.mxu0 0.0
        %5063 = vmatpush1.msra.mxu0 0.0
        %5064 = vmatprep.subr.mxu0 0.0
        %5065 = vmatpush1.msra.mxu0 0.0
        %5066 = vmatprep.subr.mxu0 0.0
        %5067 = vmatpush1.msra.mxu0 0.0
        %5068 = vmatprep.subr.mxu0 0.0
        %5069 = vmatpush1.msra.mxu0 0.0
        %5070 = vmatprep.subr.mxu0 0.0
        %5071 = vmatpush1.msra.mxu0 0.0
        %5072 = vmatprep.subr.mxu0 0.0
        %5073 = vmatpush1.msra.mxu0 0.0
        %5074 = vmatprep.subr.mxu0 0.0
        %5075 = vmatpush1.msra.mxu0 0.0
        %5076 = vmatprep.mubr.f32.mxu0 0.0
        %5077 = vmatmul.mubr.f32.gmra.mrb[0].mxu0 %v5010
        %v5078 = vpop.f32.mrb[0].mxu0
        %v5079 = vadd.f32 0.0, %v5078
        %v5080 = vpop.f32.mrb[0].mxu0
        %5081 = vdwg.mxu0
        %v5082 = vadd.f32 %v4993, %v5079
        %v5083 = vld [vmem:[%s5 + $0x180] sm:$0xff]
        %v5084 = vld [vmem:[%s5 + $0x188] sm:$0xff]
        %v5085 = vld [vmem:[%s5 + $0x190] sm:$0xff]
        %v5086 = vld [vmem:[%s5 + $0x198] sm:$0xff]
        %v5087 = vld [vmem:[%s5 + $0x1a0] sm:$0xff]
        %v5088 = vld [vmem:[%s5 + $0x1a8] sm:$0xff]
        %v5089 = vld [vmem:[%s5 + $0x1b0] sm:$0xff]
        %v5090 = vld [vmem:[%s5 + $0x1b8] sm:$0xff]
        %v5091 = vld [vmem:[%s5 + $0x1c0] sm:$0xff]
        %v5092 = vld [vmem:[%s5 + $0x1c8] sm:$0xff]
        %v5093 = vld [vmem:[%s5 + $0x1d0] sm:$0xff]
        %v5094 = vld [vmem:[%s5 + $0x1d8] sm:$0xff]
        %v5095 = vld [vmem:[%s5 + $0x1e0] sm:$0xff]
        %v5096 = vld [vmem:[%s5 + $0x1e8] sm:$0xff]
        %v5097 = vld [vmem:[%s5 + $0x1f0] sm:$0xff]
        %v5098 = vld [vmem:[%s5 + $0x1f8] sm:$0xff]
        %v5099 = vrot.slane %v4815, 3
        %5101 = vmatprep.subr.mxu0 0.0
        %5102 = vmatpush1.msra.mxu0 %v5083
        %5103 = vmatprep.subr.mxu0 0.0
        %5104 = vmatpush1.msra.mxu0 %v5084
        %5105 = vmatprep.subr.mxu0 0.0
        %5106 = vmatpush1.msra.mxu0 %v5085
        %5107 = vmatprep.subr.mxu0 0.0
        %5108 = vmatpush1.msra.mxu0 %v5086
        %5109 = vmatprep.subr.mxu0 0.0
        %5110 = vmatpush1.msra.mxu0 %v5087
        %5111 = vmatprep.subr.mxu0 0.0
        %5112 = vmatpush1.msra.mxu0 %v5088
        %5113 = vmatprep.subr.mxu0 0.0
        %5114 = vmatpush1.msra.mxu0 %v5089
        %5115 = vmatprep.subr.mxu0 0.0
        %5116 = vmatpush1.msra.mxu0 %v5090
        %5117 = vmatprep.subr.mxu0 0.0
        %5118 = vmatpush1.msra.mxu0 %v5091
        %5119 = vmatprep.subr.mxu0 0.0
        %5120 = vmatpush1.msra.mxu0 %v5092
        %5121 = vmatprep.subr.mxu0 0.0
        %5122 = vmatpush1.msra.mxu0 %v5093
        %5123 = vmatprep.subr.mxu0 0.0
        %5124 = vmatpush1.msra.mxu0 %v5094
        %5125 = vmatprep.subr.mxu0 0.0
        %5126 = vmatpush1.msra.mxu0 %v5095
        %5127 = vmatprep.subr.mxu0 0.0
        %5128 = vmatpush1.msra.mxu0 %v5096
        %5129 = vmatprep.subr.mxu0 0.0
        %5130 = vmatpush1.msra.mxu0 %v5097
        %5131 = vmatprep.subr.mxu0 0.0
        %5132 = vmatpush1.msra.mxu0 %v5098
        %5133 = vmatprep.subr.mxu0 0.0
        %5134 = vmatpush1.msra.mxu0 0.0
        %5135 = vmatprep.subr.mxu0 0.0
        %5136 = vmatpush1.msra.mxu0 0.0
        %5137 = vmatprep.subr.mxu0 0.0
        %5138 = vmatpush1.msra.mxu0 0.0
        %5139 = vmatprep.subr.mxu0 0.0
        %5140 = vmatpush1.msra.mxu0 0.0
        %5141 = vmatprep.subr.mxu0 0.0
        %5142 = vmatpush1.msra.mxu0 0.0
        %5143 = vmatprep.subr.mxu0 0.0
        %5144 = vmatpush1.msra.mxu0 0.0
        %5145 = vmatprep.subr.mxu0 0.0
        %5146 = vmatpush1.msra.mxu0 0.0
        %5147 = vmatprep.subr.mxu0 0.0
        %5148 = vmatpush1.msra.mxu0 0.0
        %5149 = vmatprep.subr.mxu0 0.0
        %5150 = vmatpush1.msra.mxu0 0.0
        %5151 = vmatprep.subr.mxu0 0.0
        %5152 = vmatpush1.msra.mxu0 0.0
        %5153 = vmatprep.subr.mxu0 0.0
        %5154 = vmatpush1.msra.mxu0 0.0
        %5155 = vmatprep.subr.mxu0 0.0
        %5156 = vmatpush1.msra.mxu0 0.0
        %5157 = vmatprep.subr.mxu0 0.0
        %5158 = vmatpush1.msra.mxu0 0.0
        %5159 = vmatprep.subr.mxu0 0.0
        %5160 = vmatpush1.msra.mxu0 0.0
        %5161 = vmatprep.subr.mxu0 0.0
        %5162 = vmatpush1.msra.mxu0 0.0
        %5163 = vmatprep.subr.mxu0 0.0
        %5164 = vmatpush1.msra.mxu0 0.0
        %5165 = vmatprep.mubr.f32.mxu0 0.0
        %5166 = vmatmul.mubr.f32.gmra.mrb[0].mxu0 %v5099
        %v5167 = vpop.f32.mrb[0].mxu0
        %v5168 = vadd.f32 0.0, %v5167
        %v5169 = vpop.f32.mrb[0].mxu0
        %5170 = vdwg.mxu0
        %v5171 = vadd.f32 %v5082, %v5168
        %v5172 = vmax.f32 %v5171, 0.0
        %v5173 = vld [vmem:[%s7] sm:$0xff]
        %v5174 = vld [vmem:[%s7 + $0x8] sm:$0xff]
        %v5175 = vld [vmem:[%s7 + $0x10] sm:$0xff]
        %v5176 = vld [vmem:[%s7 + $0x18] sm:$0xff]
        %v5177 = vld [vmem:[%s7 + $0x20] sm:$0xff]
        %v5178 = vld [vmem:[%s7 + $0x28] sm:$0xff]
        %v5179 = vld [vmem:[%s7 + $0x30] sm:$0xff]
        %v5180 = vld [vmem:[%s7 + $0x38] sm:$0xff]
        %v5181 = vld [vmem:[%s7 + $0x40] sm:$0xff]
        %v5182 = vld [vmem:[%s7 + $0x48] sm:$0xff]
        %v5183 = vld [vmem:[#allocation11] sm:$0x1]
        %vm5184 = vcmask 654336
        %v5186 = vsel %vm5184, %v5172, 0
        %5188 = vmatprep.subr.mxu0 0.0
        %5189 = vmatpush1.msra.mxu0 %v5173
        %5190 = vmatprep.subr.mxu0 0.0
        %5191 = vmatpush1.msra.mxu0 %v5174
        %5192 = vmatprep.subr.mxu0 0.0
        %5193 = vmatpush1.msra.mxu0 %v5175
        %5194 = vmatprep.subr.mxu0 0.0
        %5195 = vmatpush1.msra.mxu0 %v5176
        %5196 = vmatprep.subr.mxu0 0.0
        %5197 = vmatpush1.msra.mxu0 %v5177
        %5198 = vmatprep.subr.mxu0 0.0
        %5199 = vmatpush1.msra.mxu0 %v5178
        %5200 = vmatprep.subr.mxu0 0.0
        %5201 = vmatpush1.msra.mxu0 %v5179
        %5202 = vmatprep.subr.mxu0 0.0
        %5203 = vmatpush1.msra.mxu0 %v5180
        %5204 = vmatprep.subr.mxu0 0.0
        %5205 = vmatpush1.msra.mxu0 %v5181
        %5206 = vmatprep.subr.mxu0 0.0
        %5207 = vmatpush1.msra.mxu0 %v5182
        %5208 = vmatprep.subr.mxu0 0.0
        %5209 = vmatpush1.msra.mxu0 0.0
        %5210 = vmatprep.subr.mxu0 0.0
        %5211 = vmatpush1.msra.mxu0 0.0
        %5212 = vmatprep.subr.mxu0 0.0
        %5213 = vmatpush1.msra.mxu0 0.0
        %5214 = vmatprep.subr.mxu0 0.0
        %5215 = vmatpush1.msra.mxu0 0.0
        %5216 = vmatprep.subr.mxu0 0.0
        %5217 = vmatpush1.msra.mxu0 0.0
        %5218 = vmatprep.subr.mxu0 0.0
        %5219 = vmatpush1.msra.mxu0 0.0
        %5220 = vmatprep.subr.mxu0 0.0
        %5221 = vmatpush1.msra.mxu0 0.0
        %5222 = vmatprep.subr.mxu0 0.0
        %5223 = vmatpush1.msra.mxu0 0.0
        %5224 = vmatprep.subr.mxu0 0.0
        %5225 = vmatpush1.msra.mxu0 0.0
        %5226 = vmatprep.subr.mxu0 0.0
        %5227 = vmatpush1.msra.mxu0 0.0
        %5228 = vmatprep.subr.mxu0 0.0
        %5229 = vmatpush1.msra.mxu0 0.0
        %5230 = vmatprep.subr.mxu0 0.0
        %5231 = vmatpush1.msra.mxu0 0.0
        %5232 = vmatprep.subr.mxu0 0.0
        %5233 = vmatpush1.msra.mxu0 0.0
        %5234 = vmatprep.subr.mxu0 0.0
        %5235 = vmatpush1.msra.mxu0 0.0
        %5236 = vmatprep.subr.mxu0 0.0
        %5237 = vmatpush1.msra.mxu0 0.0
        %5238 = vmatprep.subr.mxu0 0.0
        %5239 = vmatpush1.msra.mxu0 0.0
        %5240 = vmatprep.subr.mxu0 0.0
        %5241 = vmatpush1.msra.mxu0 0.0
        %5242 = vmatprep.subr.mxu0 0.0
        %5243 = vmatpush1.msra.mxu0 0.0
        %5244 = vmatprep.subr.mxu0 0.0
        %5245 = vmatpush1.msra.mxu0 0.0
        %5246 = vmatprep.subr.mxu0 0.0
        %5247 = vmatpush1.msra.mxu0 0.0
        %5248 = vmatprep.subr.mxu0 0.0
        %5249 = vmatpush1.msra.mxu0 0.0
        %5250 = vmatprep.subr.mxu0 0.0
        %5251 = vmatpush1.msra.mxu0 0.0
        %5252 = vmatprep.mubr.f32.mxu0 0.0
        %5253 = vmatmul.mubr.f32.gmra.mrb[0].mxu0 %v5186
        %v5254 = vpop.f32.mrb[0].mxu0
        %v5255 = vadd.f32 %v5183, %v5254
        %v5256 = vpop.f32.mrb[0].mxu0
        %5257 = vdwg.mxu0
        %vm5258 = vcmask 65536
        %5259 = vst.msk [vmem:[%s404] sm:$0x1] %vm5258, %v5255
        %s5260 = sand.u32 %s229, 1
        %s5261 = scalar_lea.sflag [#allocation4], %s5260
        %s5262 = sand.u32 %s229, 1
        %s5263 = scalar_lea.vmem [#allocation13], %s5262
        // Predicated region
        $region81: #{forward.1} parent=55 // pred_check
          %p5264 = pneg %p239
        $region82: #{forward.1} parent=55 // pred_check_branch
          %5266 = sbr.rel (%p5264) target = $region84
        $region83: #{forward.1} parent=55 // pred_region
          %s5268 = ssub.s32 16, 16
          %5269 = vsyncadd %s5261, %s5268
          %s5270 = smul.addr %s27, 16
          %s5271 = scalar_lea.hbm %s9, %s5270
          %s5273 = sshll.u32 %s5263, 4
          %s5274 = int_to_ptr.vmem [resolvable:$true] %s5273
          %5276 = dma.vmem_to_hbm [thread:$0]  %s5274, 16, %s5271, %s5261
        $region84: #{forward.1} parent=55 // pred_fallthru
          _
      $region56: #{forward.1} parent=5 // pred_fallthru
        _
      %p5277 = scmp.le.s32.totalorder 2, %s22
      // Predicated region
      $region85: #{forward.1} parent=5 // pred_check
        %p5278 = pneg %p5277
      $region86: #{forward.1} parent=5 // pred_check_branch
        %5280 = sbr.rel (%p5278) target = $region88
      $region87: #{forward.1} parent=5 // pred_region
        %s5281 = ssub.s32 %s22, 2
        // Predicated region
        $region89: #{forward.1} parent=87 // pred_check
          %p5282 = pneg %p245
        $region90: #{forward.1} parent=87 // pred_check_branch
          %5284 = sbr.rel (%p5282) target = $region92
        $region91: #{forward.1} parent=87 // pred_region
          %s5285 = sand.u32 %s230, 1
          %s5286 = scalar_lea.sflag [#allocation4], %s5285
          %s5287 = sand.u32 %s230, 1
          %s5288 = scalar_lea.vmem [#allocation13], %s5287
          %5289 = dma.done %s5286, 16
        $region92: #{forward.1} parent=87 // pred_fallthru
          _
      $region88: #{forward.1} parent=5 // pred_fallthru
        _
    $region6: #{forward.1} parent=1 // loop_footer
      %s26 = sadd.s32 1, %s22
    $region7: #{forward.1} parent=1 // loop_footer_branch
      %21 = sbr.rel target = $region3
    $region8: #{forward.1} parent=1 // loop_exit
      _
    %5290 = vsyncpa [#allocation3], 1
    %s5291 = scalar_lea.sflag [#allocation3], 1
    %5292 = vsyncpa %s5291, 1
    %5293 = vsyncpa [#allocation6], 1
    %5294 = vsyncpa [#allocation9], 1
    %5295 = vsyncpa [#allocation12], 1
    %5296 = vsyncpa [#allocation4], 1
    %s5297 = scalar_lea.sflag [#allocation4], 1
    %5298 = vsyncpa %s5297, 1

</llo_original>
